<compile_context>
chip_gen: v7x
topology: tpu7x:2x2x1
jax: 0.10.0
libtpu: 0.0.40
codegen_flags: <defaults>
</compile_context>

<pallas_src>
import jax
import jax.numpy as jnp
from jax import lax
from jax.experimental import pallas as pl
from jax.experimental.pallas import tpu as pltpu


# ------------------------------ wrapper + kernel -----------------------------

def hilo_forward_pallas(x, H, W, params, cfg):
    B, N, C = x.shape
    ws, scale = cfg["ws"], cfg["scale"]
    h_heads, l_heads, hd = cfg["h_heads"], cfg["l_heads"], cfg["hd"]
    h_dim, l_dim = h_heads * hd, l_heads * hd
    hg, wg = H // ws, W // ws
    T = hg * wg
    # TODO(synk): ws==1 / single-branch (h_heads==0 or l_heads==0) module
    # configurations are not implemented in this fused kernel.
    assert h_heads > 0 and l_heads > 0 and ws > 1

    # ---- one-time param prep: fold qk scale into the q weight columns ------
    wqkv_h = params["wqkv_h"]                                   # (C, 3*h_dim)
    wqkv_h = jnp.concatenate([wqkv_h[:, :h_dim] * scale,
                              wqkv_h[:, h_dim:]], axis=1)
    wq_l = params["wq_l"] * scale                               # (C, l_dim)
    wkv_l = params["wkv_l"]                                     # (C, 2*l_dim)
    wproj_h = params["wproj_h"]                                 # (h_dim, h_dim)
    wproj_l = params["wproj_l"]                                 # (l_dim, l_dim)
    bproj_h = params["bproj_h"]                                 # (1, h_dim)
    bproj_l = params["bproj_l"]                                 # (1, l_dim)

    # ---- wrapper-side AvgPool2d(ws): tiny (B, T, C) input, no pool matmul --
    xp = x.reshape(B, hg, ws, wg, ws, C).mean(axis=(2, 4)).reshape(B, T, C)

    # ---- tiny per-token window-id vectors (mask built in-kernel) -----------
    row = jnp.arange(N)
    win_id = ((row // W) // ws) * wg + (row % W) // ws
    win_r = win_id.astype(jnp.float32).reshape(N, 1)            # (N, 1)
    win_c = win_id.astype(jnp.float32).reshape(1, N)            # (1, N)

    # ------------------------------ kernel ----------------------------------
    def kernel(x_ref, xp_ref, winr_ref, winc_ref,
               wqkv_h_ref, wproj_h_ref, bproj_h_ref,
               wq_l_ref, wkv_l_ref, wproj_l_ref, bproj_l_ref,
               o_ref):
        xv = x_ref[...]                                   # (N, C)
        xpv = xp_ref[...]                                 # (T, C)
        neg = jnp.float32(-1e30)
        qkT = (((1,), (1,)), ((), ()))                    # contract last dims

        # ---------- hifi: window attention via block-diagonal mask ----------
        # one lane-dense projection: (N, C) @ (C, 3*h_dim)
        qkv = jnp.dot(xv, wqkv_h_ref[...],
                      preferred_element_type=jnp.float32)
        same_win = winr_ref[...] == winc_ref[...]         # (N, N) bool
        wp_h = wproj_h_ref[...]                           # (h_dim, h_dim)

        hifi = jnp.zeros((N, h_dim), jnp.float32)
        for h in range(h_heads):
            lo = h * hd
            q_h = qkv[:, lo:lo + hd]                      # (N, hd) lane slice
            k_h = qkv[:, h_dim + lo:h_dim + lo + hd]      # (N, hd)
            v_h = qkv[:, 2 * h_dim + lo:2 * h_dim + lo + hd]
            s = lax.dot_general(q_h, k_h, qkT,
                                preferred_element_type=jnp.float32)   # (N, N)
            s = jnp.where(same_win, s, neg)               # zero outside window
            s = s - jnp.max(s, axis=-1, keepdims=True)
            e = jnp.exp(s)
            a = e * pl.reciprocal(jnp.sum(e, axis=-1, keepdims=True),
                                  approx=True)
            o_h = jnp.dot(a, v_h, preferred_element_type=jnp.float32)  # (N, hd)
            # fused per-head projection + head reduction (lane-dense output)
            hifi = hifi + jnp.dot(o_h, wp_h[lo:lo + hd, :],
                                  preferred_element_type=jnp.float32)
        hifi = hifi + bproj_h_ref[...]
        o_ref[:, :h_dim] = hifi.astype(o_ref.dtype)       # slice store, no concat

        # ---------- lofi: avg-pooled global attention -----------------------
        ql = jnp.dot(xv, wq_l_ref[...],
                     preferred_element_type=jnp.float32)          # (N, l_dim)
        kv = jnp.dot(xpv, wkv_l_ref[...],
                     preferred_element_type=jnp.float32)          # (T, 2*l_dim)
        wp_l = wproj_l_ref[...]                                   # (l_dim, l_dim)

        lofi = jnp.zeros((N, l_dim), jnp.float32)
        for h in range(l_heads):
            lo = h * hd
            q_h = ql[:, lo:lo + hd]                       # (N, hd)
            k_h = kv[:, lo:lo + hd]                       # (T, hd)
            v_h = kv[:, l_dim + lo:l_dim + lo + hd]       # (T, hd)
            s = lax.dot_general(q_h, k_h, qkT,
                                preferred_element_type=jnp.float32)   # (N, T)
            s = s - jnp.max(s, axis=-1, keepdims=True)
            e = jnp.exp(s)
            a = e * pl.reciprocal(jnp.sum(e, axis=-1, keepdims=True),
                                  approx=True)
            o_h = jnp.dot(a, v_h, preferred_element_type=jnp.float32)  # (N, hd)
            lofi = lofi + jnp.dot(o_h, wp_l[lo:lo + hd, :],
                                  preferred_element_type=jnp.float32)
        lofi = lofi + bproj_l_ref[...]
        o_ref[:, h_dim:] = lofi.astype(o_ref.dtype)       # slice store, no concat

    # ------------------------------ pallas_call ------------------------------
    def const(shape):
        nd = len(shape)
        return pl.BlockSpec(shape, lambda b, _n=nd: (0,) * _n)

    out = pl.pallas_call(
        kernel,
        out_shape=jax.ShapeDtypeStruct((B, N, C), jnp.float32),
        grid=(B,),
        in_specs=[
            pl.BlockSpec((None, N, C), lambda b: (b, 0, 0)),   # x
            pl.BlockSpec((None, T, C), lambda b: (b, 0, 0)),   # xp (pooled)
            const((N, 1)),                                     # window id (rows)
            const((1, N)),                                     # window id (cols)
            const((C, 3 * h_dim)),                             # wqkv_h (scaled q)
            const((h_dim, h_dim)),                             # wproj_h
            const((1, h_dim)),                                 # bproj_h
            const((C, l_dim)),                                 # wq_l (scaled)
            const((C, 2 * l_dim)),                             # wkv_l
            const((l_dim, l_dim)),                             # wproj_l
            const((1, l_dim)),                                 # bproj_l
        ],
        out_specs=pl.BlockSpec((None, N, C), lambda b: (b, 0, 0)),
        compiler_params=pltpu.CompilerParams(
            dimension_semantics=("parallel",)),
    )(x, xp, win_r, win_c, wqkv_h, wproj_h, bproj_h,
      wq_l, wkv_l, wproj_l, bproj_l)
    return out


# ----------------------- plain-JAX reference (checking) ---------------------

def hilo_forward_reference(x, H, W, params, cfg):
    B, N, C = x.shape
    ws = cfg["ws"]
    h_heads, l_heads, hd = cfg["h_heads"], cfg["l_heads"], cfg["hd"]
    scale = cfg["scale"]
    h_dim, l_dim = h_heads * hd, l_heads * hd
    hg, wg = H // ws, W // ws
    T, wlen = hg * wg, ws * ws
    x4 = x.reshape(B, H, W, C)

    # hifi
    xw = (x4.reshape(B, hg, ws, wg, ws, C)
            .transpose(0, 1, 3, 2, 4, 5)
            .reshape(B, T, wlen, C))
    qkv = (xw @ params["wqkv_h"]).reshape(B, T, wlen, 3, h_heads, hd)
    qkv = qkv.transpose(3, 0, 1, 4, 2, 5)
    q, k, v = qkv[0], qkv[1], qkv[2]
    attn = jax.nn.softmax(jnp.matmul(q, jnp.swapaxes(k, -2, -1)) * scale, axis=-1)
    out = jnp.matmul(attn, v).transpose(0, 1, 3, 2, 4)
    out = (out.reshape(B, hg, wg, ws, ws, h_dim)
              .transpose(0, 1, 3, 2, 4, 5)
              .reshape(B, H, W, h_dim))
    hifi = out @ params["wproj_h"] + params["bproj_h"]

    # lofi
    q = (x @ params["wq_l"]).reshape(B, N, l_heads, hd).transpose(0, 2, 1, 3)
    xp = x4.reshape(B, hg, ws, wg, ws, C).mean(axis=(2, 4)).reshape(B, T, C)
    kv = (xp @ params["wkv_l"]).reshape(B, T, 2, l_heads, hd).transpose(2, 0, 3, 1, 4)
    k, v = kv[0], kv[1]
    attn = jax.nn.softmax(jnp.matmul(q, jnp.swapaxes(k, -2, -1)) * scale, axis=-1)
    out = jnp.matmul(attn, v).transpose(0, 2, 1, 3).reshape(B, H, W, l_dim)
    lofi = out @ params["wproj_l"] + params["bproj_l"]

    return jnp.concatenate([hifi.reshape(B, N, h_dim),
                            lofi.reshape(B, N, l_dim)], axis=-1)


# ---------------------------------- main -------------------------------------

if __name__ == "__main__":
    # module config: dim=32, num_heads=8, window_size=2, alpha=0.5, qkv_bias=False
    B, H, W = 2, 8, 8
    dim, num_heads, ws, alpha = 32, 8, 2, 0.5
    N = H * W
    hd = dim // num_heads                       # 4
    l_heads = int(num_heads * alpha)            # 4
    h_heads = num_heads - l_heads               # 4
    l_dim, h_dim = l_heads * hd, h_heads * hd   # 16, 16
    scale = hd ** (-0.5)
    cfg = dict(ws=ws, h_heads=h_heads, l_heads=l_heads, hd=hd, scale=scale)

    key = jax.random.PRNGKey(0)
    keys = jax.random.split(key, 8)
    params = {
        "wq_l":    jax.random.normal(keys[0], (dim, l_dim), jnp.float32) * 0.05,
        "wkv_l":   jax.random.normal(keys[1], (dim, 2 * l_dim), jnp.float32) * 0.05,
        "wproj_l": jax.random.normal(keys[2], (l_dim, l_dim), jnp.float32) * 0.05,
        "bproj_l": jax.random.normal(keys[3], (1, l_dim), jnp.float32) * 0.05,
        "wqkv_h":  jax.random.normal(keys[4], (dim, 3 * h_dim), jnp.float32) * 0.05,
        "wproj_h": jax.random.normal(keys[5], (h_dim, h_dim), jnp.float32) * 0.05,
        "bproj_h": jax.random.normal(keys[6], (1, h_dim), jnp.float32) * 0.05,
    }
    x = jax.random.normal(keys[7], (B, N, dim), jnp.float32)

    fwd = jax.jit(lambda xx, pp: hilo_forward_pallas(xx, H, W, pp, cfg))
    out = jax.block_until_ready(fwd(x, params))
    assert out.shape == (B, N, dim)

    ref = hilo_forward_reference(x, H, W, params, cfg)
    assert jnp.max(jnp.abs(out - ref)) < 1e-2, "mismatch vs reference"

    print("KERNEL_OK")
</pallas_src>

<mosaic_0001>
module attributes {stable_mosaic.version = 11 : i64} {
  func.func @kernel(%arg0: i32, %arg1: memref<1x64x32xf32, #tpu.memory_space<vmem>>, %arg2: memref<1x16x32xf32, #tpu.memory_space<vmem>>, %arg3: memref<64x1xf32, #tpu.memory_space<vmem>>, %arg4: memref<1x64xf32, #tpu.memory_space<vmem>>, %arg5: memref<32x48xf32, #tpu.memory_space<vmem>>, %arg6: memref<16x16xf32, #tpu.memory_space<vmem>>, %arg7: memref<1x16xf32, #tpu.memory_space<vmem>>, %arg8: memref<32x16xf32, #tpu.memory_space<vmem>>, %arg9: memref<32x32xf32, #tpu.memory_space<vmem>>, %arg10: memref<16x16xf32, #tpu.memory_space<vmem>>, %arg11: memref<1x16xf32, #tpu.memory_space<vmem>>, %arg12: memref<1x64x32xf32, #tpu.memory_space<vmem>>) attributes {dimension_semantics = [#tpu.dimension_semantics<parallel>], iteration_bounds = array<i64: 2>, scalar_prefetch = 0 : i64, scratch_operands = 0 : i64, tpu.core_type = #tpu.core_type<tc>, window_params = [{transform_indices = @transform_0, window_bounds = array<i64: 1, 64, 32>}, {transform_indices = @transform_1, window_bounds = array<i64: 1, 16, 32>}, {pipeline_mode = #tpu.pipeline_mode<synchronous>, transform_indices = @transform_2, window_bounds = array<i64: 64, 1>}, {pipeline_mode = #tpu.pipeline_mode<synchronous>, transform_indices = @transform_3, window_bounds = array<i64: 1, 64>}, {pipeline_mode = #tpu.pipeline_mode<synchronous>, transform_indices = @transform_4, window_bounds = array<i64: 32, 48>}, {pipeline_mode = #tpu.pipeline_mode<synchronous>, transform_indices = @transform_5, window_bounds = array<i64: 16, 16>}, {pipeline_mode = #tpu.pipeline_mode<synchronous>, transform_indices = @transform_6, window_bounds = array<i64: 1, 16>}, {pipeline_mode = #tpu.pipeline_mode<synchronous>, transform_indices = @transform_7, window_bounds = array<i64: 32, 16>}, {pipeline_mode = #tpu.pipeline_mode<synchronous>, transform_indices = @transform_8, window_bounds = array<i64: 32, 32>}, {pipeline_mode = #tpu.pipeline_mode<synchronous>, transform_indices = @transform_9, window_bounds = array<i64: 16, 16>}, {pipeline_mode = #tpu.pipeline_mode<synchronous>, transform_indices = @transform_10, window_bounds = array<i64: 1, 16>}, {transform_indices = @transform_11, window_bounds = array<i64: 1, 64, 32>}]} {
    %c0 = arith.constant 0 : index
    %c0_0 = arith.constant 0 : index
    %c0_1 = arith.constant 0 : index
    %0 = vector.load %arg1[%c0, %c0_0, %c0_1] : memref<1x64x32xf32, #tpu.memory_space<vmem>>, vector<1x64x32xf32>
    %1 = vector.shape_cast %0 : vector<1x64x32xf32> to vector<64x32xf32>
    %c0_2 = arith.constant 0 : index
    %c0_3 = arith.constant 0 : index
    %c0_4 = arith.constant 0 : index
    %2 = vector.load %arg2[%c0_2, %c0_3, %c0_4] : memref<1x16x32xf32, #tpu.memory_space<vmem>>, vector<1x16x32xf32>
    %3 = vector.shape_cast %2 : vector<1x16x32xf32> to vector<16x32xf32>
    %c0_5 = arith.constant 0 : index
    %c0_6 = arith.constant 0 : index
    %4 = vector.load %arg5[%c0_5, %c0_6] : memref<32x48xf32, #tpu.memory_space<vmem>>, vector<32x48xf32>
    %cst = arith.constant dense<0.000000e+00> : vector<64x48xf32>
    %5 = tpu.matmul %1, %4, %cst {dimension_numbers = #tpu.dot_dimension_numbers<[1], [0], [0], [1], [0, 0, 1, 1], [], []>} : vector<64x32xf32>, vector<32x48xf32>, vector<64x48xf32> -> vector<64x48xf32>
    %c0_7 = arith.constant 0 : index
    %c0_8 = arith.constant 0 : index
    %6 = vector.load %arg3[%c0_7, %c0_8] : memref<64x1xf32, #tpu.memory_space<vmem>>, vector<64x1xf32>
    %c0_9 = arith.constant 0 : index
    %c0_10 = arith.constant 0 : index
    %7 = vector.load %arg4[%c0_9, %c0_10] : memref<1x64xf32, #tpu.memory_space<vmem>>, vector<1x64xf32>
    %8 = vector.broadcast %6 : vector<64x1xf32> to vector<64x64xf32>
    %9 = vector.broadcast %7 : vector<1x64xf32> to vector<64x64xf32>
    %10 = arith.cmpf oeq, %8, %9 : vector<64x64xf32>
    %c0_11 = arith.constant 0 : index
    %c0_12 = arith.constant 0 : index
    %11 = vector.load %arg6[%c0_11, %c0_12] : memref<16x16xf32, #tpu.memory_space<vmem>>, vector<16x16xf32>
    %cst_13 = arith.constant 0.000000e+00 : f32
    %12 = vector.broadcast %cst_13 : f32 to vector<64x16xf32>
    %13 = vector.extract_strided_slice %5 {offsets = [0, 0], sizes = [64, 4], strides = [1, 1]} : vector<64x48xf32> to vector<64x4xf32>
    %14 = vector.extract_strided_slice %5 {offsets = [0, 16], sizes = [64, 4], strides = [1, 1]} : vector<64x48xf32> to vector<64x4xf32>
    %15 = vector.extract_strided_slice %5 {offsets = [0, 32], sizes = [64, 4], strides = [1, 1]} : vector<64x48xf32> to vector<64x4xf32>
    %cst_14 = arith.constant dense<0.000000e+00> : vector<64x64xf32>
    %16 = tpu.matmul %13, %14, %cst_14 {dimension_numbers = #tpu.dot_dimension_numbers<[1], [1], [0], [0], [0, 0, 1, 0], [], []>} : vector<64x4xf32>, vector<64x4xf32>, vector<64x64xf32> -> vector<64x64xf32>
    %cst_15 = arith.constant -1.000000e+30 : f32
    %17 = vector.broadcast %cst_15 : f32 to vector<64x64xf32>
    %18 = arith.select %10, %16, %17 : vector<64x64xi1>, vector<64x64xf32>
    %cst_16 = arith.constant dense<0xFF800000> : vector<64xf32>
    %19 = vector.multi_reduction <maximumf>, %18, %cst_16 [1] : vector<64x64xf32> to vector<64xf32>
    %20 = vector.shape_cast %19 : vector<64xf32> to vector<64x1xf32>
    %21 = vector.broadcast %20 : vector<64x1xf32> to vector<64x64xf32>
    %22 = arith.subf %18, %21 : vector<64x64xf32>
    %23 = math.exp %22 : vector<64x64xf32>
    %cst_17 = arith.constant dense<0.000000e+00> : vector<64xf32>
    %24 = vector.multi_reduction <add>, %23, %cst_17 [1] : vector<64x64xf32> to vector<64xf32>
    %25 = vector.shape_cast %24 : vector<64xf32> to vector<64x1xf32>
    %26 = tpu.reciprocal %25 {approx = true} : vector<64x1xf32> -> vector<64x1xf32>
    %27 = vector.broadcast %26 : vector<64x1xf32> to vector<64x64xf32>
    %28 = arith.mulf %23, %27 : vector<64x64xf32>
    %cst_18 = arith.constant dense<0.000000e+00> : vector<64x4xf32>
    %29 = tpu.matmul %28, %15, %cst_18 {dimension_numbers = #tpu.dot_dimension_numbers<[1], [0], [0], [1], [0, 0, 1, 1], [], []>} : vector<64x64xf32>, vector<64x4xf32>, vector<64x4xf32> -> vector<64x4xf32>
    %30 = vector.extract_strided_slice %11 {offsets = [0, 0], sizes = [4, 16], strides = [1, 1]} : vector<16x16xf32> to vector<4x16xf32>
    %cst_19 = arith.constant dense<0.000000e+00> : vector<64x16xf32>
    %31 = tpu.matmul %29, %30, %cst_19 {dimension_numbers = #tpu.dot_dimension_numbers<[1], [0], [0], [1], [0, 0, 1, 1], [], []>} : vector<64x4xf32>, vector<4x16xf32>, vector<64x16xf32> -> vector<64x16xf32>
    %32 = arith.addf %12, %31 : vector<64x16xf32>
    %33 = vector.extract_strided_slice %5 {offsets = [0, 4], sizes = [64, 4], strides = [1, 1]} : vector<64x48xf32> to vector<64x4xf32>
    %34 = vector.extract_strided_slice %5 {offsets = [0, 20], sizes = [64, 4], strides = [1, 1]} : vector<64x48xf32> to vector<64x4xf32>
    %35 = vector.extract_strided_slice %5 {offsets = [0, 36], sizes = [64, 4], strides = [1, 1]} : vector<64x48xf32> to vector<64x4xf32>
    %cst_20 = arith.constant dense<0.000000e+00> : vector<64x64xf32>
    %36 = tpu.matmul %33, %34, %cst_20 {dimension_numbers = #tpu.dot_dimension_numbers<[1], [1], [0], [0], [0, 0, 1, 0], [], []>} : vector<64x4xf32>, vector<64x4xf32>, vector<64x64xf32> -> vector<64x64xf32>
    %cst_21 = arith.constant -1.000000e+30 : f32
    %37 = vector.broadcast %cst_21 : f32 to vector<64x64xf32>
    %38 = arith.select %10, %36, %37 : vector<64x64xi1>, vector<64x64xf32>
    %cst_22 = arith.constant dense<0xFF800000> : vector<64xf32>
    %39 = vector.multi_reduction <maximumf>, %38, %cst_22 [1] : vector<64x64xf32> to vector<64xf32>
    %40 = vector.shape_cast %39 : vector<64xf32> to vector<64x1xf32>
    %41 = vector.broadcast %40 : vector<64x1xf32> to vector<64x64xf32>
    %42 = arith.subf %38, %41 : vector<64x64xf32>
    %43 = math.exp %42 : vector<64x64xf32>
    %cst_23 = arith.constant dense<0.000000e+00> : vector<64xf32>
    %44 = vector.multi_reduction <add>, %43, %cst_23 [1] : vector<64x64xf32> to vector<64xf32>
    %45 = vector.shape_cast %44 : vector<64xf32> to vector<64x1xf32>
    %46 = tpu.reciprocal %45 {approx = true} : vector<64x1xf32> -> vector<64x1xf32>
    %47 = vector.broadcast %46 : vector<64x1xf32> to vector<64x64xf32>
    %48 = arith.mulf %43, %47 : vector<64x64xf32>
    %cst_24 = arith.constant dense<0.000000e+00> : vector<64x4xf32>
    %49 = tpu.matmul %48, %35, %cst_24 {dimension_numbers = #tpu.dot_dimension_numbers<[1], [0], [0], [1], [0, 0, 1, 1], [], []>} : vector<64x64xf32>, vector<64x4xf32>, vector<64x4xf32> -> vector<64x4xf32>
    %50 = vector.extract_strided_slice %11 {offsets = [4, 0], sizes = [4, 16], strides = [1, 1]} : vector<16x16xf32> to vector<4x16xf32>
    %cst_25 = arith.constant dense<0.000000e+00> : vector<64x16xf32>
    %51 = tpu.matmul %49, %50, %cst_25 {dimension_numbers = #tpu.dot_dimension_numbers<[1], [0], [0], [1], [0, 0, 1, 1], [], []>} : vector<64x4xf32>, vector<4x16xf32>, vector<64x16xf32> -> vector<64x16xf32>
    %52 = arith.addf %32, %51 : vector<64x16xf32>
    %53 = vector.extract_strided_slice %5 {offsets = [0, 8], sizes = [64, 4], strides = [1, 1]} : vector<64x48xf32> to vector<64x4xf32>
    %54 = vector.extract_strided_slice %5 {offsets = [0, 24], sizes = [64, 4], strides = [1, 1]} : vector<64x48xf32> to vector<64x4xf32>
    %55 = vector.extract_strided_slice %5 {offsets = [0, 40], sizes = [64, 4], strides = [1, 1]} : vector<64x48xf32> to vector<64x4xf32>
    %cst_26 = arith.constant dense<0.000000e+00> : vector<64x64xf32>
    %56 = tpu.matmul %53, %54, %cst_26 {dimension_numbers = #tpu.dot_dimension_numbers<[1], [1], [0], [0], [0, 0, 1, 0], [], []>} : vector<64x4xf32>, vector<64x4xf32>, vector<64x64xf32> -> vector<64x64xf32>
    %cst_27 = arith.constant -1.000000e+30 : f32
    %57 = vector.broadcast %cst_27 : f32 to vector<64x64xf32>
    %58 = arith.select %10, %56, %57 : vector<64x64xi1>, vector<64x64xf32>
    %cst_28 = arith.constant dense<0xFF800000> : vector<64xf32>
    %59 = vector.multi_reduction <maximumf>, %58, %cst_28 [1] : vector<64x64xf32> to vector<64xf32>
    %60 = vector.shape_cast %59 : vector<64xf32> to vector<64x1xf32>
    %61 = vector.broadcast %60 : vector<64x1xf32> to vector<64x64xf32>
    %62 = arith.subf %58, %61 : vector<64x64xf32>
    %63 = math.exp %62 : vector<64x64xf32>
    %cst_29 = arith.constant dense<0.000000e+00> : vector<64xf32>
    %64 = vector.multi_reduction <add>, %63, %cst_29 [1] : vector<64x64xf32> to vector<64xf32>
    %65 = vector.shape_cast %64 : vector<64xf32> to vector<64x1xf32>
    %66 = tpu.reciprocal %65 {approx = true} : vector<64x1xf32> -> vector<64x1xf32>
    %67 = vector.broadcast %66 : vector<64x1xf32> to vector<64x64xf32>
    %68 = arith.mulf %63, %67 : vector<64x64xf32>
    %cst_30 = arith.constant dense<0.000000e+00> : vector<64x4xf32>
    %69 = tpu.matmul %68, %55, %cst_30 {dimension_numbers = #tpu.dot_dimension_numbers<[1], [0], [0], [1], [0, 0, 1, 1], [], []>} : vector<64x64xf32>, vector<64x4xf32>, vector<64x4xf32> -> vector<64x4xf32>
    %70 = vector.extract_strided_slice %11 {offsets = [8, 0], sizes = [4, 16], strides = [1, 1]} : vector<16x16xf32> to vector<4x16xf32>
    %cst_31 = arith.constant dense<0.000000e+00> : vector<64x16xf32>
    %71 = tpu.matmul %69, %70, %cst_31 {dimension_numbers = #tpu.dot_dimension_numbers<[1], [0], [0], [1], [0, 0, 1, 1], [], []>} : vector<64x4xf32>, vector<4x16xf32>, vector<64x16xf32> -> vector<64x16xf32>
    %72 = arith.addf %52, %71 : vector<64x16xf32>
    %73 = vector.extract_strided_slice %5 {offsets = [0, 12], sizes = [64, 4], strides = [1, 1]} : vector<64x48xf32> to vector<64x4xf32>
    %74 = vector.extract_strided_slice %5 {offsets = [0, 28], sizes = [64, 4], strides = [1, 1]} : vector<64x48xf32> to vector<64x4xf32>
    %75 = vector.extract_strided_slice %5 {offsets = [0, 44], sizes = [64, 4], strides = [1, 1]} : vector<64x48xf32> to vector<64x4xf32>
    %cst_32 = arith.constant dense<0.000000e+00> : vector<64x64xf32>
    %76 = tpu.matmul %73, %74, %cst_32 {dimension_numbers = #tpu.dot_dimension_numbers<[1], [1], [0], [0], [0, 0, 1, 0], [], []>} : vector<64x4xf32>, vector<64x4xf32>, vector<64x64xf32> -> vector<64x64xf32>
    %cst_33 = arith.constant -1.000000e+30 : f32
    %77 = vector.broadcast %cst_33 : f32 to vector<64x64xf32>
    %78 = arith.select %10, %76, %77 : vector<64x64xi1>, vector<64x64xf32>
    %cst_34 = arith.constant dense<0xFF800000> : vector<64xf32>
    %79 = vector.multi_reduction <maximumf>, %78, %cst_34 [1] : vector<64x64xf32> to vector<64xf32>
    %80 = vector.shape_cast %79 : vector<64xf32> to vector<64x1xf32>
    %81 = vector.broadcast %80 : vector<64x1xf32> to vector<64x64xf32>
    %82 = arith.subf %78, %81 : vector<64x64xf32>
    %83 = math.exp %82 : vector<64x64xf32>
    %cst_35 = arith.constant dense<0.000000e+00> : vector<64xf32>
    %84 = vector.multi_reduction <add>, %83, %cst_35 [1] : vector<64x64xf32> to vector<64xf32>
    %85 = vector.shape_cast %84 : vector<64xf32> to vector<64x1xf32>
    %86 = tpu.reciprocal %85 {approx = true} : vector<64x1xf32> -> vector<64x1xf32>
    %87 = vector.broadcast %86 : vector<64x1xf32> to vector<64x64xf32>
    %88 = arith.mulf %83, %87 : vector<64x64xf32>
    %cst_36 = arith.constant dense<0.000000e+00> : vector<64x4xf32>
    %89 = tpu.matmul %88, %75, %cst_36 {dimension_numbers = #tpu.dot_dimension_numbers<[1], [0], [0], [1], [0, 0, 1, 1], [], []>} : vector<64x64xf32>, vector<64x4xf32>, vector<64x4xf32> -> vector<64x4xf32>
    %90 = vector.extract_strided_slice %11 {offsets = [12, 0], sizes = [4, 16], strides = [1, 1]} : vector<16x16xf32> to vector<4x16xf32>
    %cst_37 = arith.constant dense<0.000000e+00> : vector<64x16xf32>
    %91 = tpu.matmul %89, %90, %cst_37 {dimension_numbers = #tpu.dot_dimension_numbers<[1], [0], [0], [1], [0, 0, 1, 1], [], []>} : vector<64x4xf32>, vector<4x16xf32>, vector<64x16xf32> -> vector<64x16xf32>
    %92 = arith.addf %72, %91 : vector<64x16xf32>
    %c0_38 = arith.constant 0 : index
    %c0_39 = arith.constant 0 : index
    %93 = vector.load %arg7[%c0_38, %c0_39] : memref<1x16xf32, #tpu.memory_space<vmem>>, vector<1x16xf32>
    %94 = vector.broadcast %93 : vector<1x16xf32> to vector<64x16xf32>
    %95 = arith.addf %92, %94 : vector<64x16xf32>
    %c0_40 = arith.constant 0 : index
    %c0_41 = arith.constant 0 : index
    %c0_42 = arith.constant 0 : index
    %96 = vector.load %arg12[%c0_40, %c0_41, %c0_42] : memref<1x64x32xf32, #tpu.memory_space<vmem>>, vector<1x64x16xf32>
    %97 = vector.shape_cast %96 : vector<1x64x16xf32> to vector<64x16xf32>
    %98 = vector.shape_cast %95 : vector<64x16xf32> to vector<1x64x16xf32>
    tpu.vector_store %arg12[%c0_40, %c0_41, %c0_42], %98 {strides = array<i32>} : memref<1x64x32xf32, #tpu.memory_space<vmem>>, vector<1x64x16xf32>,
    %c0_43 = arith.constant 0 : index
    %c0_44 = arith.constant 0 : index
    %99 = vector.load %arg8[%c0_43, %c0_44] : memref<32x16xf32, #tpu.memory_space<vmem>>, vector<32x16xf32>
    %cst_45 = arith.constant dense<0.000000e+00> : vector<64x16xf32>
    %100 = tpu.matmul %1, %99, %cst_45 {dimension_numbers = #tpu.dot_dimension_numbers<[1], [0], [0], [1], [0, 0, 1, 1], [], []>} : vector<64x32xf32>, vector<32x16xf32>, vector<64x16xf32> -> vector<64x16xf32>
    %c0_46 = arith.constant 0 : index
    %c0_47 = arith.constant 0 : index
    %101 = vector.load %arg9[%c0_46, %c0_47] : memref<32x32xf32, #tpu.memory_space<vmem>>, vector<32x32xf32>
    %cst_48 = arith.constant dense<0.000000e+00> : vector<16x32xf32>
    %102 = tpu.matmul %3, %101, %cst_48 {dimension_numbers = #tpu.dot_dimension_numbers<[1], [0], [0], [1], [0, 0, 1, 1], [], []>} : vector<16x32xf32>, vector<32x32xf32>, vector<16x32xf32> -> vector<16x32xf32>
    %c0_49 = arith.constant 0 : index
    %c0_50 = arith.constant 0 : index
    %103 = vector.load %arg10[%c0_49, %c0_50] : memref<16x16xf32, #tpu.memory_space<vmem>>, vector<16x16xf32>
    %cst_51 = arith.constant 0.000000e+00 : f32
    %104 = vector.broadcast %cst_51 : f32 to vector<64x16xf32>
    %105 = vector.extract_strided_slice %100 {offsets = [0, 0], sizes = [64, 4], strides = [1, 1]} : vector<64x16xf32> to vector<64x4xf32>
    %106 = vector.extract_strided_slice %102 {offsets = [0, 0], sizes = [16, 4], strides = [1, 1]} : vector<16x32xf32> to vector<16x4xf32>
    %107 = vector.extract_strided_slice %102 {offsets = [0, 16], sizes = [16, 4], strides = [1, 1]} : vector<16x32xf32> to vector<16x4xf32>
    %cst_52 = arith.constant dense<0.000000e+00> : vector<64x16xf32>
    %108 = tpu.matmul %105, %106, %cst_52 {dimension_numbers = #tpu.dot_dimension_numbers<[1], [1], [0], [0], [0, 0, 1, 0], [], []>} : vector<64x4xf32>, vector<16x4xf32>, vector<64x16xf32> -> vector<64x16xf32>
    %cst_53 = arith.constant dense<0xFF800000> : vector<64xf32>
    %109 = vector.multi_reduction <maximumf>, %108, %cst_53 [1] : vector<64x16xf32> to vector<64xf32>
    %110 = vector.shape_cast %109 : vector<64xf32> to vector<64x1xf32>
    %111 = vector.broadcast %110 : vector<64x1xf32> to vector<64x16xf32>
    %112 = arith.subf %108, %111 : vector<64x16xf32>
    %113 = math.exp %112 : vector<64x16xf32>
    %cst_54 = arith.constant dense<0.000000e+00> : vector<64xf32>
    %114 = vector.multi_reduction <add>, %113, %cst_54 [1] : vector<64x16xf32> to vector<64xf32>
    %115 = vector.shape_cast %114 : vector<64xf32> to vector<64x1xf32>
    %116 = tpu.reciprocal %115 {approx = true} : vector<64x1xf32> -> vector<64x1xf32>
    %117 = vector.broadcast %116 : vector<64x1xf32> to vector<64x16xf32>
    %118 = arith.mulf %113, %117 : vector<64x16xf32>
    %cst_55 = arith.constant dense<0.000000e+00> : vector<64x4xf32>
    %119 = tpu.matmul %118, %107, %cst_55 {dimension_numbers = #tpu.dot_dimension_numbers<[1], [0], [0], [1], [0, 0, 1, 1], [], []>} : vector<64x16xf32>, vector<16x4xf32>, vector<64x4xf32> -> vector<64x4xf32>
    %120 = vector.extract_strided_slice %103 {offsets = [0, 0], sizes = [4, 16], strides = [1, 1]} : vector<16x16xf32> to vector<4x16xf32>
    %cst_56 = arith.constant dense<0.000000e+00> : vector<64x16xf32>
    %121 = tpu.matmul %119, %120, %cst_56 {dimension_numbers = #tpu.dot_dimension_numbers<[1], [0], [0], [1], [0, 0, 1, 1], [], []>} : vector<64x4xf32>, vector<4x16xf32>, vector<64x16xf32> -> vector<64x16xf32>
    %122 = arith.addf %104, %121 : vector<64x16xf32>
    %123 = vector.extract_strided_slice %100 {offsets = [0, 4], sizes = [64, 4], strides = [1, 1]} : vector<64x16xf32> to vector<64x4xf32>
    %124 = vector.extract_strided_slice %102 {offsets = [0, 4], sizes = [16, 4], strides = [1, 1]} : vector<16x32xf32> to vector<16x4xf32>
    %125 = vector.extract_strided_slice %102 {offsets = [0, 20], sizes = [16, 4], strides = [1, 1]} : vector<16x32xf32> to vector<16x4xf32>
    %cst_57 = arith.constant dense<0.000000e+00> : vector<64x16xf32>
    %126 = tpu.matmul %123, %124, %cst_57 {dimension_numbers = #tpu.dot_dimension_numbers<[1], [1], [0], [0], [0, 0, 1, 0], [], []>} : vector<64x4xf32>, vector<16x4xf32>, vector<64x16xf32> -> vector<64x16xf32>
    %cst_58 = arith.constant dense<0xFF800000> : vector<64xf32>
    %127 = vector.multi_reduction <maximumf>, %126, %cst_58 [1] : vector<64x16xf32> to vector<64xf32>
    %128 = vector.shape_cast %127 : vector<64xf32> to vector<64x1xf32>
    %129 = vector.broadcast %128 : vector<64x1xf32> to vector<64x16xf32>
    %130 = arith.subf %126, %129 : vector<64x16xf32>
    %131 = math.exp %130 : vector<64x16xf32>
    %cst_59 = arith.constant dense<0.000000e+00> : vector<64xf32>
    %132 = vector.multi_reduction <add>, %131, %cst_59 [1] : vector<64x16xf32> to vector<64xf32>
    %133 = vector.shape_cast %132 : vector<64xf32> to vector<64x1xf32>
    %134 = tpu.reciprocal %133 {approx = true} : vector<64x1xf32> -> vector<64x1xf32>
    %135 = vector.broadcast %134 : vector<64x1xf32> to vector<64x16xf32>
    %136 = arith.mulf %131, %135 : vector<64x16xf32>
    %cst_60 = arith.constant dense<0.000000e+00> : vector<64x4xf32>
    %137 = tpu.matmul %136, %125, %cst_60 {dimension_numbers = #tpu.dot_dimension_numbers<[1], [0], [0], [1], [0, 0, 1, 1], [], []>} : vector<64x16xf32>, vector<16x4xf32>, vector<64x4xf32> -> vector<64x4xf32>
    %138 = vector.extract_strided_slice %103 {offsets = [4, 0], sizes = [4, 16], strides = [1, 1]} : vector<16x16xf32> to vector<4x16xf32>
    %cst_61 = arith.constant dense<0.000000e+00> : vector<64x16xf32>
    %139 = tpu.matmul %137, %138, %cst_61 {dimension_numbers = #tpu.dot_dimension_numbers<[1], [0], [0], [1], [0, 0, 1, 1], [], []>} : vector<64x4xf32>, vector<4x16xf32>, vector<64x16xf32> -> vector<64x16xf32>
    %140 = arith.addf %122, %139 : vector<64x16xf32>
    %141 = vector.extract_strided_slice %100 {offsets = [0, 8], sizes = [64, 4], strides = [1, 1]} : vector<64x16xf32> to vector<64x4xf32>
    %142 = vector.extract_strided_slice %102 {offsets = [0, 8], sizes = [16, 4], strides = [1, 1]} : vector<16x32xf32> to vector<16x4xf32>
    %143 = vector.extract_strided_slice %102 {offsets = [0, 24], sizes = [16, 4], strides = [1, 1]} : vector<16x32xf32> to vector<16x4xf32>
    %cst_62 = arith.constant dense<0.000000e+00> : vector<64x16xf32>
    %144 = tpu.matmul %141, %142, %cst_62 {dimension_numbers = #tpu.dot_dimension_numbers<[1], [1], [0], [0], [0, 0, 1, 0], [], []>} : vector<64x4xf32>, vector<16x4xf32>, vector<64x16xf32> -> vector<64x16xf32>
    %cst_63 = arith.constant dense<0xFF800000> : vector<64xf32>
    %145 = vector.multi_reduction <maximumf>, %144, %cst_63 [1] : vector<64x16xf32> to vector<64xf32>
    %146 = vector.shape_cast %145 : vector<64xf32> to vector<64x1xf32>
    %147 = vector.broadcast %146 : vector<64x1xf32> to vector<64x16xf32>
    %148 = arith.subf %144, %147 : vector<64x16xf32>
    %149 = math.exp %148 : vector<64x16xf32>
    %cst_64 = arith.constant dense<0.000000e+00> : vector<64xf32>
    %150 = vector.multi_reduction <add>, %149, %cst_64 [1] : vector<64x16xf32> to vector<64xf32>
    %151 = vector.shape_cast %150 : vector<64xf32> to vector<64x1xf32>
    %152 = tpu.reciprocal %151 {approx = true} : vector<64x1xf32> -> vector<64x1xf32>
    %153 = vector.broadcast %152 : vector<64x1xf32> to vector<64x16xf32>
    %154 = arith.mulf %149, %153 : vector<64x16xf32>
    %cst_65 = arith.constant dense<0.000000e+00> : vector<64x4xf32>
    %155 = tpu.matmul %154, %143, %cst_65 {dimension_numbers = #tpu.dot_dimension_numbers<[1], [0], [0], [1], [0, 0, 1, 1], [], []>} : vector<64x16xf32>, vector<16x4xf32>, vector<64x4xf32> -> vector<64x4xf32>
    %156 = vector.extract_strided_slice %103 {offsets = [8, 0], sizes = [4, 16], strides = [1, 1]} : vector<16x16xf32> to vector<4x16xf32>
    %cst_66 = arith.constant dense<0.000000e+00> : vector<64x16xf32>
    %157 = tpu.matmul %155, %156, %cst_66 {dimension_numbers = #tpu.dot_dimension_numbers<[1], [0], [0], [1], [0, 0, 1, 1], [], []>} : vector<64x4xf32>, vector<4x16xf32>, vector<64x16xf32> -> vector<64x16xf32>
    %158 = arith.addf %140, %157 : vector<64x16xf32>
    %159 = vector.extract_strided_slice %100 {offsets = [0, 12], sizes = [64, 4], strides = [1, 1]} : vector<64x16xf32> to vector<64x4xf32>
    %160 = vector.extract_strided_slice %102 {offsets = [0, 12], sizes = [16, 4], strides = [1, 1]} : vector<16x32xf32> to vector<16x4xf32>
    %161 = vector.extract_strided_slice %102 {offsets = [0, 28], sizes = [16, 4], strides = [1, 1]} : vector<16x32xf32> to vector<16x4xf32>
    %cst_67 = arith.constant dense<0.000000e+00> : vector<64x16xf32>
    %162 = tpu.matmul %159, %160, %cst_67 {dimension_numbers = #tpu.dot_dimension_numbers<[1], [1], [0], [0], [0, 0, 1, 0], [], []>} : vector<64x4xf32>, vector<16x4xf32>, vector<64x16xf32> -> vector<64x16xf32>
    %cst_68 = arith.constant dense<0xFF800000> : vector<64xf32>
    %163 = vector.multi_reduction <maximumf>, %162, %cst_68 [1] : vector<64x16xf32> to vector<64xf32>
    %164 = vector.shape_cast %163 : vector<64xf32> to vector<64x1xf32>
    %165 = vector.broadcast %164 : vector<64x1xf32> to vector<64x16xf32>
    %166 = arith.subf %162, %165 : vector<64x16xf32>
    %167 = math.exp %166 : vector<64x16xf32>
    %cst_69 = arith.constant dense<0.000000e+00> : vector<64xf32>
    %168 = vector.multi_reduction <add>, %167, %cst_69 [1] : vector<64x16xf32> to vector<64xf32>
    %169 = vector.shape_cast %168 : vector<64xf32> to vector<64x1xf32>
    %170 = tpu.reciprocal %169 {approx = true} : vector<64x1xf32> -> vector<64x1xf32>
    %171 = vector.broadcast %170 : vector<64x1xf32> to vector<64x16xf32>
    %172 = arith.mulf %167, %171 : vector<64x16xf32>
    %cst_70 = arith.constant dense<0.000000e+00> : vector<64x4xf32>
    %173 = tpu.matmul %172, %161, %cst_70 {dimension_numbers = #tpu.dot_dimension_numbers<[1], [0], [0], [1], [0, 0, 1, 1], [], []>} : vector<64x16xf32>, vector<16x4xf32>, vector<64x4xf32> -> vector<64x4xf32>
    %174 = vector.extract_strided_slice %103 {offsets = [12, 0], sizes = [4, 16], strides = [1, 1]} : vector<16x16xf32> to vector<4x16xf32>
    %cst_71 = arith.constant dense<0.000000e+00> : vector<64x16xf32>
    %175 = tpu.matmul %173, %174, %cst_71 {dimension_numbers = #tpu.dot_dimension_numbers<[1], [0], [0], [1], [0, 0, 1, 1], [], []>} : vector<64x4xf32>, vector<4x16xf32>, vector<64x16xf32> -> vector<64x16xf32>
    %176 = arith.addf %158, %175 : vector<64x16xf32>
    %c0_72 = arith.constant 0 : index
    %c0_73 = arith.constant 0 : index
    %177 = vector.load %arg11[%c0_72, %c0_73] : memref<1x16xf32, #tpu.memory_space<vmem>>, vector<1x16xf32>
    %178 = vector.broadcast %177 : vector<1x16xf32> to vector<64x16xf32>
    %179 = arith.addf %176, %178 : vector<64x16xf32>
    %c0_74 = arith.constant 0 : index
    %c0_75 = arith.constant 0 : index
    %c16 = arith.constant 16 : index
    %180 = vector.load %arg12[%c0_74, %c0_75, %c16] : memref<1x64x32xf32, #tpu.memory_space<vmem>>, vector<1x64x16xf32>
    %181 = vector.shape_cast %180 : vector<1x64x16xf32> to vector<64x16xf32>
    %182 = vector.shape_cast %179 : vector<64x16xf32> to vector<1x64x16xf32>
    tpu.vector_store %arg12[%c0_74, %c0_75, %c16], %182 {strides = array<i32>} : memref<1x64x32xf32, #tpu.memory_space<vmem>>, vector<1x64x16xf32>,
    return
  }
  func.func @transform_0(%arg0: i32) -> (i32, i32, i32) {
    %c0_i32 = arith.constant 0 : i32
    %c0_i32_0 = arith.constant 0 : i32
    %c0_i32_1 = arith.constant 0 : i32
    return %arg0, %c0_i32, %c0_i32_0 : i32, i32, i32
  }
  func.func @transform_1(%arg0: i32) -> (i32, i32, i32) {
    %c0_i32 = arith.constant 0 : i32
    %c0_i32_0 = arith.constant 0 : i32
    %c0_i32_1 = arith.constant 0 : i32
    return %arg0, %c0_i32, %c0_i32_0 : i32, i32, i32
  }
  func.func @transform_2(%arg0: i32) -> (i32, i32) {
    %c0_i32 = arith.constant 0 : i32
    %c0_i32_0 = arith.constant 0 : i32
    %c0_i32_1 = arith.constant 0 : i32
    return %c0_i32, %c0_i32_0 : i32, i32
  }
  func.func @transform_3(%arg0: i32) -> (i32, i32) {
    %c0_i32 = arith.constant 0 : i32
    %c0_i32_0 = arith.constant 0 : i32
    %c0_i32_1 = arith.constant 0 : i32
    return %c0_i32, %c0_i32_0 : i32, i32
  }
  func.func @transform_4(%arg0: i32) -> (i32, i32) {
    %c0_i32 = arith.constant 0 : i32
    %c0_i32_0 = arith.constant 0 : i32
    %c0_i32_1 = arith.constant 0 : i32
    return %c0_i32, %c0_i32_0 : i32, i32
  }
  func.func @transform_5(%arg0: i32) -> (i32, i32) {
    %c0_i32 = arith.constant 0 : i32
    %c0_i32_0 = arith.constant 0 : i32
    %c0_i32_1 = arith.constant 0 : i32
    return %c0_i32, %c0_i32_0 : i32, i32
  }
  func.func @transform_6(%arg0: i32) -> (i32, i32) {
    %c0_i32 = arith.constant 0 : i32
    %c0_i32_0 = arith.constant 0 : i32
    %c0_i32_1 = arith.constant 0 : i32
    return %c0_i32, %c0_i32_0 : i32, i32
  }
  func.func @transform_7(%arg0: i32) -> (i32, i32) {
    %c0_i32 = arith.constant 0 : i32
    %c0_i32_0 = arith.constant 0 : i32
    %c0_i32_1 = arith.constant 0 : i32
    return %c0_i32, %c0_i32_0 : i32, i32
  }
  func.func @transform_8(%arg0: i32) -> (i32, i32) {
    %c0_i32 = arith.constant 0 : i32
    %c0_i32_0 = arith.constant 0 : i32
    %c0_i32_1 = arith.constant 0 : i32
    return %c0_i32, %c0_i32_0 : i32, i32
  }
  func.func @transform_9(%arg0: i32) -> (i32, i32) {
    %c0_i32 = arith.constant 0 : i32
    %c0_i32_0 = arith.constant 0 : i32
    %c0_i32_1 = arith.constant 0 : i32
    return %c0_i32, %c0_i32_0 : i32, i32
  }
  func.func @transform_10(%arg0: i32) -> (i32, i32) {
    %c0_i32 = arith.constant 0 : i32
    %c0_i32_0 = arith.constant 0 : i32
    %c0_i32_1 = arith.constant 0 : i32
    return %c0_i32, %c0_i32_0 : i32, i32
  }
  func.func @transform_11(%arg0: i32) -> (i32, i32, i32) {
    %c0_i32 = arith.constant 0 : i32
    %c0_i32_0 = arith.constant 0 : i32
    %c0_i32_1 = arith.constant 0 : i32
    return %arg0, %c0_i32, %c0_i32_0 : i32, i32, i32
  }
}

</mosaic_0001>

<llo_original>
// kernel: _lambda_.1
$region0: #{_lambda_.1}
  #allocation0 [shape = 'u32[]', space=smem, size = 0x4, offset = 0x4, fixed_abs, tag = 'smem constant byte address 0x4 - core index']
  #allocation1 [shape = 'u32[144,128]{1,0:T(1,128)}', space=vmem, size = 0x12000, scoped, tag = 'internal scratch']
  %s0 = inlined_call_operand.vmem [shape: f32[2,64,32], index: 0, kind: input, shape index: {}]
  %s1 = inlined_call_operand.vmem [shape: f32[2,16,32], index: 1, kind: input, shape index: {}]
  %s2 = inlined_call_operand.vmem [shape: f32[64,1], index: 2, kind: input, shape index: {}]
  %s3 = inlined_call_operand.vmem [shape: f32[1,64], index: 3, kind: input, shape index: {}]
  %s4 = inlined_call_operand.vmem [shape: f32[32,48], index: 4, kind: input, shape index: {}]
  %s5 = inlined_call_operand.vmem [shape: f32[16,16], index: 5, kind: input, shape index: {}]
  %s6 = inlined_call_operand.vmem [shape: f32[1,16], index: 6, kind: input, shape index: {}]
  %s7 = inlined_call_operand.vmem [shape: f32[32,16], index: 7, kind: input, shape index: {}]
  %s8 = inlined_call_operand.vmem [shape: f32[32,32], index: 8, kind: input, shape index: {}]
  %s9 = inlined_call_operand.vmem [shape: f32[16,16], index: 9, kind: input, shape index: {}]
  %s10 = inlined_call_operand.vmem [shape: f32[1,16], index: 10, kind: input, shape index: {}]
  %s11 = inlined_call_operand.vmem [shape: f32[2,64,32], index: 11, kind: output, shape index: {}]
  %s12 = sld [smem:[#allocation0]]
  $region77: #{_lambda_.1} parent=0
    _
  %s14 = ssub.s32 1, %s12
  %s15 = scalar_select 0, %s14, %s12
  loop: start=0, step=1, limit=4
  $region2: #{_lambda_.1} parent=0 // loop_pre_header
    _
  $region3: #{_lambda_.1} parent=0 // loop_header
    %s17 = sphi 0, %s21
    %p18 = scmp.ge.s32.totalorder %s17, 4
    %s27 = sphi 0, %s29
    %s30 = sphi 0, %s27
    %s31 = sphi 0, %s30
    %s47 = sphi 0, %s31
    %s53 = sphi 0, %s55
    %s56 = sphi 0, %s53
    %s57 = sphi 0, %s56
    %s73 = sphi 0, %s57
    %s77 = sphi 0, %s77
    %s79 = sphi 0, %s77
    %s80 = sphi 0, %s79
    %s94 = sphi 0, %s80
    %s98 = sphi 0, %s98
    %s100 = sphi 0, %s98
    %s101 = sphi 0, %s100
    %s115 = sphi 0, %s101
    %s119 = sphi 0, %s119
    %s121 = sphi 0, %s119
    %s122 = sphi 0, %s121
    %s136 = sphi 0, %s122
    %s140 = sphi 0, %s140
    %s142 = sphi 0, %s140
    %s143 = sphi 0, %s142
    %s157 = sphi 0, %s143
    %s161 = sphi 0, %s161
    %s163 = sphi 0, %s161
    %s164 = sphi 0, %s163
    %s178 = sphi 0, %s164
    %s182 = sphi 0, %s182
    %s184 = sphi 0, %s182
    %s185 = sphi 0, %s184
    %s199 = sphi 0, %s185
    %s203 = sphi 0, %s203
    %s205 = sphi 0, %s203
    %s206 = sphi 0, %s205
    %s220 = sphi 0, %s206
    %s224 = sphi 0, %s224
    %s226 = sphi 0, %s224
    %s227 = sphi 0, %s226
    %s241 = sphi 0, %s227
    %s245 = sphi 0, %s245
    %s247 = sphi 0, %s245
    %s248 = sphi 0, %s247
    %s262 = sphi 0, %s248
    %s268 = sphi 0, %s270
    %s271 = sphi 0, %s268
    %s272 = sphi 0, %s271
    %s288 = sphi 0, %s272
  $region4: #{_lambda_.1} parent=0 // loop_header_branch
    %20 = sbr.rel (%p18) target = $region8
  $region5: #{_lambda_.1} parent=0 // loop_body
    %s22 = ssub.s32 %s17, 1
    %s23 = ssub.s32 %s17, 2
    %s24 = sadd.s32 %s17, 1
    %s25 = ssub.s32 %s17, %s24
    %p26 = scmp.eq.s32.totalorder %s25, 0
    %s28 = sadd.s32 %s27, 1
    %s29 = scalar_select %p26, %s27, %s28
    %p32 = pneg %p26
    %p33 = scmp.eq.s32.totalorder %s17, 1
    %p34 = por %p32, %p33
    %p35 = scmp.ne.s32.totalorder %s27, %s30
    %p36 = scmp.eq.s32.totalorder %s17, 0
    %p37 = por %p35, %p36
    %p38 = scmp.ne.s32.totalorder %s27, %s30
    %p39 = scmp.eq.s32.totalorder %s22, 1
    %p40 = por %p38, %p39
    %p41 = scmp.ne.s32.totalorder %s30, %s31
    %p42 = scmp.eq.s32.totalorder %s22, 0
    %p43 = por %p41, %p42
    %p44 = scmp.ne.s32.totalorder %s30, %s31
    %p45 = scmp.eq.s32.totalorder %s23, 1
    %p46 = por %p44, %p45
    %p48 = scmp.ne.s32.totalorder %s31, %s47
    %p49 = scmp.eq.s32.totalorder %s23, 0
    %p50 = por %p48, %p49
    %s51 = ssub.s32 %s17, %s24
    %p52 = scmp.eq.s32.totalorder %s51, 0
    %s54 = sadd.s32 %s53, 1
    %s55 = scalar_select %p52, %s53, %s54
    %p58 = pneg %p52
    %p59 = scmp.eq.s32.totalorder %s17, 1
    %p60 = por %p58, %p59
    %p61 = scmp.ne.s32.totalorder %s53, %s56
    %p62 = scmp.eq.s32.totalorder %s17, 0
    %p63 = por %p61, %p62
    %p64 = scmp.ne.s32.totalorder %s53, %s56
    %p65 = scmp.eq.s32.totalorder %s22, 1
    %p66 = por %p64, %p65
    %p67 = scmp.ne.s32.totalorder %s56, %s57
    %p68 = scmp.eq.s32.totalorder %s22, 0
    %p69 = por %p67, %p68
    %p70 = scmp.ne.s32.totalorder %s56, %s57
    %p71 = scmp.eq.s32.totalorder %s23, 1
    %p72 = por %p70, %p71
    %p74 = scmp.ne.s32.totalorder %s57, %s73
    %p75 = scmp.eq.s32.totalorder %s23, 0
    %p76 = por %p74, %p75
    %s78 = sadd.s32 %s77, 1
    %p81 = scmp.eq.s32.totalorder %s17, 1
    %p82 = scmp.ne.s32.totalorder %s77, %s79
    %p83 = scmp.eq.s32.totalorder %s17, 0
    %p84 = por %p82, %p83
    %p85 = scmp.ne.s32.totalorder %s77, %s79
    %p86 = scmp.eq.s32.totalorder %s22, 1
    %p87 = por %p85, %p86
    %p88 = scmp.ne.s32.totalorder %s79, %s80
    %p89 = scmp.eq.s32.totalorder %s22, 0
    %p90 = por %p88, %p89
    %p91 = scmp.ne.s32.totalorder %s79, %s80
    %p92 = scmp.eq.s32.totalorder %s23, 1
    %p93 = por %p91, %p92
    %p95 = scmp.ne.s32.totalorder %s80, %s94
    %p96 = scmp.eq.s32.totalorder %s23, 0
    %p97 = por %p95, %p96
    %s99 = sadd.s32 %s98, 1
    %p102 = scmp.eq.s32.totalorder %s17, 1
    %p103 = scmp.ne.s32.totalorder %s98, %s100
    %p104 = scmp.eq.s32.totalorder %s17, 0
    %p105 = por %p103, %p104
    %p106 = scmp.ne.s32.totalorder %s98, %s100
    %p107 = scmp.eq.s32.totalorder %s22, 1
    %p108 = por %p106, %p107
    %p109 = scmp.ne.s32.totalorder %s100, %s101
    %p110 = scmp.eq.s32.totalorder %s22, 0
    %p111 = por %p109, %p110
    %p112 = scmp.ne.s32.totalorder %s100, %s101
    %p113 = scmp.eq.s32.totalorder %s23, 1
    %p114 = por %p112, %p113
    %p116 = scmp.ne.s32.totalorder %s101, %s115
    %p117 = scmp.eq.s32.totalorder %s23, 0
    %p118 = por %p116, %p117
    %s120 = sadd.s32 %s119, 1
    %p123 = scmp.eq.s32.totalorder %s17, 1
    %p124 = scmp.ne.s32.totalorder %s119, %s121
    %p125 = scmp.eq.s32.totalorder %s17, 0
    %p126 = por %p124, %p125
    %p127 = scmp.ne.s32.totalorder %s119, %s121
    %p128 = scmp.eq.s32.totalorder %s22, 1
    %p129 = por %p127, %p128
    %p130 = scmp.ne.s32.totalorder %s121, %s122
    %p131 = scmp.eq.s32.totalorder %s22, 0
    %p132 = por %p130, %p131
    %p133 = scmp.ne.s32.totalorder %s121, %s122
    %p134 = scmp.eq.s32.totalorder %s23, 1
    %p135 = por %p133, %p134
    %p137 = scmp.ne.s32.totalorder %s122, %s136
    %p138 = scmp.eq.s32.totalorder %s23, 0
    %p139 = por %p137, %p138
    %s141 = sadd.s32 %s140, 1
    %p144 = scmp.eq.s32.totalorder %s17, 1
    %p145 = scmp.ne.s32.totalorder %s140, %s142
    %p146 = scmp.eq.s32.totalorder %s17, 0
    %p147 = por %p145, %p146
    %p148 = scmp.ne.s32.totalorder %s140, %s142
    %p149 = scmp.eq.s32.totalorder %s22, 1
    %p150 = por %p148, %p149
    %p151 = scmp.ne.s32.totalorder %s142, %s143
    %p152 = scmp.eq.s32.totalorder %s22, 0
    %p153 = por %p151, %p152
    %p154 = scmp.ne.s32.totalorder %s142, %s143
    %p155 = scmp.eq.s32.totalorder %s23, 1
    %p156 = por %p154, %p155
    %p158 = scmp.ne.s32.totalorder %s143, %s157
    %p159 = scmp.eq.s32.totalorder %s23, 0
    %p160 = por %p158, %p159
    %s162 = sadd.s32 %s161, 1
    %p165 = scmp.eq.s32.totalorder %s17, 1
    %p166 = scmp.ne.s32.totalorder %s161, %s163
    %p167 = scmp.eq.s32.totalorder %s17, 0
    %p168 = por %p166, %p167
    %p169 = scmp.ne.s32.totalorder %s161, %s163
    %p170 = scmp.eq.s32.totalorder %s22, 1
    %p171 = por %p169, %p170
    %p172 = scmp.ne.s32.totalorder %s163, %s164
    %p173 = scmp.eq.s32.totalorder %s22, 0
    %p174 = por %p172, %p173
    %p175 = scmp.ne.s32.totalorder %s163, %s164
    %p176 = scmp.eq.s32.totalorder %s23, 1
    %p177 = por %p175, %p176
    %p179 = scmp.ne.s32.totalorder %s164, %s178
    %p180 = scmp.eq.s32.totalorder %s23, 0
    %p181 = por %p179, %p180
    %s183 = sadd.s32 %s182, 1
    %p186 = scmp.eq.s32.totalorder %s17, 1
    %p187 = scmp.ne.s32.totalorder %s182, %s184
    %p188 = scmp.eq.s32.totalorder %s17, 0
    %p189 = por %p187, %p188
    %p190 = scmp.ne.s32.totalorder %s182, %s184
    %p191 = scmp.eq.s32.totalorder %s22, 1
    %p192 = por %p190, %p191
    %p193 = scmp.ne.s32.totalorder %s184, %s185
    %p194 = scmp.eq.s32.totalorder %s22, 0
    %p195 = por %p193, %p194
    %p196 = scmp.ne.s32.totalorder %s184, %s185
    %p197 = scmp.eq.s32.totalorder %s23, 1
    %p198 = por %p196, %p197
    %p200 = scmp.ne.s32.totalorder %s185, %s199
    %p201 = scmp.eq.s32.totalorder %s23, 0
    %p202 = por %p200, %p201
    %s204 = sadd.s32 %s203, 1
    %p207 = scmp.eq.s32.totalorder %s17, 1
    %p208 = scmp.ne.s32.totalorder %s203, %s205
    %p209 = scmp.eq.s32.totalorder %s17, 0
    %p210 = por %p208, %p209
    %p211 = scmp.ne.s32.totalorder %s203, %s205
    %p212 = scmp.eq.s32.totalorder %s22, 1
    %p213 = por %p211, %p212
    %p214 = scmp.ne.s32.totalorder %s205, %s206
    %p215 = scmp.eq.s32.totalorder %s22, 0
    %p216 = por %p214, %p215
    %p217 = scmp.ne.s32.totalorder %s205, %s206
    %p218 = scmp.eq.s32.totalorder %s23, 1
    %p219 = por %p217, %p218
    %p221 = scmp.ne.s32.totalorder %s206, %s220
    %p222 = scmp.eq.s32.totalorder %s23, 0
    %p223 = por %p221, %p222
    %s225 = sadd.s32 %s224, 1
    %p228 = scmp.eq.s32.totalorder %s17, 1
    %p229 = scmp.ne.s32.totalorder %s224, %s226
    %p230 = scmp.eq.s32.totalorder %s17, 0
    %p231 = por %p229, %p230
    %p232 = scmp.ne.s32.totalorder %s224, %s226
    %p233 = scmp.eq.s32.totalorder %s22, 1
    %p234 = por %p232, %p233
    %p235 = scmp.ne.s32.totalorder %s226, %s227
    %p236 = scmp.eq.s32.totalorder %s22, 0
    %p237 = por %p235, %p236
    %p238 = scmp.ne.s32.totalorder %s226, %s227
    %p239 = scmp.eq.s32.totalorder %s23, 1
    %p240 = por %p238, %p239
    %p242 = scmp.ne.s32.totalorder %s227, %s241
    %p243 = scmp.eq.s32.totalorder %s23, 0
    %p244 = por %p242, %p243
    %s246 = sadd.s32 %s245, 1
    %p249 = scmp.eq.s32.totalorder %s17, 1
    %p250 = scmp.ne.s32.totalorder %s245, %s247
    %p251 = scmp.eq.s32.totalorder %s17, 0
    %p252 = por %p250, %p251
    %p253 = scmp.ne.s32.totalorder %s245, %s247
    %p254 = scmp.eq.s32.totalorder %s22, 1
    %p255 = por %p253, %p254
    %p256 = scmp.ne.s32.totalorder %s247, %s248
    %p257 = scmp.eq.s32.totalorder %s22, 0
    %p258 = por %p256, %p257
    %p259 = scmp.ne.s32.totalorder %s247, %s248
    %p260 = scmp.eq.s32.totalorder %s23, 1
    %p261 = por %p259, %p260
    %p263 = scmp.ne.s32.totalorder %s248, %s262
    %p264 = scmp.eq.s32.totalorder %s23, 0
    %p265 = por %p263, %p264
    %s266 = ssub.s32 %s17, %s24
    %p267 = scmp.eq.s32.totalorder %s266, 0
    %s269 = sadd.s32 %s268, 1
    %s270 = scalar_select %p267, %s268, %s269
    %p273 = pneg %p267
    %p274 = scmp.eq.s32.totalorder %s17, 1
    %p275 = por %p273, %p274
    %p276 = scmp.ne.s32.totalorder %s268, %s271
    %p277 = scmp.eq.s32.totalorder %s17, 0
    %p278 = por %p276, %p277
    %p279 = scmp.ne.s32.totalorder %s268, %s271
    %p280 = scmp.eq.s32.totalorder %s22, 1
    %p281 = por %p279, %p280
    %p282 = scmp.ne.s32.totalorder %s271, %s272
    %p283 = scmp.eq.s32.totalorder %s22, 0
    %p284 = por %p282, %p283
    %p285 = scmp.ne.s32.totalorder %s271, %s272
    %p286 = scmp.eq.s32.totalorder %s23, 1
    %p287 = por %p285, %p286
    %p289 = scmp.ne.s32.totalorder %s272, %s288
    %p290 = scmp.eq.s32.totalorder %s23, 0
    %p291 = por %p289, %p290
    %p292 = scmp.le.s32.totalorder 1, %s17
    %p293 = scmp.lt.s32.totalorder %s17, 3
    %p294 = pnand %p292, %p293
    %p295 = pneg %p294
    // Predicated region
    $region9: #{_lambda_.1} parent=5 // pred_check
      _
    $region10: #{_lambda_.1} parent=5 // pred_check_branch
      %297 = sbr.rel (%p294) target = $region12
    $region11: #{_lambda_.1} parent=5 // pred_region
      %s298 = ssub.s32 %s17, 1
      // Predicated region
      $region13: #{_lambda_.1} parent=11 // pred_check
        %p299 = pneg %p90
      $region14: #{_lambda_.1} parent=11 // pred_check_branch
        %301 = sbr.rel (%p299) target = $region16
      $region15: #{_lambda_.1} parent=11 // pred_region
        _
      $region16: #{_lambda_.1} parent=11 // pred_fallthru
        _
      // Predicated region
      $region17: #{_lambda_.1} parent=11 // pred_check
        %p302 = pneg %p111
      $region18: #{_lambda_.1} parent=11 // pred_check_branch
        %304 = sbr.rel (%p302) target = $region20
      $region19: #{_lambda_.1} parent=11 // pred_region
        _
      $region20: #{_lambda_.1} parent=11 // pred_fallthru
        _
      // Predicated region
      $region21: #{_lambda_.1} parent=11 // pred_check
        %p305 = pneg %p132
      $region22: #{_lambda_.1} parent=11 // pred_check_branch
        %307 = sbr.rel (%p305) target = $region24
      $region23: #{_lambda_.1} parent=11 // pred_region
        _
      $region24: #{_lambda_.1} parent=11 // pred_fallthru
        _
      // Predicated region
      $region25: #{_lambda_.1} parent=11 // pred_check
        %p308 = pneg %p153
      $region26: #{_lambda_.1} parent=11 // pred_check_branch
        %310 = sbr.rel (%p308) target = $region28
      $region27: #{_lambda_.1} parent=11 // pred_region
        _
      $region28: #{_lambda_.1} parent=11 // pred_fallthru
        _
      // Predicated region
      $region29: #{_lambda_.1} parent=11 // pred_check
        %p311 = pneg %p174
      $region30: #{_lambda_.1} parent=11 // pred_check_branch
        %313 = sbr.rel (%p311) target = $region32
      $region31: #{_lambda_.1} parent=11 // pred_region
        _
      $region32: #{_lambda_.1} parent=11 // pred_fallthru
        _
      // Predicated region
      $region33: #{_lambda_.1} parent=11 // pred_check
        %p314 = pneg %p195
      $region34: #{_lambda_.1} parent=11 // pred_check_branch
        %316 = sbr.rel (%p314) target = $region36
      $region35: #{_lambda_.1} parent=11 // pred_region
        _
      $region36: #{_lambda_.1} parent=11 // pred_fallthru
        _
      // Predicated region
      $region37: #{_lambda_.1} parent=11 // pred_check
        %p317 = pneg %p216
      $region38: #{_lambda_.1} parent=11 // pred_check_branch
        %319 = sbr.rel (%p317) target = $region40
      $region39: #{_lambda_.1} parent=11 // pred_region
        _
      $region40: #{_lambda_.1} parent=11 // pred_fallthru
        _
      // Predicated region
      $region41: #{_lambda_.1} parent=11 // pred_check
        %p320 = pneg %p237
      $region42: #{_lambda_.1} parent=11 // pred_check_branch
        %322 = sbr.rel (%p320) target = $region44
      $region43: #{_lambda_.1} parent=11 // pred_region
        _
      $region44: #{_lambda_.1} parent=11 // pred_fallthru
        _
      // Predicated region
      $region45: #{_lambda_.1} parent=11 // pred_check
        %p323 = pneg %p258
      $region46: #{_lambda_.1} parent=11 // pred_check_branch
        %325 = sbr.rel (%p323) target = $region48
      $region47: #{_lambda_.1} parent=11 // pred_region
        _
      $region48: #{_lambda_.1} parent=11 // pred_fallthru
        _
    $region12: #{_lambda_.1} parent=5 // pred_fallthru
      _
    %p326 = scmp.lt.s32.totalorder %s17, 2
    // Predicated region
    $region49: #{_lambda_.1} parent=5 // pred_check
      %p327 = pneg %p326
    $region50: #{_lambda_.1} parent=5 // pred_check_branch
      %329 = sbr.rel (%p327) target = $region52
    $region51: #{_lambda_.1} parent=5 // pred_region
      // Predicated region
      $region53: #{_lambda_.1} parent=51 // pred_check
        %p330 = pneg %p37
      $region54: #{_lambda_.1} parent=51 // pred_check_branch
        %332 = sbr.rel (%p330) target = $region56
      $region55: #{_lambda_.1} parent=51 // pred_region
        %p333 = scmp.lt.s32.totalorder %s17, 1
        %s334 = scalar_select %p333, %s17, 1
        %s335 = smul.addr %s334, 8
        %s336 = smul.addr %s335, 8
        %s337 = scalar_lea.vmem %s0, %s336
      $region56: #{_lambda_.1} parent=51 // pred_fallthru
        _
      // Predicated region
      $region57: #{_lambda_.1} parent=51 // pred_check
        %p338 = pneg %p63
      $region58: #{_lambda_.1} parent=51 // pred_check_branch
        %340 = sbr.rel (%p338) target = $region60
      $region59: #{_lambda_.1} parent=51 // pred_region
        %p341 = scmp.lt.s32.totalorder %s17, 1
        %s342 = scalar_select %p341, %s17, 1
        %s343 = smul.addr %s342, 2
        %s344 = smul.addr %s343, 8
        %s345 = scalar_lea.vmem %s1, %s344
      $region60: #{_lambda_.1} parent=51 // pred_fallthru
        _
    $region52: #{_lambda_.1} parent=5 // pred_fallthru
      _
    %p346 = scmp.le.s32.totalorder 1, %s17
    %p347 = scmp.lt.s32.totalorder %s17, 3
    %p348 = pnand %p346, %p347
    %p349 = pneg %p348
    // Predicated region
    $region61: #{_lambda_.1} parent=5 // pred_check
      _
    $region62: #{_lambda_.1} parent=5 // pred_check_branch
      %351 = sbr.rel (%p348) target = $region64
    $region63: #{_lambda_.1} parent=5 // pred_region
      %s352 = ssub.s32 %s17, 1
      %p353 = scmp.lt.s32.totalorder %s22, 1
      %s354 = scalar_select %p353, %s22, 1
      %s355 = smul.addr %s354, 8
      %s356 = smul.addr %s355, 8
      %s357 = scalar_lea.vmem %s0, %s356
      %p358 = pneg %p43
      %p359 = pneg %p40
      %p360 = scmp.lt.s32.totalorder %s22, 1
      %s361 = scalar_select %p360, %s22, 1
      %s362 = smul.addr %s361, 2
      %s363 = smul.addr %s362, 8
      %s364 = scalar_lea.vmem %s1, %s363
      %p365 = pneg %p69
      %p366 = pneg %p66
      %p367 = pneg %p90
      %p368 = pneg %p87
      %p369 = pneg %p111
      %p370 = pneg %p108
      %p371 = pneg %p132
      %p372 = pneg %p129
      %p373 = pneg %p153
      %p374 = pneg %p150
      %p375 = pneg %p174
      %p376 = pneg %p171
      %p377 = pneg %p195
      %p378 = pneg %p192
      %p379 = pneg %p216
      %p380 = pneg %p213
      %p381 = pneg %p237
      %p382 = pneg %p234
      %p383 = pneg %p258
      %p384 = pneg %p255
      %p385 = pneg %p284
      %p386 = pneg %p281
      %p387 = scmp.lt.s32.totalorder %s22, 1
      %s388 = scalar_select %p387, %s22, 1
      %s389 = smul.addr %s388, 8
      %s390 = smul.addr %s389, 8
      %s391 = scalar_lea.vmem %s11, %s390
      %p392 = scmp.lt.s32.totalorder %s22, 1
      %s393 = scalar_select %p392, %s22, 1
      %s394 = smul.addr %s393, 8
      %s395 = smul.addr %s394, 8
      %s396 = scalar_lea.vmem %s0, %s395
      %p397 = scmp.lt.s32.totalorder %s22, 1
      %s398 = scalar_select %p397, %s22, 1
      %s399 = smul.addr %s398, 2
      %s400 = smul.addr %s399, 8
      %s401 = scalar_lea.vmem %s1, %s400
      %p402 = scmp.lt.s32.totalorder %s22, 1
      %s403 = scalar_select %p402, %s22, 1
      %s404 = smul.addr %s403, 8
      %s405 = smul.addr %s404, 8
      %s406 = scalar_lea.vmem %s11, %s405
      %v407 = vld [vmem:[%s396] sm:$0xff]
      %v408 = vld [vmem:[%s396 + $0x8] sm:$0xff]
      %v409 = vld [vmem:[%s396 + $0x10] sm:$0xff]
      %v410 = vld [vmem:[%s396 + $0x18] sm:$0xff]
      %v411 = vld [vmem:[%s396 + $0x20] sm:$0xff]
      %v412 = vld [vmem:[%s396 + $0x28] sm:$0xff]
      %v413 = vld [vmem:[%s396 + $0x30] sm:$0xff]
      %v414 = vld [vmem:[%s396 + $0x38] sm:$0xff]
      %v415 = vld [vmem:[%s401] sm:$0xff]
      %v416 = vld [vmem:[%s401 + $0x8] sm:$0xff]
      %v417 = vld [vmem:[%s4] sm:$0xff]
      %v418 = vld [vmem:[%s4 + $0x8] sm:$0xff]
      %v419 = vld [vmem:[%s4 + $0x10] sm:$0xff]
      %v420 = vld [vmem:[%s4 + $0x18] sm:$0xff]
      %vm421 = vcmask 261120
      %v423 = vsel %vm421, %v407, 0
      %v426 = vsel %vm421, %v408, 0
      %v429 = vsel %vm421, %v409, 0
      %v432 = vsel %vm421, %v410, 0
      %v435 = vsel %vm421, %v411, 0
      %v438 = vsel %vm421, %v412, 0
      %v441 = vsel %vm421, %v413, 0
      %v444 = vsel %vm421, %v414, 0
      %446 = vmatprep.subr.mxu0 0.0
      %447 = vmatpush1.msra.mxu0 %v417
      %448 = vmatprep.subr.mxu0 0.0
      %449 = vmatpush1.msra.mxu0 %v418
      %450 = vmatprep.subr.mxu0 0.0
      %451 = vmatpush1.msra.mxu0 %v419
      %452 = vmatprep.subr.mxu0 0.0
      %453 = vmatpush1.msra.mxu0 %v420
      %454 = vmatprep.subr.mxu0 0.0
      %455 = vmatpush1.msra.mxu0 0.0
      %456 = vmatprep.subr.mxu0 0.0
      %457 = vmatpush1.msra.mxu0 0.0
      %458 = vmatprep.subr.mxu0 0.0
      %459 = vmatpush1.msra.mxu0 0.0
      %460 = vmatprep.subr.mxu0 0.0
      %461 = vmatpush1.msra.mxu0 0.0
      %462 = vmatprep.subr.mxu0 0.0
      %463 = vmatpush1.msra.mxu0 0.0
      %464 = vmatprep.subr.mxu0 0.0
      %465 = vmatpush1.msra.mxu0 0.0
      %466 = vmatprep.subr.mxu0 0.0
      %467 = vmatpush1.msra.mxu0 0.0
      %468 = vmatprep.subr.mxu0 0.0
      %469 = vmatpush1.msra.mxu0 0.0
      %470 = vmatprep.subr.mxu0 0.0
      %471 = vmatpush1.msra.mxu0 0.0
      %472 = vmatprep.subr.mxu0 0.0
      %473 = vmatpush1.msra.mxu0 0.0
      %474 = vmatprep.subr.mxu0 0.0
      %475 = vmatpush1.msra.mxu0 0.0
      %476 = vmatprep.subr.mxu0 0.0
      %477 = vmatpush1.msra.mxu0 0.0
      %478 = vmatprep.subr.mxu0 0.0
      %479 = vmatpush1.msra.mxu0 0.0
      %480 = vmatprep.subr.mxu0 0.0
      %481 = vmatpush1.msra.mxu0 0.0
      %482 = vmatprep.subr.mxu0 0.0
      %483 = vmatpush1.msra.mxu0 0.0
      %484 = vmatprep.subr.mxu0 0.0
      %485 = vmatpush1.msra.mxu0 0.0
      %486 = vmatprep.subr.mxu0 0.0
      %487 = vmatpush1.msra.mxu0 0.0
      %488 = vmatprep.subr.mxu0 0.0
      %489 = vmatpush1.msra.mxu0 0.0
      %490 = vmatprep.subr.mxu0 0.0
      %491 = vmatpush1.msra.mxu0 0.0
      %492 = vmatprep.subr.mxu0 0.0
      %493 = vmatpush1.msra.mxu0 0.0
      %494 = vmatprep.subr.mxu0 0.0
      %495 = vmatpush1.msra.mxu0 0.0
      %496 = vmatprep.subr.mxu0 0.0
      %497 = vmatpush1.msra.mxu0 0.0
      %498 = vmatprep.subr.mxu0 0.0
      %499 = vmatpush1.msra.mxu0 0.0
      %500 = vmatprep.subr.mxu0 0.0
      %501 = vmatpush1.msra.mxu0 0.0
      %502 = vmatprep.subr.mxu0 0.0
      %503 = vmatpush1.msra.mxu0 0.0
      %504 = vmatprep.subr.mxu0 0.0
      %505 = vmatpush1.msra.mxu0 0.0
      %506 = vmatprep.subr.mxu0 0.0
      %507 = vmatpush1.msra.mxu0 0.0
      %508 = vmatprep.subr.mxu0 0.0
      %509 = vmatpush1.msra.mxu0 0.0
      %510 = vmatprep.mubr.f32.mxu0 0.0
      %511 = vmatmul.mubr.f32.gmra.mrb[0].mxu0 %v423
      %v512 = vpop.f32.mrb[0].mxu0
      %v513 = vadd.f32 0.0, %v512
      %v514 = vpop.f32.mrb[0].mxu0
      %515 = vmatprep.mubr.f32.mxu0 0.0
      %516 = vmatmul.mubr.f32.gmra.mrb[0].mxu0 %v426
      %v517 = vpop.f32.mrb[0].mxu0
      %v518 = vadd.f32 0.0, %v517
      %v519 = vpop.f32.mrb[0].mxu0
      %520 = vmatprep.mubr.f32.mxu0 0.0
      %521 = vmatmul.mubr.f32.gmra.mrb[0].mxu0 %v429
      %v522 = vpop.f32.mrb[0].mxu0
      %v523 = vadd.f32 0.0, %v522
      %v524 = vpop.f32.mrb[0].mxu0
      %525 = vmatprep.mubr.f32.mxu0 0.0
      %526 = vmatmul.mubr.f32.gmra.mrb[0].mxu0 %v432
      %v527 = vpop.f32.mrb[0].mxu0
      %v528 = vadd.f32 0.0, %v527
      %v529 = vpop.f32.mrb[0].mxu0
      %530 = vmatprep.mubr.f32.mxu0 0.0
      %531 = vmatmul.mubr.f32.gmra.mrb[0].mxu0 %v435
      %v532 = vpop.f32.mrb[0].mxu0
      %v533 = vadd.f32 0.0, %v532
      %v534 = vpop.f32.mrb[0].mxu0
      %535 = vmatprep.mubr.f32.mxu0 0.0
      %536 = vmatmul.mubr.f32.gmra.mrb[0].mxu0 %v438
      %v537 = vpop.f32.mrb[0].mxu0
      %v538 = vadd.f32 0.0, %v537
      %v539 = vpop.f32.mrb[0].mxu0
      %540 = vmatprep.mubr.f32.mxu0 0.0
      %541 = vmatmul.mubr.f32.gmra.mrb[0].mxu0 %v441
      %v542 = vpop.f32.mrb[0].mxu0
      %v543 = vadd.f32 0.0, %v542
      %v544 = vpop.f32.mrb[0].mxu0
      %545 = vmatprep.mubr.f32.mxu0 0.0
      %546 = vmatmul.mubr.f32.gmra.mrb[0].mxu0 %v444
      %v547 = vpop.f32.mrb[0].mxu0
      %v548 = vadd.f32 0.0, %v547
      %v549 = vpop.f32.mrb[0].mxu0
      %550 = vdwg.mxu0
      %v551 = vld [vmem:[%s2] sm:$0xff]
      %v552 = vld [vmem:[%s2 + $0x8] sm:$0xff]
      %v553 = vld [vmem:[%s2 + $0x10] sm:$0xff]
      %v554 = vld [vmem:[%s2 + $0x18] sm:$0xff]
      %v555 = vld [vmem:[%s2 + $0x20] sm:$0xff]
      %v556 = vld [vmem:[%s2 + $0x28] sm:$0xff]
      %v557 = vld [vmem:[%s2 + $0x30] sm:$0xff]
      %v558 = vld [vmem:[%s2 + $0x38] sm:$0xff]
      %v559 = vld [vmem:[%s3] sm:$0x1]
      %561 = vset.pattern.permute.xlu0 0
      %562 = vperm.xlu0 %561, %v551
      %v563 = vpop.permute.xlu0 %562
      %566 = vset.pattern.permute.xlu0 0
      %567 = vperm.xlu0 %566, %v552
      %v568 = vpop.permute.xlu0 %567
      %571 = vset.pattern.permute.xlu0 0
      %572 = vperm.xlu0 %571, %v553
      %v573 = vpop.permute.xlu0 %572
      %576 = vset.pattern.permute.xlu0 0
      %577 = vperm.xlu0 %576, %v554
      %v578 = vpop.permute.xlu0 %577
      %581 = vset.pattern.permute.xlu0 0
      %582 = vperm.xlu0 %581, %v555
      %v583 = vpop.permute.xlu0 %582
      %586 = vset.pattern.permute.xlu0 0
      %587 = vperm.xlu0 %586, %v556
      %v588 = vpop.permute.xlu0 %587
      %591 = vset.pattern.permute.xlu0 0
      %592 = vperm.xlu0 %591, %v557
      %v593 = vpop.permute.xlu0 %592
      %596 = vset.pattern.permute.xlu0 0
      %597 = vperm.xlu0 %596, %v558
      %v598 = vpop.permute.xlu0 %597
      %v601 = vlaneseq
      %v602 = vshrl.u32 %v601, 7
      %v603 = vsub.s32 0, %v602
      %v604 = vrot.slane %v559, %v603
      %vm606 = vcmp.eq.f32.partialorder %v563, %v604
      %vm607 = vcmp.eq.f32.partialorder %v568, %v604
      %vm608 = vcmp.eq.f32.partialorder %v573, %v604
      %vm609 = vcmp.eq.f32.partialorder %v578, %v604
      %vm610 = vcmp.eq.f32.partialorder %v583, %v604
      %vm611 = vcmp.eq.f32.partialorder %v588, %v604
      %vm612 = vcmp.eq.f32.partialorder %v593, %v604
      %vm613 = vcmp.eq.f32.partialorder %v598, %v604
      %v614 = vld [vmem:[%s5] sm:$0xff]
      %v615 = vld [vmem:[%s5 + $0x8] sm:$0xff]
      %624 = vrot.lane.b32.xlu0 %v513, 112
      %v625 = vpop.permute.xlu0 %624
      %626 = vrot.lane.b32.xlu0 %v518, 112
      %v627 = vpop.permute.xlu0 %626
      %628 = vrot.lane.b32.xlu0 %v523, 112
      %v629 = vpop.permute.xlu0 %628
      %630 = vrot.lane.b32.xlu0 %v528, 112
      %v631 = vpop.permute.xlu0 %630
      %632 = vrot.lane.b32.xlu0 %v533, 112
      %v633 = vpop.permute.xlu0 %632
      %634 = vrot.lane.b32.xlu0 %v538, 112
      %v635 = vpop.permute.xlu0 %634
      %636 = vrot.lane.b32.xlu0 %v543, 112
      %v637 = vpop.permute.xlu0 %636
      %638 = vrot.lane.b32.xlu0 %v548, 112
      %v639 = vpop.permute.xlu0 %638
      %vm640 = vcmask 31744
      %v641 = vsel %vm640, %v513, 0
      %v643 = vsel %vm640, %v518, 0
      %v645 = vsel %vm640, %v523, 0
      %v647 = vsel %vm640, %v528, 0
      %v649 = vsel %vm640, %v533, 0
      %v651 = vsel %vm640, %v538, 0
      %v653 = vsel %vm640, %v543, 0
      %v655 = vsel %vm640, %v548, 0
      %v657 = vsel %vm640, %v625, 0
      %v659 = vsel %vm640, %v627, 0
      %v661 = vsel %vm640, %v629, 0
      %v663 = vsel %vm640, %v631, 0
      %v665 = vsel %vm640, %v633, 0
      %v667 = vsel %vm640, %v635, 0
      %v669 = vsel %vm640, %v637, 0
      %v671 = vsel %vm640, %v639, 0
      %673 = vmatprep.subr.mxu0 0.0
      %674 = vmatpush1.xpose.msra.mxu0 %v657
      %675 = vmatprep.subr.mxu0 0.0
      %676 = vmatpush1.xpose.msra.mxu0 %v659
      %677 = vmatprep.subr.mxu0 0.0
      %678 = vmatpush1.xpose.msra.mxu0 %v661
      %679 = vmatprep.subr.mxu0 0.0
      %680 = vmatpush1.xpose.msra.mxu0 %v663
      %681 = vmatprep.subr.mxu0 0.0
      %682 = vmatpush1.xpose.msra.mxu0 %v665
      %683 = vmatprep.subr.mxu0 0.0
      %684 = vmatpush1.xpose.msra.mxu0 %v667
      %685 = vmatprep.subr.mxu0 0.0
      %686 = vmatpush1.xpose.msra.mxu0 %v669
      %687 = vmatprep.subr.mxu0 0.0
      %688 = vmatpush1.xpose.msra.mxu0 %v671
      %689 = vmatprep.subr.mxu0 0.0
      %690 = vmatpush1.xpose.msra.mxu0 0.0
      %691 = vmatprep.subr.mxu0 0.0
      %692 = vmatpush1.xpose.msra.mxu0 0.0
      %693 = vmatprep.subr.mxu0 0.0
      %694 = vmatpush1.xpose.msra.mxu0 0.0
      %695 = vmatprep.subr.mxu0 0.0
      %696 = vmatpush1.xpose.msra.mxu0 0.0
      %697 = vmatprep.subr.mxu0 0.0
      %698 = vmatpush1.xpose.msra.mxu0 0.0
      %699 = vmatprep.subr.mxu0 0.0
      %700 = vmatpush1.xpose.msra.mxu0 0.0
      %701 = vmatprep.subr.mxu0 0.0
      %702 = vmatpush1.xpose.msra.mxu0 0.0
      %703 = vmatprep.subr.mxu0 0.0
      %704 = vmatpush1.xpose.msra.mxu0 0.0
      %705 = vmatprep.subr.mxu0 0.0
      %706 = vmatpush1.xpose.msra.mxu0 0.0
      %707 = vmatprep.subr.mxu0 0.0
      %708 = vmatpush1.xpose.msra.mxu0 0.0
      %709 = vmatprep.subr.mxu0 0.0
      %710 = vmatpush1.xpose.msra.mxu0 0.0
      %711 = vmatprep.subr.mxu0 0.0
      %712 = vmatpush1.xpose.msra.mxu0 0.0
      %713 = vmatprep.subr.mxu0 0.0
      %714 = vmatpush1.xpose.msra.mxu0 0.0
      %715 = vmatprep.subr.mxu0 0.0
      %716 = vmatpush1.xpose.msra.mxu0 0.0
      %717 = vmatprep.subr.mxu0 0.0
      %718 = vmatpush1.xpose.msra.mxu0 0.0
      %719 = vmatprep.subr.mxu0 0.0
      %720 = vmatpush1.xpose.msra.mxu0 0.0
      %721 = vmatprep.subr.mxu0 0.0
      %722 = vmatpush1.xpose.msra.mxu0 0.0
      %723 = vmatprep.subr.mxu0 0.0
      %724 = vmatpush1.xpose.msra.mxu0 0.0
      %725 = vmatprep.subr.mxu0 0.0
      %726 = vmatpush1.xpose.msra.mxu0 0.0
      %727 = vmatprep.subr.mxu0 0.0
      %728 = vmatpush1.xpose.msra.mxu0 0.0
      %729 = vmatprep.subr.mxu0 0.0
      %730 = vmatpush1.xpose.msra.mxu0 0.0
      %731 = vmatprep.subr.mxu0 0.0
      %732 = vmatpush1.xpose.msra.mxu0 0.0
      %733 = vmatprep.subr.mxu0 0.0
      %734 = vmatpush1.xpose.msra.mxu0 0.0
      %735 = vmatprep.subr.mxu0 0.0
      %736 = vmatpush1.xpose.msra.mxu0 0.0
      %737 = vmatprep.mubr.f32.mxu0 0.0
      %738 = vmatmul.mubr.f32.gmra.mrb[0].mxu0 %v641
      %v739 = vpop.f32.mrb[0].mxu0
      %v740 = vadd.f32 0.0, %v739
      %v741 = vpop.f32.mrb[0].mxu0
      %742 = vmatprep.mubr.f32.mxu0 0.0
      %743 = vmatmul.mubr.f32.gmra.mrb[0].mxu0 %v643
      %v744 = vpop.f32.mrb[0].mxu0
      %v745 = vadd.f32 0.0, %v744
      %v746 = vpop.f32.mrb[0].mxu0
      %747 = vmatprep.mubr.f32.mxu0 0.0
      %748 = vmatmul.mubr.f32.gmra.mrb[0].mxu0 %v645
      %v749 = vpop.f32.mrb[0].mxu0
      %v750 = vadd.f32 0.0, %v749
      %v751 = vpop.f32.mrb[0].mxu0
      %752 = vmatprep.mubr.f32.mxu0 0.0
      %753 = vmatmul.mubr.f32.gmra.mrb[0].mxu0 %v647
      %v754 = vpop.f32.mrb[0].mxu0
      %v755 = vadd.f32 0.0, %v754
      %v756 = vpop.f32.mrb[0].mxu0
      %757 = vmatprep.mubr.f32.mxu0 0.0
      %758 = vmatmul.mubr.f32.gmra.mrb[0].mxu0 %v649
      %v759 = vpop.f32.mrb[0].mxu0
      %v760 = vadd.f32 0.0, %v759
      %v761 = vpop.f32.mrb[0].mxu0
      %762 = vmatprep.mubr.f32.mxu0 0.0
      %763 = vmatmul.mubr.f32.gmra.mrb[0].mxu0 %v651
      %v764 = vpop.f32.mrb[0].mxu0
      %v765 = vadd.f32 0.0, %v764
      %v766 = vpop.f32.mrb[0].mxu0
      %767 = vmatprep.mubr.f32.mxu0 0.0
      %768 = vmatmul.mubr.f32.gmra.mrb[0].mxu0 %v653
      %v769 = vpop.f32.mrb[0].mxu0
      %v770 = vadd.f32 0.0, %v769
      %v771 = vpop.f32.mrb[0].mxu0
      %772 = vmatprep.mubr.f32.mxu0 0.0
      %773 = vmatmul.mubr.f32.gmra.mrb[0].mxu0 %v655
      %v774 = vpop.f32.mrb[0].mxu0
      %v775 = vadd.f32 0.0, %v774
      %v776 = vpop.f32.mrb[0].mxu0
      %777 = vdwg.mxu0
      %v778 = vsel %vm606, %v740, -1e+30
      %v779 = vsel %vm607, %v745, -1e+30
      %v780 = vsel %vm608, %v750, -1e+30
      %v781 = vsel %vm609, %v755, -1e+30
      %v782 = vsel %vm610, %v760, -1e+30
      %v783 = vsel %vm611, %v765, -1e+30
      %v784 = vsel %vm612, %v770, -1e+30
      %v785 = vsel %vm613, %v775, -1e+30
      %vm786 = vcmask 523264
      %v787 = vsel %vm786, %v778, -inf
      %788 = vmax.xlane.f32.xlu0 %v787
      %v789 = vpop.xlane.xlu0 %788
      %v790 = vsel %vm786, %v779, -inf
      %791 = vmax.xlane.f32.xlu0 %v790
      %v792 = vpop.xlane.xlu0 %791
      %v793 = vsel %vm786, %v780, -inf
      %794 = vmax.xlane.f32.xlu0 %v793
      %v795 = vpop.xlane.xlu0 %794
      %v796 = vsel %vm786, %v781, -inf
      %797 = vmax.xlane.f32.xlu0 %v796
      %v798 = vpop.xlane.xlu0 %797
      %v799 = vsel %vm786, %v782, -inf
      %800 = vmax.xlane.f32.xlu0 %v799
      %v801 = vpop.xlane.xlu0 %800
      %v802 = vsel %vm786, %v783, -inf
      %803 = vmax.xlane.f32.xlu0 %v802
      %v804 = vpop.xlane.xlu0 %803
      %v805 = vsel %vm786, %v784, -inf
      %806 = vmax.xlane.f32.xlu0 %v805
      %v807 = vpop.xlane.xlu0 %806
      %v808 = vsel %vm786, %v785, -inf
      %809 = vmax.xlane.f32.xlu0 %v808
      %v810 = vpop.xlane.xlu0 %809
      %v811 = vsub.f32 %v778, %v789
      %v812 = vsub.f32 %v779, %v792
      %v813 = vsub.f32 %v780, %v795
      %v814 = vsub.f32 %v781, %v798
      %v815 = vsub.f32 %v782, %v801
      %v816 = vsub.f32 %v783, %v804
      %v817 = vsub.f32 %v784, %v807
      %v818 = vsub.f32 %v785, %v810
      %v819 = vmul.f32 %v811, 1.442695
      %v820 = vpow.pop %v819
      %v821 = vmul.f32 %v812, 1.442695
      %v822 = vpow.pop %v821
      %v823 = vmul.f32 %v813, 1.442695
      %v824 = vpow.pop %v823
      %v825 = vmul.f32 %v814, 1.442695
      %v826 = vpow.pop %v825
      %v827 = vmul.f32 %v815, 1.442695
      %v828 = vpow.pop %v827
      %v829 = vmul.f32 %v816, 1.442695
      %v830 = vpow.pop %v829
      %v831 = vmul.f32 %v817, 1.442695
      %v832 = vpow.pop %v831
      %v833 = vmul.f32 %v818, 1.442695
      %v834 = vpow.pop %v833
      %v835 = vsel %vm786, %v820, 0.0
      %836 = vadd.xlane.f32.xlu0 %v835
      %v837 = vpop.xlane.xlu0 %836
      %v838 = vsel %vm786, %v822, 0.0
      %839 = vadd.xlane.f32.xlu0 %v838
      %v840 = vpop.xlane.xlu0 %839
      %v841 = vsel %vm786, %v824, 0.0
      %842 = vadd.xlane.f32.xlu0 %v841
      %v843 = vpop.xlane.xlu0 %842
      %v844 = vsel %vm786, %v826, 0.0
      %845 = vadd.xlane.f32.xlu0 %v844
      %v846 = vpop.xlane.xlu0 %845
      %v847 = vsel %vm786, %v828, 0.0
      %848 = vadd.xlane.f32.xlu0 %v847
      %v849 = vpop.xlane.xlu0 %848
      %v850 = vsel %vm786, %v830, 0.0
      %851 = vadd.xlane.f32.xlu0 %v850
      %v852 = vpop.xlane.xlu0 %851
      %v853 = vsel %vm786, %v832, 0.0
      %854 = vadd.xlane.f32.xlu0 %v853
      %v855 = vpop.xlane.xlu0 %854
      %v856 = vsel %vm786, %v834, 0.0
      %857 = vadd.xlane.f32.xlu0 %v856
      %v858 = vpop.xlane.xlu0 %857
      %v859 = vrcp.pop %v837
      %v860 = vrcp.pop %v840
      %v861 = vrcp.pop %v843
      %v862 = vrcp.pop %v846
      %v863 = vrcp.pop %v849
      %v864 = vrcp.pop %v852
      %v865 = vrcp.pop %v855
      %v866 = vrcp.pop %v858
      %v867 = vmul.f32 %v820, %v859
      %v868 = vmul.f32 %v822, %v860
      %v869 = vmul.f32 %v824, %v861
      %v870 = vmul.f32 %v826, %v862
      %v871 = vmul.f32 %v828, %v863
      %v872 = vmul.f32 %v830, %v864
      %v873 = vmul.f32 %v832, %v865
      %v874 = vmul.f32 %v834, %v866
      %875 = vrot.lane.b32.xlu0 %v513, 96
      %v876 = vpop.permute.xlu0 %875
      %877 = vrot.lane.b32.xlu0 %v518, 96
      %v878 = vpop.permute.xlu0 %877
      %879 = vrot.lane.b32.xlu0 %v523, 96
      %v880 = vpop.permute.xlu0 %879
      %881 = vrot.lane.b32.xlu0 %v528, 96
      %v882 = vpop.permute.xlu0 %881
      %883 = vrot.lane.b32.xlu0 %v533, 96
      %v884 = vpop.permute.xlu0 %883
      %885 = vrot.lane.b32.xlu0 %v538, 96
      %v886 = vpop.permute.xlu0 %885
      %887 = vrot.lane.b32.xlu0 %v543, 96
      %v888 = vpop.permute.xlu0 %887
      %889 = vrot.lane.b32.xlu0 %v548, 96
      %v890 = vpop.permute.xlu0 %889
      %v900 = vsel %vm786, %v867, 0
      %v903 = vsel %vm786, %v868, 0
      %v906 = vsel %vm786, %v869, 0
      %v909 = vsel %vm786, %v870, 0
      %v912 = vsel %vm786, %v871, 0
      %v915 = vsel %vm786, %v872, 0
      %v918 = vsel %vm786, %v873, 0
      %v921 = vsel %vm786, %v874, 0
      %923 = vmatprep.subr.mxu0 0.0
      %924 = vmatpush1.msra.mxu0 %v876
      %925 = vmatprep.subr.mxu0 0.0
      %926 = vmatpush1.msra.mxu0 %v878
      %927 = vmatprep.subr.mxu0 0.0
      %928 = vmatpush1.msra.mxu0 %v880
      %929 = vmatprep.subr.mxu0 0.0
      %930 = vmatpush1.msra.mxu0 %v882
      %931 = vmatprep.subr.mxu0 0.0
      %932 = vmatpush1.msra.mxu0 %v884
      %933 = vmatprep.subr.mxu0 0.0
      %934 = vmatpush1.msra.mxu0 %v886
      %935 = vmatprep.subr.mxu0 0.0
      %936 = vmatpush1.msra.mxu0 %v888
      %937 = vmatprep.subr.mxu0 0.0
      %938 = vmatpush1.msra.mxu0 %v890
      %939 = vmatprep.subr.mxu0 0.0
      %940 = vmatpush1.msra.mxu0 0.0
      %941 = vmatprep.subr.mxu0 0.0
      %942 = vmatpush1.msra.mxu0 0.0
      %943 = vmatprep.subr.mxu0 0.0
      %944 = vmatpush1.msra.mxu0 0.0
      %945 = vmatprep.subr.mxu0 0.0
      %946 = vmatpush1.msra.mxu0 0.0
      %947 = vmatprep.subr.mxu0 0.0
      %948 = vmatpush1.msra.mxu0 0.0
      %949 = vmatprep.subr.mxu0 0.0
      %950 = vmatpush1.msra.mxu0 0.0
      %951 = vmatprep.subr.mxu0 0.0
      %952 = vmatpush1.msra.mxu0 0.0
      %953 = vmatprep.subr.mxu0 0.0
      %954 = vmatpush1.msra.mxu0 0.0
      %955 = vmatprep.subr.mxu0 0.0
      %956 = vmatpush1.msra.mxu0 0.0
      %957 = vmatprep.subr.mxu0 0.0
      %958 = vmatpush1.msra.mxu0 0.0
      %959 = vmatprep.subr.mxu0 0.0
      %960 = vmatpush1.msra.mxu0 0.0
      %961 = vmatprep.subr.mxu0 0.0
      %962 = vmatpush1.msra.mxu0 0.0
      %963 = vmatprep.subr.mxu0 0.0
      %964 = vmatpush1.msra.mxu0 0.0
      %965 = vmatprep.subr.mxu0 0.0
      %966 = vmatpush1.msra.mxu0 0.0
      %967 = vmatprep.subr.mxu0 0.0
      %968 = vmatpush1.msra.mxu0 0.0
      %969 = vmatprep.subr.mxu0 0.0
      %970 = vmatpush1.msra.mxu0 0.0
      %971 = vmatprep.subr.mxu0 0.0
      %972 = vmatpush1.msra.mxu0 0.0
      %973 = vmatprep.subr.mxu0 0.0
      %974 = vmatpush1.msra.mxu0 0.0
      %975 = vmatprep.subr.mxu0 0.0
      %976 = vmatpush1.msra.mxu0 0.0
      %977 = vmatprep.subr.mxu0 0.0
      %978 = vmatpush1.msra.mxu0 0.0
      %979 = vmatprep.subr.mxu0 0.0
      %980 = vmatpush1.msra.mxu0 0.0
      %981 = vmatprep.subr.mxu0 0.0
      %982 = vmatpush1.msra.mxu0 0.0
      %983 = vmatprep.subr.mxu0 0.0
      %984 = vmatpush1.msra.mxu0 0.0
      %985 = vmatprep.subr.mxu0 0.0
      %986 = vmatpush1.msra.mxu0 0.0
      %987 = vmatprep.mubr.f32.mxu0 0.0
      %988 = vmatmul.mubr.f32.gmra.mrb[0].mxu0 %v900
      %v989 = vpop.f32.mrb[0].mxu0
      %v990 = vadd.f32 0.0, %v989
      %v991 = vpop.f32.mrb[0].mxu0
      %992 = vmatprep.mubr.f32.mxu0 0.0
      %993 = vmatmul.mubr.f32.gmra.mrb[0].mxu0 %v903
      %v994 = vpop.f32.mrb[0].mxu0
      %v995 = vadd.f32 0.0, %v994
      %v996 = vpop.f32.mrb[0].mxu0
      %997 = vmatprep.mubr.f32.mxu0 0.0
      %998 = vmatmul.mubr.f32.gmra.mrb[0].mxu0 %v906
      %v999 = vpop.f32.mrb[0].mxu0
      %v1000 = vadd.f32 0.0, %v999
      %v1001 = vpop.f32.mrb[0].mxu0
      %1002 = vmatprep.mubr.f32.mxu0 0.0
      %1003 = vmatmul.mubr.f32.gmra.mrb[0].mxu0 %v909
      %v1004 = vpop.f32.mrb[0].mxu0
      %v1005 = vadd.f32 0.0, %v1004
      %v1006 = vpop.f32.mrb[0].mxu0
      %1007 = vmatprep.mubr.f32.mxu0 0.0
      %1008 = vmatmul.mubr.f32.gmra.mrb[0].mxu0 %v912
      %v1009 = vpop.f32.mrb[0].mxu0
      %v1010 = vadd.f32 0.0, %v1009
      %v1011 = vpop.f32.mrb[0].mxu0
      %1012 = vmatprep.mubr.f32.mxu0 0.0
      %1013 = vmatmul.mubr.f32.gmra.mrb[0].mxu0 %v915
      %v1014 = vpop.f32.mrb[0].mxu0
      %v1015 = vadd.f32 0.0, %v1014
      %v1016 = vpop.f32.mrb[0].mxu0
      %1017 = vmatprep.mubr.f32.mxu0 0.0
      %1018 = vmatmul.mubr.f32.gmra.mrb[0].mxu0 %v918
      %v1019 = vpop.f32.mrb[0].mxu0
      %v1020 = vadd.f32 0.0, %v1019
      %v1021 = vpop.f32.mrb[0].mxu0
      %1022 = vmatprep.mubr.f32.mxu0 0.0
      %1023 = vmatmul.mubr.f32.gmra.mrb[0].mxu0 %v921
      %v1024 = vpop.f32.mrb[0].mxu0
      %v1025 = vadd.f32 0.0, %v1024
      %v1026 = vpop.f32.mrb[0].mxu0
      %1027 = vdwg.mxu0
      %1028 = vrot.lane.b32.xlu0 %v513, 124
      %v1029 = vpop.permute.xlu0 %1028
      %1030 = vrot.lane.b32.xlu0 %v518, 124
      %v1031 = vpop.permute.xlu0 %1030
      %1032 = vrot.lane.b32.xlu0 %v523, 124
      %v1033 = vpop.permute.xlu0 %1032
      %1034 = vrot.lane.b32.xlu0 %v528, 124
      %v1035 = vpop.permute.xlu0 %1034
      %1036 = vrot.lane.b32.xlu0 %v533, 124
      %v1037 = vpop.permute.xlu0 %1036
      %1038 = vrot.lane.b32.xlu0 %v538, 124
      %v1039 = vpop.permute.xlu0 %1038
      %1040 = vrot.lane.b32.xlu0 %v543, 124
      %v1041 = vpop.permute.xlu0 %1040
      %1042 = vrot.lane.b32.xlu0 %v548, 124
      %v1043 = vpop.permute.xlu0 %1042
      %1044 = vrot.lane.b32.xlu0 %v513, 108
      %v1045 = vpop.permute.xlu0 %1044
      %1046 = vrot.lane.b32.xlu0 %v518, 108
      %v1047 = vpop.permute.xlu0 %1046
      %1048 = vrot.lane.b32.xlu0 %v523, 108
      %v1049 = vpop.permute.xlu0 %1048
      %1050 = vrot.lane.b32.xlu0 %v528, 108
      %v1051 = vpop.permute.xlu0 %1050
      %1052 = vrot.lane.b32.xlu0 %v533, 108
      %v1053 = vpop.permute.xlu0 %1052
      %1054 = vrot.lane.b32.xlu0 %v538, 108
      %v1055 = vpop.permute.xlu0 %1054
      %1056 = vrot.lane.b32.xlu0 %v543, 108
      %v1057 = vpop.permute.xlu0 %1056
      %1058 = vrot.lane.b32.xlu0 %v548, 108
      %v1059 = vpop.permute.xlu0 %1058
      %v1060 = vsel %vm640, %v1029, 0
      %v1062 = vsel %vm640, %v1031, 0
      %v1064 = vsel %vm640, %v1033, 0
      %v1066 = vsel %vm640, %v1035, 0
      %v1068 = vsel %vm640, %v1037, 0
      %v1070 = vsel %vm640, %v1039, 0
      %v1072 = vsel %vm640, %v1041, 0
      %v1074 = vsel %vm640, %v1043, 0
      %v1076 = vsel %vm640, %v1045, 0
      %v1078 = vsel %vm640, %v1047, 0
      %v1080 = vsel %vm640, %v1049, 0
      %v1082 = vsel %vm640, %v1051, 0
      %v1084 = vsel %vm640, %v1053, 0
      %v1086 = vsel %vm640, %v1055, 0
      %v1088 = vsel %vm640, %v1057, 0
      %v1090 = vsel %vm640, %v1059, 0
      %1092 = vmatprep.subr.mxu0 0.0
      %1093 = vmatpush1.xpose.msra.mxu0 %v1076
      %1094 = vmatprep.subr.mxu0 0.0
      %1095 = vmatpush1.xpose.msra.mxu0 %v1078
      %1096 = vmatprep.subr.mxu0 0.0
      %1097 = vmatpush1.xpose.msra.mxu0 %v1080
      %1098 = vmatprep.subr.mxu0 0.0
      %1099 = vmatpush1.xpose.msra.mxu0 %v1082
      %1100 = vmatprep.subr.mxu0 0.0
      %1101 = vmatpush1.xpose.msra.mxu0 %v1084
      %1102 = vmatprep.subr.mxu0 0.0
      %1103 = vmatpush1.xpose.msra.mxu0 %v1086
      %1104 = vmatprep.subr.mxu0 0.0
      %1105 = vmatpush1.xpose.msra.mxu0 %v1088
      %1106 = vmatprep.subr.mxu0 0.0
      %1107 = vmatpush1.xpose.msra.mxu0 %v1090
      %1108 = vmatprep.subr.mxu0 0.0
      %1109 = vmatpush1.xpose.msra.mxu0 0.0
      %1110 = vmatprep.subr.mxu0 0.0
      %1111 = vmatpush1.xpose.msra.mxu0 0.0
      %1112 = vmatprep.subr.mxu0 0.0
      %1113 = vmatpush1.xpose.msra.mxu0 0.0
      %1114 = vmatprep.subr.mxu0 0.0
      %1115 = vmatpush1.xpose.msra.mxu0 0.0
      %1116 = vmatprep.subr.mxu0 0.0
      %1117 = vmatpush1.xpose.msra.mxu0 0.0
      %1118 = vmatprep.subr.mxu0 0.0
      %1119 = vmatpush1.xpose.msra.mxu0 0.0
      %1120 = vmatprep.subr.mxu0 0.0
      %1121 = vmatpush1.xpose.msra.mxu0 0.0
      %1122 = vmatprep.subr.mxu0 0.0
      %1123 = vmatpush1.xpose.msra.mxu0 0.0
      %1124 = vmatprep.subr.mxu0 0.0
      %1125 = vmatpush1.xpose.msra.mxu0 0.0
      %1126 = vmatprep.subr.mxu0 0.0
      %1127 = vmatpush1.xpose.msra.mxu0 0.0
      %1128 = vmatprep.subr.mxu0 0.0
      %1129 = vmatpush1.xpose.msra.mxu0 0.0
      %1130 = vmatprep.subr.mxu0 0.0
      %1131 = vmatpush1.xpose.msra.mxu0 0.0
      %1132 = vmatprep.subr.mxu0 0.0
      %1133 = vmatpush1.xpose.msra.mxu0 0.0
      %1134 = vmatprep.subr.mxu0 0.0
      %1135 = vmatpush1.xpose.msra.mxu0 0.0
      %1136 = vmatprep.subr.mxu0 0.0
      %1137 = vmatpush1.xpose.msra.mxu0 0.0
      %1138 = vmatprep.subr.mxu0 0.0
      %1139 = vmatpush1.xpose.msra.mxu0 0.0
      %1140 = vmatprep.subr.mxu0 0.0
      %1141 = vmatpush1.xpose.msra.mxu0 0.0
      %1142 = vmatprep.subr.mxu0 0.0
      %1143 = vmatpush1.xpose.msra.mxu0 0.0
      %1144 = vmatprep.subr.mxu0 0.0
      %1145 = vmatpush1.xpose.msra.mxu0 0.0
      %1146 = vmatprep.subr.mxu0 0.0
      %1147 = vmatpush1.xpose.msra.mxu0 0.0
      %1148 = vmatprep.subr.mxu0 0.0
      %1149 = vmatpush1.xpose.msra.mxu0 0.0
      %1150 = vmatprep.subr.mxu0 0.0
      %1151 = vmatpush1.xpose.msra.mxu0 0.0
      %1152 = vmatprep.subr.mxu0 0.0
      %1153 = vmatpush1.xpose.msra.mxu0 0.0
      %1154 = vmatprep.subr.mxu0 0.0
      %1155 = vmatpush1.xpose.msra.mxu0 0.0
      %1156 = vmatprep.mubr.f32.mxu0 0.0
      %1157 = vmatmul.mubr.f32.gmra.mrb[0].mxu0 %v1060
      %v1158 = vpop.f32.mrb[0].mxu0
      %v1159 = vadd.f32 0.0, %v1158
      %v1160 = vpop.f32.mrb[0].mxu0
      %1161 = vmatprep.mubr.f32.mxu0 0.0
      %1162 = vmatmul.mubr.f32.gmra.mrb[0].mxu0 %v1062
      %v1163 = vpop.f32.mrb[0].mxu0
      %v1164 = vadd.f32 0.0, %v1163
      %v1165 = vpop.f32.mrb[0].mxu0
      %1166 = vmatprep.mubr.f32.mxu0 0.0
      %1167 = vmatmul.mubr.f32.gmra.mrb[0].mxu0 %v1064
      %v1168 = vpop.f32.mrb[0].mxu0
      %v1169 = vadd.f32 0.0, %v1168
      %v1170 = vpop.f32.mrb[0].mxu0
      %1171 = vmatprep.mubr.f32.mxu0 0.0
      %1172 = vmatmul.mubr.f32.gmra.mrb[0].mxu0 %v1066
      %v1173 = vpop.f32.mrb[0].mxu0
      %v1174 = vadd.f32 0.0, %v1173
      %v1175 = vpop.f32.mrb[0].mxu0
      %1176 = vmatprep.mubr.f32.mxu0 0.0
      %1177 = vmatmul.mubr.f32.gmra.mrb[0].mxu0 %v1068
      %v1178 = vpop.f32.mrb[0].mxu0
      %v1179 = vadd.f32 0.0, %v1178
      %v1180 = vpop.f32.mrb[0].mxu0
      %1181 = vmatprep.mubr.f32.mxu0 0.0
      %1182 = vmatmul.mubr.f32.gmra.mrb[0].mxu0 %v1070
      %v1183 = vpop.f32.mrb[0].mxu0
      %v1184 = vadd.f32 0.0, %v1183
      %v1185 = vpop.f32.mrb[0].mxu0
      %1186 = vmatprep.mubr.f32.mxu0 0.0
      %1187 = vmatmul.mubr.f32.gmra.mrb[0].mxu0 %v1072
      %v1188 = vpop.f32.mrb[0].mxu0
      %v1189 = vadd.f32 0.0, %v1188
      %v1190 = vpop.f32.mrb[0].mxu0
      %1191 = vmatprep.mubr.f32.mxu0 0.0
      %1192 = vmatmul.mubr.f32.gmra.mrb[0].mxu0 %v1074
      %v1193 = vpop.f32.mrb[0].mxu0
      %v1194 = vadd.f32 0.0, %v1193
      %v1195 = vpop.f32.mrb[0].mxu0
      %1196 = vdwg.mxu0
      %v1197 = vsel %vm606, %v1159, -1e+30
      %v1198 = vsel %vm607, %v1164, -1e+30
      %v1199 = vsel %vm608, %v1169, -1e+30
      %v1200 = vsel %vm609, %v1174, -1e+30
      %v1201 = vsel %vm610, %v1179, -1e+30
      %v1202 = vsel %vm611, %v1184, -1e+30
      %v1203 = vsel %vm612, %v1189, -1e+30
      %v1204 = vsel %vm613, %v1194, -1e+30
      %v1205 = vsel %vm786, %v1197, -inf
      %1206 = vmax.xlane.f32.xlu0 %v1205
      %v1207 = vpop.xlane.xlu0 %1206
      %v1208 = vsel %vm786, %v1198, -inf
      %1209 = vmax.xlane.f32.xlu0 %v1208
      %v1210 = vpop.xlane.xlu0 %1209
      %v1211 = vsel %vm786, %v1199, -inf
      %1212 = vmax.xlane.f32.xlu0 %v1211
      %v1213 = vpop.xlane.xlu0 %1212
      %v1214 = vsel %vm786, %v1200, -inf
      %1215 = vmax.xlane.f32.xlu0 %v1214
      %v1216 = vpop.xlane.xlu0 %1215
      %v1217 = vsel %vm786, %v1201, -inf
      %1218 = vmax.xlane.f32.xlu0 %v1217
      %v1219 = vpop.xlane.xlu0 %1218
      %v1220 = vsel %vm786, %v1202, -inf
      %1221 = vmax.xlane.f32.xlu0 %v1220
      %v1222 = vpop.xlane.xlu0 %1221
      %v1223 = vsel %vm786, %v1203, -inf
      %1224 = vmax.xlane.f32.xlu0 %v1223
      %v1225 = vpop.xlane.xlu0 %1224
      %v1226 = vsel %vm786, %v1204, -inf
      %1227 = vmax.xlane.f32.xlu0 %v1226
      %v1228 = vpop.xlane.xlu0 %1227
      %v1229 = vsub.f32 %v1197, %v1207
      %v1230 = vsub.f32 %v1198, %v1210
      %v1231 = vsub.f32 %v1199, %v1213
      %v1232 = vsub.f32 %v1200, %v1216
      %v1233 = vsub.f32 %v1201, %v1219
      %v1234 = vsub.f32 %v1202, %v1222
      %v1235 = vsub.f32 %v1203, %v1225
      %v1236 = vsub.f32 %v1204, %v1228
      %v1237 = vmul.f32 %v1229, 1.442695
      %v1238 = vpow.pop %v1237
      %v1239 = vmul.f32 %v1230, 1.442695
      %v1240 = vpow.pop %v1239
      %v1241 = vmul.f32 %v1231, 1.442695
      %v1242 = vpow.pop %v1241
      %v1243 = vmul.f32 %v1232, 1.442695
      %v1244 = vpow.pop %v1243
      %v1245 = vmul.f32 %v1233, 1.442695
      %v1246 = vpow.pop %v1245
      %v1247 = vmul.f32 %v1234, 1.442695
      %v1248 = vpow.pop %v1247
      %v1249 = vmul.f32 %v1235, 1.442695
      %v1250 = vpow.pop %v1249
      %v1251 = vmul.f32 %v1236, 1.442695
      %v1252 = vpow.pop %v1251
      %v1253 = vsel %vm786, %v1238, 0.0
      %1254 = vadd.xlane.f32.xlu0 %v1253
      %v1255 = vpop.xlane.xlu0 %1254
      %v1256 = vsel %vm786, %v1240, 0.0
      %1257 = vadd.xlane.f32.xlu0 %v1256
      %v1258 = vpop.xlane.xlu0 %1257
      %v1259 = vsel %vm786, %v1242, 0.0
      %1260 = vadd.xlane.f32.xlu0 %v1259
      %v1261 = vpop.xlane.xlu0 %1260
      %v1262 = vsel %vm786, %v1244, 0.0
      %1263 = vadd.xlane.f32.xlu0 %v1262
      %v1264 = vpop.xlane.xlu0 %1263
      %v1265 = vsel %vm786, %v1246, 0.0
      %1266 = vadd.xlane.f32.xlu0 %v1265
      %v1267 = vpop.xlane.xlu0 %1266
      %v1268 = vsel %vm786, %v1248, 0.0
      %1269 = vadd.xlane.f32.xlu0 %v1268
      %v1270 = vpop.xlane.xlu0 %1269
      %v1271 = vsel %vm786, %v1250, 0.0
      %1272 = vadd.xlane.f32.xlu0 %v1271
      %v1273 = vpop.xlane.xlu0 %1272
      %v1274 = vsel %vm786, %v1252, 0.0
      %1275 = vadd.xlane.f32.xlu0 %v1274
      %v1276 = vpop.xlane.xlu0 %1275
      %v1277 = vrcp.pop %v1255
      %v1278 = vrcp.pop %v1258
      %v1279 = vrcp.pop %v1261
      %v1280 = vrcp.pop %v1264
      %v1281 = vrcp.pop %v1267
      %v1282 = vrcp.pop %v1270
      %v1283 = vrcp.pop %v1273
      %v1284 = vrcp.pop %v1276
      %v1285 = vmul.f32 %v1238, %v1277
      %v1286 = vmul.f32 %v1240, %v1278
      %v1287 = vmul.f32 %v1242, %v1279
      %v1288 = vmul.f32 %v1244, %v1280
      %v1289 = vmul.f32 %v1246, %v1281
      %v1290 = vmul.f32 %v1248, %v1282
      %v1291 = vmul.f32 %v1250, %v1283
      %v1292 = vmul.f32 %v1252, %v1284
      %1293 = vrot.lane.b32.xlu0 %v513, 92
      %v1294 = vpop.permute.xlu0 %1293
      %1295 = vrot.lane.b32.xlu0 %v518, 92
      %v1296 = vpop.permute.xlu0 %1295
      %1297 = vrot.lane.b32.xlu0 %v523, 92
      %v1298 = vpop.permute.xlu0 %1297
      %1299 = vrot.lane.b32.xlu0 %v528, 92
      %v1300 = vpop.permute.xlu0 %1299
      %1301 = vrot.lane.b32.xlu0 %v533, 92
      %v1302 = vpop.permute.xlu0 %1301
      %1303 = vrot.lane.b32.xlu0 %v538, 92
      %v1304 = vpop.permute.xlu0 %1303
      %1305 = vrot.lane.b32.xlu0 %v543, 92
      %v1306 = vpop.permute.xlu0 %1305
      %1307 = vrot.lane.b32.xlu0 %v548, 92
      %v1308 = vpop.permute.xlu0 %1307
      %v1318 = vsel %vm786, %v1285, 0
      %v1321 = vsel %vm786, %v1286, 0
      %v1324 = vsel %vm786, %v1287, 0
      %v1327 = vsel %vm786, %v1288, 0
      %v1330 = vsel %vm786, %v1289, 0
      %v1333 = vsel %vm786, %v1290, 0
      %v1336 = vsel %vm786, %v1291, 0
      %v1339 = vsel %vm786, %v1292, 0
      %1341 = vmatprep.subr.mxu0 0.0
      %1342 = vmatpush1.msra.mxu0 %v1294
      %1343 = vmatprep.subr.mxu0 0.0
      %1344 = vmatpush1.msra.mxu0 %v1296
      %1345 = vmatprep.subr.mxu0 0.0
      %1346 = vmatpush1.msra.mxu0 %v1298
      %1347 = vmatprep.subr.mxu0 0.0
      %1348 = vmatpush1.msra.mxu0 %v1300
      %1349 = vmatprep.subr.mxu0 0.0
      %1350 = vmatpush1.msra.mxu0 %v1302
      %1351 = vmatprep.subr.mxu0 0.0
      %1352 = vmatpush1.msra.mxu0 %v1304
      %1353 = vmatprep.subr.mxu0 0.0
      %1354 = vmatpush1.msra.mxu0 %v1306
      %1355 = vmatprep.subr.mxu0 0.0
      %1356 = vmatpush1.msra.mxu0 %v1308
      %1357 = vmatprep.subr.mxu0 0.0
      %1358 = vmatpush1.msra.mxu0 0.0
      %1359 = vmatprep.subr.mxu0 0.0
      %1360 = vmatpush1.msra.mxu0 0.0
      %1361 = vmatprep.subr.mxu0 0.0
      %1362 = vmatpush1.msra.mxu0 0.0
      %1363 = vmatprep.subr.mxu0 0.0
      %1364 = vmatpush1.msra.mxu0 0.0
      %1365 = vmatprep.subr.mxu0 0.0
      %1366 = vmatpush1.msra.mxu0 0.0
      %1367 = vmatprep.subr.mxu0 0.0
      %1368 = vmatpush1.msra.mxu0 0.0
      %1369 = vmatprep.subr.mxu0 0.0
      %1370 = vmatpush1.msra.mxu0 0.0
      %1371 = vmatprep.subr.mxu0 0.0
      %1372 = vmatpush1.msra.mxu0 0.0
      %1373 = vmatprep.subr.mxu0 0.0
      %1374 = vmatpush1.msra.mxu0 0.0
      %1375 = vmatprep.subr.mxu0 0.0
      %1376 = vmatpush1.msra.mxu0 0.0
      %1377 = vmatprep.subr.mxu0 0.0
      %1378 = vmatpush1.msra.mxu0 0.0
      %1379 = vmatprep.subr.mxu0 0.0
      %1380 = vmatpush1.msra.mxu0 0.0
      %1381 = vmatprep.subr.mxu0 0.0
      %1382 = vmatpush1.msra.mxu0 0.0
      %1383 = vmatprep.subr.mxu0 0.0
      %1384 = vmatpush1.msra.mxu0 0.0
      %1385 = vmatprep.subr.mxu0 0.0
      %1386 = vmatpush1.msra.mxu0 0.0
      %1387 = vmatprep.subr.mxu0 0.0
      %1388 = vmatpush1.msra.mxu0 0.0
      %1389 = vmatprep.subr.mxu0 0.0
      %1390 = vmatpush1.msra.mxu0 0.0
      %1391 = vmatprep.subr.mxu0 0.0
      %1392 = vmatpush1.msra.mxu0 0.0
      %1393 = vmatprep.subr.mxu0 0.0
      %1394 = vmatpush1.msra.mxu0 0.0
      %1395 = vmatprep.subr.mxu0 0.0
      %1396 = vmatpush1.msra.mxu0 0.0
      %1397 = vmatprep.subr.mxu0 0.0
      %1398 = vmatpush1.msra.mxu0 0.0
      %1399 = vmatprep.subr.mxu0 0.0
      %1400 = vmatpush1.msra.mxu0 0.0
      %1401 = vmatprep.subr.mxu0 0.0
      %1402 = vmatpush1.msra.mxu0 0.0
      %1403 = vmatprep.subr.mxu0 0.0
      %1404 = vmatpush1.msra.mxu0 0.0
      %1405 = vmatprep.mubr.f32.mxu0 0.0
      %1406 = vmatmul.mubr.f32.gmra.mrb[0].mxu0 %v1318
      %v1407 = vpop.f32.mrb[0].mxu0
      %v1408 = vadd.f32 0.0, %v1407
      %v1409 = vpop.f32.mrb[0].mxu0
      %1410 = vmatprep.mubr.f32.mxu0 0.0
      %1411 = vmatmul.mubr.f32.gmra.mrb[0].mxu0 %v1321
      %v1412 = vpop.f32.mrb[0].mxu0
      %v1413 = vadd.f32 0.0, %v1412
      %v1414 = vpop.f32.mrb[0].mxu0
      %1415 = vmatprep.mubr.f32.mxu0 0.0
      %1416 = vmatmul.mubr.f32.gmra.mrb[0].mxu0 %v1324
      %v1417 = vpop.f32.mrb[0].mxu0
      %v1418 = vadd.f32 0.0, %v1417
      %v1419 = vpop.f32.mrb[0].mxu0
      %1420 = vmatprep.mubr.f32.mxu0 0.0
      %1421 = vmatmul.mubr.f32.gmra.mrb[0].mxu0 %v1327
      %v1422 = vpop.f32.mrb[0].mxu0
      %v1423 = vadd.f32 0.0, %v1422
      %v1424 = vpop.f32.mrb[0].mxu0
      %1425 = vmatprep.mubr.f32.mxu0 0.0
      %1426 = vmatmul.mubr.f32.gmra.mrb[0].mxu0 %v1330
      %v1427 = vpop.f32.mrb[0].mxu0
      %v1428 = vadd.f32 0.0, %v1427
      %v1429 = vpop.f32.mrb[0].mxu0
      %1430 = vmatprep.mubr.f32.mxu0 0.0
      %1431 = vmatmul.mubr.f32.gmra.mrb[0].mxu0 %v1333
      %v1432 = vpop.f32.mrb[0].mxu0
      %v1433 = vadd.f32 0.0, %v1432
      %v1434 = vpop.f32.mrb[0].mxu0
      %1435 = vmatprep.mubr.f32.mxu0 0.0
      %1436 = vmatmul.mubr.f32.gmra.mrb[0].mxu0 %v1336
      %v1437 = vpop.f32.mrb[0].mxu0
      %v1438 = vadd.f32 0.0, %v1437
      %v1439 = vpop.f32.mrb[0].mxu0
      %1440 = vmatprep.mubr.f32.mxu0 0.0
      %1441 = vmatmul.mubr.f32.gmra.mrb[0].mxu0 %v1339
      %v1442 = vpop.f32.mrb[0].mxu0
      %v1443 = vadd.f32 0.0, %v1442
      %v1444 = vpop.f32.mrb[0].mxu0
      %1445 = vdwg.mxu0
      %v1447 = vrot.slane %v614, 4
      %v1449 = vsel %vm640, %v1408, 0
      %v1452 = vsel %vm640, %v1413, 0
      %v1455 = vsel %vm640, %v1418, 0
      %v1458 = vsel %vm640, %v1423, 0
      %v1461 = vsel %vm640, %v1428, 0
      %v1464 = vsel %vm640, %v1433, 0
      %v1467 = vsel %vm640, %v1438, 0
      %v1470 = vsel %vm640, %v1443, 0
      %vm1472 = vcmask 1043456
      %v1473 = vsel %vm1472, %v1447, 0
      %1475 = vmatprep.subr.mxu0 0.0
      %1476 = vmatpush1.msra.mxu0 %v1473
      %1477 = vmatprep.subr.mxu0 0.0
      %1478 = vmatpush1.msra.mxu0 0.0
      %1479 = vmatprep.subr.mxu0 0.0
      %1480 = vmatpush1.msra.mxu0 0.0
      %1481 = vmatprep.subr.mxu0 0.0
      %1482 = vmatpush1.msra.mxu0 0.0
      %1483 = vmatprep.subr.mxu0 0.0
      %1484 = vmatpush1.msra.mxu0 0.0
      %1485 = vmatprep.subr.mxu0 0.0
      %1486 = vmatpush1.msra.mxu0 0.0
      %1487 = vmatprep.subr.mxu0 0.0
      %1488 = vmatpush1.msra.mxu0 0.0
      %1489 = vmatprep.subr.mxu0 0.0
      %1490 = vmatpush1.msra.mxu0 0.0
      %1491 = vmatprep.subr.mxu0 0.0
      %1492 = vmatpush1.msra.mxu0 0.0
      %1493 = vmatprep.subr.mxu0 0.0
      %1494 = vmatpush1.msra.mxu0 0.0
      %1495 = vmatprep.subr.mxu0 0.0
      %1496 = vmatpush1.msra.mxu0 0.0
      %1497 = vmatprep.subr.mxu0 0.0
      %1498 = vmatpush1.msra.mxu0 0.0
      %1499 = vmatprep.subr.mxu0 0.0
      %1500 = vmatpush1.msra.mxu0 0.0
      %1501 = vmatprep.subr.mxu0 0.0
      %1502 = vmatpush1.msra.mxu0 0.0
      %1503 = vmatprep.subr.mxu0 0.0
      %1504 = vmatpush1.msra.mxu0 0.0
      %1505 = vmatprep.subr.mxu0 0.0
      %1506 = vmatpush1.msra.mxu0 0.0
      %1507 = vmatprep.subr.mxu0 0.0
      %1508 = vmatpush1.msra.mxu0 0.0
      %1509 = vmatprep.subr.mxu0 0.0
      %1510 = vmatpush1.msra.mxu0 0.0
      %1511 = vmatprep.subr.mxu0 0.0
      %1512 = vmatpush1.msra.mxu0 0.0
      %1513 = vmatprep.subr.mxu0 0.0
      %1514 = vmatpush1.msra.mxu0 0.0
      %1515 = vmatprep.subr.mxu0 0.0
      %1516 = vmatpush1.msra.mxu0 0.0
      %1517 = vmatprep.subr.mxu0 0.0
      %1518 = vmatpush1.msra.mxu0 0.0
      %1519 = vmatprep.subr.mxu0 0.0
      %1520 = vmatpush1.msra.mxu0 0.0
      %1521 = vmatprep.subr.mxu0 0.0
      %1522 = vmatpush1.msra.mxu0 0.0
      %1523 = vmatprep.subr.mxu0 0.0
      %1524 = vmatpush1.msra.mxu0 0.0
      %1525 = vmatprep.subr.mxu0 0.0
      %1526 = vmatpush1.msra.mxu0 0.0
      %1527 = vmatprep.subr.mxu0 0.0
      %1528 = vmatpush1.msra.mxu0 0.0
      %1529 = vmatprep.subr.mxu0 0.0
      %1530 = vmatpush1.msra.mxu0 0.0
      %1531 = vmatprep.subr.mxu0 0.0
      %1532 = vmatpush1.msra.mxu0 0.0
      %1533 = vmatprep.subr.mxu0 0.0
      %1534 = vmatpush1.msra.mxu0 0.0
      %1535 = vmatprep.subr.mxu0 0.0
      %1536 = vmatpush1.msra.mxu0 0.0
      %1537 = vmatprep.subr.mxu0 0.0
      %1538 = vmatpush1.msra.mxu0 0.0
      %1539 = vmatprep.mubr.f32.mxu0 0.0
      %1540 = vmatmul.mubr.f32.gmra.mrb[0].mxu0 %v1449
      %v1541 = vpop.f32.mrb[0].mxu0
      %v1542 = vadd.f32 0.0, %v1541
      %v1543 = vpop.f32.mrb[0].mxu0
      %1544 = vmatprep.mubr.f32.mxu0 0.0
      %1545 = vmatmul.mubr.f32.gmra.mrb[0].mxu0 %v1452
      %v1546 = vpop.f32.mrb[0].mxu0
      %v1547 = vadd.f32 0.0, %v1546
      %v1548 = vpop.f32.mrb[0].mxu0
      %1549 = vmatprep.mubr.f32.mxu0 0.0
      %1550 = vmatmul.mubr.f32.gmra.mrb[0].mxu0 %v1455
      %v1551 = vpop.f32.mrb[0].mxu0
      %v1552 = vadd.f32 0.0, %v1551
      %v1553 = vpop.f32.mrb[0].mxu0
      %1554 = vmatprep.mubr.f32.mxu0 0.0
      %1555 = vmatmul.mubr.f32.gmra.mrb[0].mxu0 %v1458
      %v1556 = vpop.f32.mrb[0].mxu0
      %v1557 = vadd.f32 0.0, %v1556
      %v1558 = vpop.f32.mrb[0].mxu0
      %1559 = vmatprep.mubr.f32.mxu0 0.0
      %1560 = vmatmul.mubr.f32.gmra.mrb[0].mxu0 %v1461
      %v1561 = vpop.f32.mrb[0].mxu0
      %v1562 = vadd.f32 0.0, %v1561
      %v1563 = vpop.f32.mrb[0].mxu0
      %1564 = vmatprep.mubr.f32.mxu0 0.0
      %1565 = vmatmul.mubr.f32.gmra.mrb[0].mxu0 %v1464
      %v1566 = vpop.f32.mrb[0].mxu0
      %v1567 = vadd.f32 0.0, %v1566
      %v1568 = vpop.f32.mrb[0].mxu0
      %1569 = vmatprep.mubr.f32.mxu0 0.0
      %1570 = vmatmul.mubr.f32.gmra.mrb[0].mxu0 %v1467
      %v1571 = vpop.f32.mrb[0].mxu0
      %v1572 = vadd.f32 0.0, %v1571
      %v1573 = vpop.f32.mrb[0].mxu0
      %1574 = vmatprep.mubr.f32.mxu0 0.0
      %1575 = vmatmul.mubr.f32.gmra.mrb[0].mxu0 %v1470
      %v1576 = vpop.f32.mrb[0].mxu0
      %v1577 = vadd.f32 0.0, %v1576
      %v1578 = vpop.f32.mrb[0].mxu0
      %1579 = vdwg.mxu0
      %v1581 = vsel %vm640, %v990, 0
      %v1584 = vsel %vm640, %v995, 0
      %v1587 = vsel %vm640, %v1000, 0
      %v1590 = vsel %vm640, %v1005, 0
      %v1593 = vsel %vm640, %v1010, 0
      %v1596 = vsel %vm640, %v1015, 0
      %v1599 = vsel %vm640, %v1020, 0
      %v1602 = vsel %vm640, %v1025, 0
      %v1604 = vsel %vm1472, %v614, 0
      %1606 = vmatprep.subr.mxu0 0.0
      %1607 = vmatpush1.msra.mxu0 %v1604
      %1608 = vmatprep.subr.mxu0 0.0
      %1609 = vmatpush1.msra.mxu0 0.0
      %1610 = vmatprep.subr.mxu0 0.0
      %1611 = vmatpush1.msra.mxu0 0.0
      %1612 = vmatprep.subr.mxu0 0.0
      %1613 = vmatpush1.msra.mxu0 0.0
      %1614 = vmatprep.subr.mxu0 0.0
      %1615 = vmatpush1.msra.mxu0 0.0
      %1616 = vmatprep.subr.mxu0 0.0
      %1617 = vmatpush1.msra.mxu0 0.0
      %1618 = vmatprep.subr.mxu0 0.0
      %1619 = vmatpush1.msra.mxu0 0.0
      %1620 = vmatprep.subr.mxu0 0.0
      %1621 = vmatpush1.msra.mxu0 0.0
      %1622 = vmatprep.subr.mxu0 0.0
      %1623 = vmatpush1.msra.mxu0 0.0
      %1624 = vmatprep.subr.mxu0 0.0
      %1625 = vmatpush1.msra.mxu0 0.0
      %1626 = vmatprep.subr.mxu0 0.0
      %1627 = vmatpush1.msra.mxu0 0.0
      %1628 = vmatprep.subr.mxu0 0.0
      %1629 = vmatpush1.msra.mxu0 0.0
      %1630 = vmatprep.subr.mxu0 0.0
      %1631 = vmatpush1.msra.mxu0 0.0
      %1632 = vmatprep.subr.mxu0 0.0
      %1633 = vmatpush1.msra.mxu0 0.0
      %1634 = vmatprep.subr.mxu0 0.0
      %1635 = vmatpush1.msra.mxu0 0.0
      %1636 = vmatprep.subr.mxu0 0.0
      %1637 = vmatpush1.msra.mxu0 0.0
      %1638 = vmatprep.subr.mxu0 0.0
      %1639 = vmatpush1.msra.mxu0 0.0
      %1640 = vmatprep.subr.mxu0 0.0
      %1641 = vmatpush1.msra.mxu0 0.0
      %1642 = vmatprep.subr.mxu0 0.0
      %1643 = vmatpush1.msra.mxu0 0.0
      %1644 = vmatprep.subr.mxu0 0.0
      %1645 = vmatpush1.msra.mxu0 0.0
      %1646 = vmatprep.subr.mxu0 0.0
      %1647 = vmatpush1.msra.mxu0 0.0
      %1648 = vmatprep.subr.mxu0 0.0
      %1649 = vmatpush1.msra.mxu0 0.0
      %1650 = vmatprep.subr.mxu0 0.0
      %1651 = vmatpush1.msra.mxu0 0.0
      %1652 = vmatprep.subr.mxu0 0.0
      %1653 = vmatpush1.msra.mxu0 0.0
      %1654 = vmatprep.subr.mxu0 0.0
      %1655 = vmatpush1.msra.mxu0 0.0
      %1656 = vmatprep.subr.mxu0 0.0
      %1657 = vmatpush1.msra.mxu0 0.0
      %1658 = vmatprep.subr.mxu0 0.0
      %1659 = vmatpush1.msra.mxu0 0.0
      %1660 = vmatprep.subr.mxu0 0.0
      %1661 = vmatpush1.msra.mxu0 0.0
      %1662 = vmatprep.subr.mxu0 0.0
      %1663 = vmatpush1.msra.mxu0 0.0
      %1664 = vmatprep.subr.mxu0 0.0
      %1665 = vmatpush1.msra.mxu0 0.0
      %1666 = vmatprep.subr.mxu0 0.0
      %1667 = vmatpush1.msra.mxu0 0.0
      %1668 = vmatprep.subr.mxu0 0.0
      %1669 = vmatpush1.msra.mxu0 0.0
      %1670 = vmatprep.mubr.f32.mxu0 0.0
      %1671 = vmatmul.mubr.f32.gmra.mrb[0].mxu0 %v1581
      %v1672 = vpop.f32.mrb[0].mxu0
      %v1673 = vadd.f32 %v1542, %v1672
      %v1674 = vpop.f32.mrb[0].mxu0
      %1675 = vmatprep.mubr.f32.mxu0 0.0
      %1676 = vmatmul.mubr.f32.gmra.mrb[0].mxu0 %v1584
      %v1677 = vpop.f32.mrb[0].mxu0
      %v1678 = vadd.f32 %v1547, %v1677
      %v1679 = vpop.f32.mrb[0].mxu0
      %1680 = vmatprep.mubr.f32.mxu0 0.0
      %1681 = vmatmul.mubr.f32.gmra.mrb[0].mxu0 %v1587
      %v1682 = vpop.f32.mrb[0].mxu0
      %v1683 = vadd.f32 %v1552, %v1682
      %v1684 = vpop.f32.mrb[0].mxu0
      %1685 = vmatprep.mubr.f32.mxu0 0.0
      %1686 = vmatmul.mubr.f32.gmra.mrb[0].mxu0 %v1590
      %v1687 = vpop.f32.mrb[0].mxu0
      %v1688 = vadd.f32 %v1557, %v1687
      %v1689 = vpop.f32.mrb[0].mxu0
      %1690 = vmatprep.mubr.f32.mxu0 0.0
      %1691 = vmatmul.mubr.f32.gmra.mrb[0].mxu0 %v1593
      %v1692 = vpop.f32.mrb[0].mxu0
      %v1693 = vadd.f32 %v1562, %v1692
      %v1694 = vpop.f32.mrb[0].mxu0
      %1695 = vmatprep.mubr.f32.mxu0 0.0
      %1696 = vmatmul.mubr.f32.gmra.mrb[0].mxu0 %v1596
      %v1697 = vpop.f32.mrb[0].mxu0
      %v1698 = vadd.f32 %v1567, %v1697
      %v1699 = vpop.f32.mrb[0].mxu0
      %1700 = vmatprep.mubr.f32.mxu0 0.0
      %1701 = vmatmul.mubr.f32.gmra.mrb[0].mxu0 %v1599
      %v1702 = vpop.f32.mrb[0].mxu0
      %v1703 = vadd.f32 %v1572, %v1702
      %v1704 = vpop.f32.mrb[0].mxu0
      %1705 = vmatprep.mubr.f32.mxu0 0.0
      %1706 = vmatmul.mubr.f32.gmra.mrb[0].mxu0 %v1602
      %v1707 = vpop.f32.mrb[0].mxu0
      %v1708 = vadd.f32 %v1577, %v1707
      %v1709 = vpop.f32.mrb[0].mxu0
      %1710 = vdwg.mxu0
      %1711 = vrot.lane.b32.xlu0 %v513, 120
      %v1712 = vpop.permute.xlu0 %1711
      %1713 = vrot.lane.b32.xlu0 %v518, 120
      %v1714 = vpop.permute.xlu0 %1713
      %1715 = vrot.lane.b32.xlu0 %v523, 120
      %v1716 = vpop.permute.xlu0 %1715
      %1717 = vrot.lane.b32.xlu0 %v528, 120
      %v1718 = vpop.permute.xlu0 %1717
      %1719 = vrot.lane.b32.xlu0 %v533, 120
      %v1720 = vpop.permute.xlu0 %1719
      %1721 = vrot.lane.b32.xlu0 %v538, 120
      %v1722 = vpop.permute.xlu0 %1721
      %1723 = vrot.lane.b32.xlu0 %v543, 120
      %v1724 = vpop.permute.xlu0 %1723
      %1725 = vrot.lane.b32.xlu0 %v548, 120
      %v1726 = vpop.permute.xlu0 %1725
      %1727 = vrot.lane.b32.xlu0 %v513, 104
      %v1728 = vpop.permute.xlu0 %1727
      %1729 = vrot.lane.b32.xlu0 %v518, 104
      %v1730 = vpop.permute.xlu0 %1729
      %1731 = vrot.lane.b32.xlu0 %v523, 104
      %v1732 = vpop.permute.xlu0 %1731
      %1733 = vrot.lane.b32.xlu0 %v528, 104
      %v1734 = vpop.permute.xlu0 %1733
      %1735 = vrot.lane.b32.xlu0 %v533, 104
      %v1736 = vpop.permute.xlu0 %1735
      %1737 = vrot.lane.b32.xlu0 %v538, 104
      %v1738 = vpop.permute.xlu0 %1737
      %1739 = vrot.lane.b32.xlu0 %v543, 104
      %v1740 = vpop.permute.xlu0 %1739
      %1741 = vrot.lane.b32.xlu0 %v548, 104
      %v1742 = vpop.permute.xlu0 %1741
      %v1743 = vsel %vm640, %v1712, 0
      %v1745 = vsel %vm640, %v1714, 0
      %v1747 = vsel %vm640, %v1716, 0
      %v1749 = vsel %vm640, %v1718, 0
      %v1751 = vsel %vm640, %v1720, 0
      %v1753 = vsel %vm640, %v1722, 0
      %v1755 = vsel %vm640, %v1724, 0
      %v1757 = vsel %vm640, %v1726, 0
      %v1759 = vsel %vm640, %v1728, 0
      %v1761 = vsel %vm640, %v1730, 0
      %v1763 = vsel %vm640, %v1732, 0
      %v1765 = vsel %vm640, %v1734, 0
      %v1767 = vsel %vm640, %v1736, 0
      %v1769 = vsel %vm640, %v1738, 0
      %v1771 = vsel %vm640, %v1740, 0
      %v1773 = vsel %vm640, %v1742, 0
      %1775 = vmatprep.subr.mxu0 0.0
      %1776 = vmatpush1.xpose.msra.mxu0 %v1759
      %1777 = vmatprep.subr.mxu0 0.0
      %1778 = vmatpush1.xpose.msra.mxu0 %v1761
      %1779 = vmatprep.subr.mxu0 0.0
      %1780 = vmatpush1.xpose.msra.mxu0 %v1763
      %1781 = vmatprep.subr.mxu0 0.0
      %1782 = vmatpush1.xpose.msra.mxu0 %v1765
      %1783 = vmatprep.subr.mxu0 0.0
      %1784 = vmatpush1.xpose.msra.mxu0 %v1767
      %1785 = vmatprep.subr.mxu0 0.0
      %1786 = vmatpush1.xpose.msra.mxu0 %v1769
      %1787 = vmatprep.subr.mxu0 0.0
      %1788 = vmatpush1.xpose.msra.mxu0 %v1771
      %1789 = vmatprep.subr.mxu0 0.0
      %1790 = vmatpush1.xpose.msra.mxu0 %v1773
      %1791 = vmatprep.subr.mxu0 0.0
      %1792 = vmatpush1.xpose.msra.mxu0 0.0
      %1793 = vmatprep.subr.mxu0 0.0
      %1794 = vmatpush1.xpose.msra.mxu0 0.0
      %1795 = vmatprep.subr.mxu0 0.0
      %1796 = vmatpush1.xpose.msra.mxu0 0.0
      %1797 = vmatprep.subr.mxu0 0.0
      %1798 = vmatpush1.xpose.msra.mxu0 0.0
      %1799 = vmatprep.subr.mxu0 0.0
      %1800 = vmatpush1.xpose.msra.mxu0 0.0
      %1801 = vmatprep.subr.mxu0 0.0
      %1802 = vmatpush1.xpose.msra.mxu0 0.0
      %1803 = vmatprep.subr.mxu0 0.0
      %1804 = vmatpush1.xpose.msra.mxu0 0.0
      %1805 = vmatprep.subr.mxu0 0.0
      %1806 = vmatpush1.xpose.msra.mxu0 0.0
      %1807 = vmatprep.subr.mxu0 0.0
      %1808 = vmatpush1.xpose.msra.mxu0 0.0
      %1809 = vmatprep.subr.mxu0 0.0
      %1810 = vmatpush1.xpose.msra.mxu0 0.0
      %1811 = vmatprep.subr.mxu0 0.0
      %1812 = vmatpush1.xpose.msra.mxu0 0.0
      %1813 = vmatprep.subr.mxu0 0.0
      %1814 = vmatpush1.xpose.msra.mxu0 0.0
      %1815 = vmatprep.subr.mxu0 0.0
      %1816 = vmatpush1.xpose.msra.mxu0 0.0
      %1817 = vmatprep.subr.mxu0 0.0
      %1818 = vmatpush1.xpose.msra.mxu0 0.0
      %1819 = vmatprep.subr.mxu0 0.0
      %1820 = vmatpush1.xpose.msra.mxu0 0.0
      %1821 = vmatprep.subr.mxu0 0.0
      %1822 = vmatpush1.xpose.msra.mxu0 0.0
      %1823 = vmatprep.subr.mxu0 0.0
      %1824 = vmatpush1.xpose.msra.mxu0 0.0
      %1825 = vmatprep.subr.mxu0 0.0
      %1826 = vmatpush1.xpose.msra.mxu0 0.0
      %1827 = vmatprep.subr.mxu0 0.0
      %1828 = vmatpush1.xpose.msra.mxu0 0.0
      %1829 = vmatprep.subr.mxu0 0.0
      %1830 = vmatpush1.xpose.msra.mxu0 0.0
      %1831 = vmatprep.subr.mxu0 0.0
      %1832 = vmatpush1.xpose.msra.mxu0 0.0
      %1833 = vmatprep.subr.mxu0 0.0
      %1834 = vmatpush1.xpose.msra.mxu0 0.0
      %1835 = vmatprep.subr.mxu0 0.0
      %1836 = vmatpush1.xpose.msra.mxu0 0.0
      %1837 = vmatprep.subr.mxu0 0.0
      %1838 = vmatpush1.xpose.msra.mxu0 0.0
      %1839 = vmatprep.mubr.f32.mxu0 0.0
      %1840 = vmatmul.mubr.f32.gmra.mrb[0].mxu0 %v1743
      %v1841 = vpop.f32.mrb[0].mxu0
      %v1842 = vadd.f32 0.0, %v1841
      %v1843 = vpop.f32.mrb[0].mxu0
      %1844 = vmatprep.mubr.f32.mxu0 0.0
      %1845 = vmatmul.mubr.f32.gmra.mrb[0].mxu0 %v1745
      %v1846 = vpop.f32.mrb[0].mxu0
      %v1847 = vadd.f32 0.0, %v1846
      %v1848 = vpop.f32.mrb[0].mxu0
      %1849 = vmatprep.mubr.f32.mxu0 0.0
      %1850 = vmatmul.mubr.f32.gmra.mrb[0].mxu0 %v1747
      %v1851 = vpop.f32.mrb[0].mxu0
      %v1852 = vadd.f32 0.0, %v1851
      %v1853 = vpop.f32.mrb[0].mxu0
      %1854 = vmatprep.mubr.f32.mxu0 0.0
      %1855 = vmatmul.mubr.f32.gmra.mrb[0].mxu0 %v1749
      %v1856 = vpop.f32.mrb[0].mxu0
      %v1857 = vadd.f32 0.0, %v1856
      %v1858 = vpop.f32.mrb[0].mxu0
      %1859 = vmatprep.mubr.f32.mxu0 0.0
      %1860 = vmatmul.mubr.f32.gmra.mrb[0].mxu0 %v1751
      %v1861 = vpop.f32.mrb[0].mxu0
      %v1862 = vadd.f32 0.0, %v1861
      %v1863 = vpop.f32.mrb[0].mxu0
      %1864 = vmatprep.mubr.f32.mxu0 0.0
      %1865 = vmatmul.mubr.f32.gmra.mrb[0].mxu0 %v1753
      %v1866 = vpop.f32.mrb[0].mxu0
      %v1867 = vadd.f32 0.0, %v1866
      %v1868 = vpop.f32.mrb[0].mxu0
      %1869 = vmatprep.mubr.f32.mxu0 0.0
      %1870 = vmatmul.mubr.f32.gmra.mrb[0].mxu0 %v1755
      %v1871 = vpop.f32.mrb[0].mxu0
      %v1872 = vadd.f32 0.0, %v1871
      %v1873 = vpop.f32.mrb[0].mxu0
      %1874 = vmatprep.mubr.f32.mxu0 0.0
      %1875 = vmatmul.mubr.f32.gmra.mrb[0].mxu0 %v1757
      %v1876 = vpop.f32.mrb[0].mxu0
      %v1877 = vadd.f32 0.0, %v1876
      %v1878 = vpop.f32.mrb[0].mxu0
      %1879 = vdwg.mxu0
      %v1880 = vsel %vm606, %v1842, -1e+30
      %v1881 = vsel %vm607, %v1847, -1e+30
      %v1882 = vsel %vm608, %v1852, -1e+30
      %v1883 = vsel %vm609, %v1857, -1e+30
      %v1884 = vsel %vm610, %v1862, -1e+30
      %v1885 = vsel %vm611, %v1867, -1e+30
      %v1886 = vsel %vm612, %v1872, -1e+30
      %v1887 = vsel %vm613, %v1877, -1e+30
      %v1888 = vsel %vm786, %v1880, -inf
      %1889 = vmax.xlane.f32.xlu0 %v1888
      %v1890 = vpop.xlane.xlu0 %1889
      %v1891 = vsel %vm786, %v1881, -inf
      %1892 = vmax.xlane.f32.xlu0 %v1891
      %v1893 = vpop.xlane.xlu0 %1892
      %v1894 = vsel %vm786, %v1882, -inf
      %1895 = vmax.xlane.f32.xlu0 %v1894
      %v1896 = vpop.xlane.xlu0 %1895
      %v1897 = vsel %vm786, %v1883, -inf
      %1898 = vmax.xlane.f32.xlu0 %v1897
      %v1899 = vpop.xlane.xlu0 %1898
      %v1900 = vsel %vm786, %v1884, -inf
      %1901 = vmax.xlane.f32.xlu0 %v1900
      %v1902 = vpop.xlane.xlu0 %1901
      %v1903 = vsel %vm786, %v1885, -inf
      %1904 = vmax.xlane.f32.xlu0 %v1903
      %v1905 = vpop.xlane.xlu0 %1904
      %v1906 = vsel %vm786, %v1886, -inf
      %1907 = vmax.xlane.f32.xlu0 %v1906
      %v1908 = vpop.xlane.xlu0 %1907
      %v1909 = vsel %vm786, %v1887, -inf
      %1910 = vmax.xlane.f32.xlu0 %v1909
      %v1911 = vpop.xlane.xlu0 %1910
      %v1912 = vsub.f32 %v1880, %v1890
      %v1913 = vsub.f32 %v1881, %v1893
      %v1914 = vsub.f32 %v1882, %v1896
      %v1915 = vsub.f32 %v1883, %v1899
      %v1916 = vsub.f32 %v1884, %v1902
      %v1917 = vsub.f32 %v1885, %v1905
      %v1918 = vsub.f32 %v1886, %v1908
      %v1919 = vsub.f32 %v1887, %v1911
      %v1920 = vmul.f32 %v1912, 1.442695
      %v1921 = vpow.pop %v1920
      %v1922 = vmul.f32 %v1913, 1.442695
      %v1923 = vpow.pop %v1922
      %v1924 = vmul.f32 %v1914, 1.442695
      %v1925 = vpow.pop %v1924
      %v1926 = vmul.f32 %v1915, 1.442695
      %v1927 = vpow.pop %v1926
      %v1928 = vmul.f32 %v1916, 1.442695
      %v1929 = vpow.pop %v1928
      %v1930 = vmul.f32 %v1917, 1.442695
      %v1931 = vpow.pop %v1930
      %v1932 = vmul.f32 %v1918, 1.442695
      %v1933 = vpow.pop %v1932
      %v1934 = vmul.f32 %v1919, 1.442695
      %v1935 = vpow.pop %v1934
      %v1936 = vsel %vm786, %v1921, 0.0
      %1937 = vadd.xlane.f32.xlu0 %v1936
      %v1938 = vpop.xlane.xlu0 %1937
      %v1939 = vsel %vm786, %v1923, 0.0
      %1940 = vadd.xlane.f32.xlu0 %v1939
      %v1941 = vpop.xlane.xlu0 %1940
      %v1942 = vsel %vm786, %v1925, 0.0
      %1943 = vadd.xlane.f32.xlu0 %v1942
      %v1944 = vpop.xlane.xlu0 %1943
      %v1945 = vsel %vm786, %v1927, 0.0
      %1946 = vadd.xlane.f32.xlu0 %v1945
      %v1947 = vpop.xlane.xlu0 %1946
      %v1948 = vsel %vm786, %v1929, 0.0
      %1949 = vadd.xlane.f32.xlu0 %v1948
      %v1950 = vpop.xlane.xlu0 %1949
      %v1951 = vsel %vm786, %v1931, 0.0
      %1952 = vadd.xlane.f32.xlu0 %v1951
      %v1953 = vpop.xlane.xlu0 %1952
      %v1954 = vsel %vm786, %v1933, 0.0
      %1955 = vadd.xlane.f32.xlu0 %v1954
      %v1956 = vpop.xlane.xlu0 %1955
      %v1957 = vsel %vm786, %v1935, 0.0
      %1958 = vadd.xlane.f32.xlu0 %v1957
      %v1959 = vpop.xlane.xlu0 %1958
      %v1960 = vrcp.pop %v1938
      %v1961 = vrcp.pop %v1941
      %v1962 = vrcp.pop %v1944
      %v1963 = vrcp.pop %v1947
      %v1964 = vrcp.pop %v1950
      %v1965 = vrcp.pop %v1953
      %v1966 = vrcp.pop %v1956
      %v1967 = vrcp.pop %v1959
      %v1968 = vmul.f32 %v1921, %v1960
      %v1969 = vmul.f32 %v1923, %v1961
      %v1970 = vmul.f32 %v1925, %v1962
      %v1971 = vmul.f32 %v1927, %v1963
      %v1972 = vmul.f32 %v1929, %v1964
      %v1973 = vmul.f32 %v1931, %v1965
      %v1974 = vmul.f32 %v1933, %v1966
      %v1975 = vmul.f32 %v1935, %v1967
      %1976 = vrot.lane.b32.xlu0 %v513, 88
      %v1977 = vpop.permute.xlu0 %1976
      %1978 = vrot.lane.b32.xlu0 %v518, 88
      %v1979 = vpop.permute.xlu0 %1978
      %1980 = vrot.lane.b32.xlu0 %v523, 88
      %v1981 = vpop.permute.xlu0 %1980
      %1982 = vrot.lane.b32.xlu0 %v528, 88
      %v1983 = vpop.permute.xlu0 %1982
      %1984 = vrot.lane.b32.xlu0 %v533, 88
      %v1985 = vpop.permute.xlu0 %1984
      %1986 = vrot.lane.b32.xlu0 %v538, 88
      %v1987 = vpop.permute.xlu0 %1986
      %1988 = vrot.lane.b32.xlu0 %v543, 88
      %v1989 = vpop.permute.xlu0 %1988
      %1990 = vrot.lane.b32.xlu0 %v548, 88
      %v1991 = vpop.permute.xlu0 %1990
      %v2001 = vsel %vm786, %v1968, 0
      %v2004 = vsel %vm786, %v1969, 0
      %v2007 = vsel %vm786, %v1970, 0
      %v2010 = vsel %vm786, %v1971, 0
      %v2013 = vsel %vm786, %v1972, 0
      %v2016 = vsel %vm786, %v1973, 0
      %v2019 = vsel %vm786, %v1974, 0
      %v2022 = vsel %vm786, %v1975, 0
      %2024 = vmatprep.subr.mxu0 0.0
      %2025 = vmatpush1.msra.mxu0 %v1977
      %2026 = vmatprep.subr.mxu0 0.0
      %2027 = vmatpush1.msra.mxu0 %v1979
      %2028 = vmatprep.subr.mxu0 0.0
      %2029 = vmatpush1.msra.mxu0 %v1981
      %2030 = vmatprep.subr.mxu0 0.0
      %2031 = vmatpush1.msra.mxu0 %v1983
      %2032 = vmatprep.subr.mxu0 0.0
      %2033 = vmatpush1.msra.mxu0 %v1985
      %2034 = vmatprep.subr.mxu0 0.0
      %2035 = vmatpush1.msra.mxu0 %v1987
      %2036 = vmatprep.subr.mxu0 0.0
      %2037 = vmatpush1.msra.mxu0 %v1989
      %2038 = vmatprep.subr.mxu0 0.0
      %2039 = vmatpush1.msra.mxu0 %v1991
      %2040 = vmatprep.subr.mxu0 0.0
      %2041 = vmatpush1.msra.mxu0 0.0
      %2042 = vmatprep.subr.mxu0 0.0
      %2043 = vmatpush1.msra.mxu0 0.0
      %2044 = vmatprep.subr.mxu0 0.0
      %2045 = vmatpush1.msra.mxu0 0.0
      %2046 = vmatprep.subr.mxu0 0.0
      %2047 = vmatpush1.msra.mxu0 0.0
      %2048 = vmatprep.subr.mxu0 0.0
      %2049 = vmatpush1.msra.mxu0 0.0
      %2050 = vmatprep.subr.mxu0 0.0
      %2051 = vmatpush1.msra.mxu0 0.0
      %2052 = vmatprep.subr.mxu0 0.0
      %2053 = vmatpush1.msra.mxu0 0.0
      %2054 = vmatprep.subr.mxu0 0.0
      %2055 = vmatpush1.msra.mxu0 0.0
      %2056 = vmatprep.subr.mxu0 0.0
      %2057 = vmatpush1.msra.mxu0 0.0
      %2058 = vmatprep.subr.mxu0 0.0
      %2059 = vmatpush1.msra.mxu0 0.0
      %2060 = vmatprep.subr.mxu0 0.0
      %2061 = vmatpush1.msra.mxu0 0.0
      %2062 = vmatprep.subr.mxu0 0.0
      %2063 = vmatpush1.msra.mxu0 0.0
      %2064 = vmatprep.subr.mxu0 0.0
      %2065 = vmatpush1.msra.mxu0 0.0
      %2066 = vmatprep.subr.mxu0 0.0
      %2067 = vmatpush1.msra.mxu0 0.0
      %2068 = vmatprep.subr.mxu0 0.0
      %2069 = vmatpush1.msra.mxu0 0.0
      %2070 = vmatprep.subr.mxu0 0.0
      %2071 = vmatpush1.msra.mxu0 0.0
      %2072 = vmatprep.subr.mxu0 0.0
      %2073 = vmatpush1.msra.mxu0 0.0
      %2074 = vmatprep.subr.mxu0 0.0
      %2075 = vmatpush1.msra.mxu0 0.0
      %2076 = vmatprep.subr.mxu0 0.0
      %2077 = vmatpush1.msra.mxu0 0.0
      %2078 = vmatprep.subr.mxu0 0.0
      %2079 = vmatpush1.msra.mxu0 0.0
      %2080 = vmatprep.subr.mxu0 0.0
      %2081 = vmatpush1.msra.mxu0 0.0
      %2082 = vmatprep.subr.mxu0 0.0
      %2083 = vmatpush1.msra.mxu0 0.0
      %2084 = vmatprep.subr.mxu0 0.0
      %2085 = vmatpush1.msra.mxu0 0.0
      %2086 = vmatprep.subr.mxu0 0.0
      %2087 = vmatpush1.msra.mxu0 0.0
      %2088 = vmatprep.mubr.f32.mxu0 0.0
      %2089 = vmatmul.mubr.f32.gmra.mrb[0].mxu0 %v2001
      %v2090 = vpop.f32.mrb[0].mxu0
      %v2091 = vadd.f32 0.0, %v2090
      %v2092 = vpop.f32.mrb[0].mxu0
      %2093 = vmatprep.mubr.f32.mxu0 0.0
      %2094 = vmatmul.mubr.f32.gmra.mrb[0].mxu0 %v2004
      %v2095 = vpop.f32.mrb[0].mxu0
      %v2096 = vadd.f32 0.0, %v2095
      %v2097 = vpop.f32.mrb[0].mxu0
      %2098 = vmatprep.mubr.f32.mxu0 0.0
      %2099 = vmatmul.mubr.f32.gmra.mrb[0].mxu0 %v2007
      %v2100 = vpop.f32.mrb[0].mxu0
      %v2101 = vadd.f32 0.0, %v2100
      %v2102 = vpop.f32.mrb[0].mxu0
      %2103 = vmatprep.mubr.f32.mxu0 0.0
      %2104 = vmatmul.mubr.f32.gmra.mrb[0].mxu0 %v2010
      %v2105 = vpop.f32.mrb[0].mxu0
      %v2106 = vadd.f32 0.0, %v2105
      %v2107 = vpop.f32.mrb[0].mxu0
      %2108 = vmatprep.mubr.f32.mxu0 0.0
      %2109 = vmatmul.mubr.f32.gmra.mrb[0].mxu0 %v2013
      %v2110 = vpop.f32.mrb[0].mxu0
      %v2111 = vadd.f32 0.0, %v2110
      %v2112 = vpop.f32.mrb[0].mxu0
      %2113 = vmatprep.mubr.f32.mxu0 0.0
      %2114 = vmatmul.mubr.f32.gmra.mrb[0].mxu0 %v2016
      %v2115 = vpop.f32.mrb[0].mxu0
      %v2116 = vadd.f32 0.0, %v2115
      %v2117 = vpop.f32.mrb[0].mxu0
      %2118 = vmatprep.mubr.f32.mxu0 0.0
      %2119 = vmatmul.mubr.f32.gmra.mrb[0].mxu0 %v2019
      %v2120 = vpop.f32.mrb[0].mxu0
      %v2121 = vadd.f32 0.0, %v2120
      %v2122 = vpop.f32.mrb[0].mxu0
      %2123 = vmatprep.mubr.f32.mxu0 0.0
      %2124 = vmatmul.mubr.f32.gmra.mrb[0].mxu0 %v2022
      %v2125 = vpop.f32.mrb[0].mxu0
      %v2126 = vadd.f32 0.0, %v2125
      %v2127 = vpop.f32.mrb[0].mxu0
      %2128 = vdwg.mxu0
      %v2130 = vsel %vm640, %v2091, 0
      %v2133 = vsel %vm640, %v2096, 0
      %v2136 = vsel %vm640, %v2101, 0
      %v2139 = vsel %vm640, %v2106, 0
      %v2142 = vsel %vm640, %v2111, 0
      %v2145 = vsel %vm640, %v2116, 0
      %v2148 = vsel %vm640, %v2121, 0
      %v2151 = vsel %vm640, %v2126, 0
      %v2154 = vsel %vm1472, %v615, 0
      %2156 = vmatprep.subr.mxu0 0.0
      %2157 = vmatpush1.msra.mxu0 %v2154
      %2158 = vmatprep.subr.mxu0 0.0
      %2159 = vmatpush1.msra.mxu0 0.0
      %2160 = vmatprep.subr.mxu0 0.0
      %2161 = vmatpush1.msra.mxu0 0.0
      %2162 = vmatprep.subr.mxu0 0.0
      %2163 = vmatpush1.msra.mxu0 0.0
      %2164 = vmatprep.subr.mxu0 0.0
      %2165 = vmatpush1.msra.mxu0 0.0
      %2166 = vmatprep.subr.mxu0 0.0
      %2167 = vmatpush1.msra.mxu0 0.0
      %2168 = vmatprep.subr.mxu0 0.0
      %2169 = vmatpush1.msra.mxu0 0.0
      %2170 = vmatprep.subr.mxu0 0.0
      %2171 = vmatpush1.msra.mxu0 0.0
      %2172 = vmatprep.subr.mxu0 0.0
      %2173 = vmatpush1.msra.mxu0 0.0
      %2174 = vmatprep.subr.mxu0 0.0
      %2175 = vmatpush1.msra.mxu0 0.0
      %2176 = vmatprep.subr.mxu0 0.0
      %2177 = vmatpush1.msra.mxu0 0.0
      %2178 = vmatprep.subr.mxu0 0.0
      %2179 = vmatpush1.msra.mxu0 0.0
      %2180 = vmatprep.subr.mxu0 0.0
      %2181 = vmatpush1.msra.mxu0 0.0
      %2182 = vmatprep.subr.mxu0 0.0
      %2183 = vmatpush1.msra.mxu0 0.0
      %2184 = vmatprep.subr.mxu0 0.0
      %2185 = vmatpush1.msra.mxu0 0.0
      %2186 = vmatprep.subr.mxu0 0.0
      %2187 = vmatpush1.msra.mxu0 0.0
      %2188 = vmatprep.subr.mxu0 0.0
      %2189 = vmatpush1.msra.mxu0 0.0
      %2190 = vmatprep.subr.mxu0 0.0
      %2191 = vmatpush1.msra.mxu0 0.0
      %2192 = vmatprep.subr.mxu0 0.0
      %2193 = vmatpush1.msra.mxu0 0.0
      %2194 = vmatprep.subr.mxu0 0.0
      %2195 = vmatpush1.msra.mxu0 0.0
      %2196 = vmatprep.subr.mxu0 0.0
      %2197 = vmatpush1.msra.mxu0 0.0
      %2198 = vmatprep.subr.mxu0 0.0
      %2199 = vmatpush1.msra.mxu0 0.0
      %2200 = vmatprep.subr.mxu0 0.0
      %2201 = vmatpush1.msra.mxu0 0.0
      %2202 = vmatprep.subr.mxu0 0.0
      %2203 = vmatpush1.msra.mxu0 0.0
      %2204 = vmatprep.subr.mxu0 0.0
      %2205 = vmatpush1.msra.mxu0 0.0
      %2206 = vmatprep.subr.mxu0 0.0
      %2207 = vmatpush1.msra.mxu0 0.0
      %2208 = vmatprep.subr.mxu0 0.0
      %2209 = vmatpush1.msra.mxu0 0.0
      %2210 = vmatprep.subr.mxu0 0.0
      %2211 = vmatpush1.msra.mxu0 0.0
      %2212 = vmatprep.subr.mxu0 0.0
      %2213 = vmatpush1.msra.mxu0 0.0
      %2214 = vmatprep.subr.mxu0 0.0
      %2215 = vmatpush1.msra.mxu0 0.0
      %2216 = vmatprep.subr.mxu0 0.0
      %2217 = vmatpush1.msra.mxu0 0.0
      %2218 = vmatprep.subr.mxu0 0.0
      %2219 = vmatpush1.msra.mxu0 0.0
      %2220 = vmatprep.mubr.f32.mxu0 0.0
      %2221 = vmatmul.mubr.f32.gmra.mrb[0].mxu0 %v2130
      %v2222 = vpop.f32.mrb[0].mxu0
      %v2223 = vadd.f32 0.0, %v2222
      %v2224 = vpop.f32.mrb[0].mxu0
      %2225 = vmatprep.mubr.f32.mxu0 0.0
      %2226 = vmatmul.mubr.f32.gmra.mrb[0].mxu0 %v2133
      %v2227 = vpop.f32.mrb[0].mxu0
      %v2228 = vadd.f32 0.0, %v2227
      %v2229 = vpop.f32.mrb[0].mxu0
      %2230 = vmatprep.mubr.f32.mxu0 0.0
      %2231 = vmatmul.mubr.f32.gmra.mrb[0].mxu0 %v2136
      %v2232 = vpop.f32.mrb[0].mxu0
      %v2233 = vadd.f32 0.0, %v2232
      %v2234 = vpop.f32.mrb[0].mxu0
      %2235 = vmatprep.mubr.f32.mxu0 0.0
      %2236 = vmatmul.mubr.f32.gmra.mrb[0].mxu0 %v2139
      %v2237 = vpop.f32.mrb[0].mxu0
      %v2238 = vadd.f32 0.0, %v2237
      %v2239 = vpop.f32.mrb[0].mxu0
      %2240 = vmatprep.mubr.f32.mxu0 0.0
      %2241 = vmatmul.mubr.f32.gmra.mrb[0].mxu0 %v2142
      %v2242 = vpop.f32.mrb[0].mxu0
      %v2243 = vadd.f32 0.0, %v2242
      %v2244 = vpop.f32.mrb[0].mxu0
      %2245 = vmatprep.mubr.f32.mxu0 0.0
      %2246 = vmatmul.mubr.f32.gmra.mrb[0].mxu0 %v2145
      %v2247 = vpop.f32.mrb[0].mxu0
      %v2248 = vadd.f32 0.0, %v2247
      %v2249 = vpop.f32.mrb[0].mxu0
      %2250 = vmatprep.mubr.f32.mxu0 0.0
      %2251 = vmatmul.mubr.f32.gmra.mrb[0].mxu0 %v2148
      %v2252 = vpop.f32.mrb[0].mxu0
      %v2253 = vadd.f32 0.0, %v2252
      %v2254 = vpop.f32.mrb[0].mxu0
      %2255 = vmatprep.mubr.f32.mxu0 0.0
      %2256 = vmatmul.mubr.f32.gmra.mrb[0].mxu0 %v2151
      %v2257 = vpop.f32.mrb[0].mxu0
      %v2258 = vadd.f32 0.0, %v2257
      %v2259 = vpop.f32.mrb[0].mxu0
      %2260 = vdwg.mxu0
      %v2261 = vadd.f32 %v1673, %v2223
      %v2262 = vadd.f32 %v1678, %v2228
      %v2263 = vadd.f32 %v1683, %v2233
      %v2264 = vadd.f32 %v1688, %v2238
      %v2265 = vadd.f32 %v1693, %v2243
      %v2266 = vadd.f32 %v1698, %v2248
      %v2267 = vadd.f32 %v1703, %v2253
      %v2268 = vadd.f32 %v1708, %v2258
      %2269 = vrot.lane.b32.xlu0 %v513, 116
      %v2270 = vpop.permute.xlu0 %2269
      %2271 = vrot.lane.b32.xlu0 %v518, 116
      %v2272 = vpop.permute.xlu0 %2271
      %2273 = vrot.lane.b32.xlu0 %v523, 116
      %v2274 = vpop.permute.xlu0 %2273
      %2275 = vrot.lane.b32.xlu0 %v528, 116
      %v2276 = vpop.permute.xlu0 %2275
      %2277 = vrot.lane.b32.xlu0 %v533, 116
      %v2278 = vpop.permute.xlu0 %2277
      %2279 = vrot.lane.b32.xlu0 %v538, 116
      %v2280 = vpop.permute.xlu0 %2279
      %2281 = vrot.lane.b32.xlu0 %v543, 116
      %v2282 = vpop.permute.xlu0 %2281
      %2283 = vrot.lane.b32.xlu0 %v548, 116
      %v2284 = vpop.permute.xlu0 %2283
      %2285 = vrot.lane.b32.xlu0 %v513, 100
      %v2286 = vpop.permute.xlu0 %2285
      %2287 = vrot.lane.b32.xlu0 %v518, 100
      %v2288 = vpop.permute.xlu0 %2287
      %2289 = vrot.lane.b32.xlu0 %v523, 100
      %v2290 = vpop.permute.xlu0 %2289
      %2291 = vrot.lane.b32.xlu0 %v528, 100
      %v2292 = vpop.permute.xlu0 %2291
      %2293 = vrot.lane.b32.xlu0 %v533, 100
      %v2294 = vpop.permute.xlu0 %2293
      %2295 = vrot.lane.b32.xlu0 %v538, 100
      %v2296 = vpop.permute.xlu0 %2295
      %2297 = vrot.lane.b32.xlu0 %v543, 100
      %v2298 = vpop.permute.xlu0 %2297
      %2299 = vrot.lane.b32.xlu0 %v548, 100
      %v2300 = vpop.permute.xlu0 %2299
      %v2301 = vsel %vm640, %v2270, 0
      %v2303 = vsel %vm640, %v2272, 0
      %v2305 = vsel %vm640, %v2274, 0
      %v2307 = vsel %vm640, %v2276, 0
      %v2309 = vsel %vm640, %v2278, 0
      %v2311 = vsel %vm640, %v2280, 0
      %v2313 = vsel %vm640, %v2282, 0
      %v2315 = vsel %vm640, %v2284, 0
      %v2317 = vsel %vm640, %v2286, 0
      %v2319 = vsel %vm640, %v2288, 0
      %v2321 = vsel %vm640, %v2290, 0
      %v2323 = vsel %vm640, %v2292, 0
      %v2325 = vsel %vm640, %v2294, 0
      %v2327 = vsel %vm640, %v2296, 0
      %v2329 = vsel %vm640, %v2298, 0
      %v2331 = vsel %vm640, %v2300, 0
      %2333 = vmatprep.subr.mxu0 0.0
      %2334 = vmatpush1.xpose.msra.mxu0 %v2317
      %2335 = vmatprep.subr.mxu0 0.0
      %2336 = vmatpush1.xpose.msra.mxu0 %v2319
      %2337 = vmatprep.subr.mxu0 0.0
      %2338 = vmatpush1.xpose.msra.mxu0 %v2321
      %2339 = vmatprep.subr.mxu0 0.0
      %2340 = vmatpush1.xpose.msra.mxu0 %v2323
      %2341 = vmatprep.subr.mxu0 0.0
      %2342 = vmatpush1.xpose.msra.mxu0 %v2325
      %2343 = vmatprep.subr.mxu0 0.0
      %2344 = vmatpush1.xpose.msra.mxu0 %v2327
      %2345 = vmatprep.subr.mxu0 0.0
      %2346 = vmatpush1.xpose.msra.mxu0 %v2329
      %2347 = vmatprep.subr.mxu0 0.0
      %2348 = vmatpush1.xpose.msra.mxu0 %v2331
      %2349 = vmatprep.subr.mxu0 0.0
      %2350 = vmatpush1.xpose.msra.mxu0 0.0
      %2351 = vmatprep.subr.mxu0 0.0
      %2352 = vmatpush1.xpose.msra.mxu0 0.0
      %2353 = vmatprep.subr.mxu0 0.0
      %2354 = vmatpush1.xpose.msra.mxu0 0.0
      %2355 = vmatprep.subr.mxu0 0.0
      %2356 = vmatpush1.xpose.msra.mxu0 0.0
      %2357 = vmatprep.subr.mxu0 0.0
      %2358 = vmatpush1.xpose.msra.mxu0 0.0
      %2359 = vmatprep.subr.mxu0 0.0
      %2360 = vmatpush1.xpose.msra.mxu0 0.0
      %2361 = vmatprep.subr.mxu0 0.0
      %2362 = vmatpush1.xpose.msra.mxu0 0.0
      %2363 = vmatprep.subr.mxu0 0.0
      %2364 = vmatpush1.xpose.msra.mxu0 0.0
      %2365 = vmatprep.subr.mxu0 0.0
      %2366 = vmatpush1.xpose.msra.mxu0 0.0
      %2367 = vmatprep.subr.mxu0 0.0
      %2368 = vmatpush1.xpose.msra.mxu0 0.0
      %2369 = vmatprep.subr.mxu0 0.0
      %2370 = vmatpush1.xpose.msra.mxu0 0.0
      %2371 = vmatprep.subr.mxu0 0.0
      %2372 = vmatpush1.xpose.msra.mxu0 0.0
      %2373 = vmatprep.subr.mxu0 0.0
      %2374 = vmatpush1.xpose.msra.mxu0 0.0
      %2375 = vmatprep.subr.mxu0 0.0
      %2376 = vmatpush1.xpose.msra.mxu0 0.0
      %2377 = vmatprep.subr.mxu0 0.0
      %2378 = vmatpush1.xpose.msra.mxu0 0.0
      %2379 = vmatprep.subr.mxu0 0.0
      %2380 = vmatpush1.xpose.msra.mxu0 0.0
      %2381 = vmatprep.subr.mxu0 0.0
      %2382 = vmatpush1.xpose.msra.mxu0 0.0
      %2383 = vmatprep.subr.mxu0 0.0
      %2384 = vmatpush1.xpose.msra.mxu0 0.0
      %2385 = vmatprep.subr.mxu0 0.0
      %2386 = vmatpush1.xpose.msra.mxu0 0.0
      %2387 = vmatprep.subr.mxu0 0.0
      %2388 = vmatpush1.xpose.msra.mxu0 0.0
      %2389 = vmatprep.subr.mxu0 0.0
      %2390 = vmatpush1.xpose.msra.mxu0 0.0
      %2391 = vmatprep.subr.mxu0 0.0
      %2392 = vmatpush1.xpose.msra.mxu0 0.0
      %2393 = vmatprep.subr.mxu0 0.0
      %2394 = vmatpush1.xpose.msra.mxu0 0.0
      %2395 = vmatprep.subr.mxu0 0.0
      %2396 = vmatpush1.xpose.msra.mxu0 0.0
      %2397 = vmatprep.mubr.f32.mxu0 0.0
      %2398 = vmatmul.mubr.f32.gmra.mrb[0].mxu0 %v2301
      %v2399 = vpop.f32.mrb[0].mxu0
      %v2400 = vadd.f32 0.0, %v2399
      %v2401 = vpop.f32.mrb[0].mxu0
      %2402 = vmatprep.mubr.f32.mxu0 0.0
      %2403 = vmatmul.mubr.f32.gmra.mrb[0].mxu0 %v2303
      %v2404 = vpop.f32.mrb[0].mxu0
      %v2405 = vadd.f32 0.0, %v2404
      %v2406 = vpop.f32.mrb[0].mxu0
      %2407 = vmatprep.mubr.f32.mxu0 0.0
      %2408 = vmatmul.mubr.f32.gmra.mrb[0].mxu0 %v2305
      %v2409 = vpop.f32.mrb[0].mxu0
      %v2410 = vadd.f32 0.0, %v2409
      %v2411 = vpop.f32.mrb[0].mxu0
      %2412 = vmatprep.mubr.f32.mxu0 0.0
      %2413 = vmatmul.mubr.f32.gmra.mrb[0].mxu0 %v2307
      %v2414 = vpop.f32.mrb[0].mxu0
      %v2415 = vadd.f32 0.0, %v2414
      %v2416 = vpop.f32.mrb[0].mxu0
      %2417 = vmatprep.mubr.f32.mxu0 0.0
      %2418 = vmatmul.mubr.f32.gmra.mrb[0].mxu0 %v2309
      %v2419 = vpop.f32.mrb[0].mxu0
      %v2420 = vadd.f32 0.0, %v2419
      %v2421 = vpop.f32.mrb[0].mxu0
      %2422 = vmatprep.mubr.f32.mxu0 0.0
      %2423 = vmatmul.mubr.f32.gmra.mrb[0].mxu0 %v2311
      %v2424 = vpop.f32.mrb[0].mxu0
      %v2425 = vadd.f32 0.0, %v2424
      %v2426 = vpop.f32.mrb[0].mxu0
      %2427 = vmatprep.mubr.f32.mxu0 0.0
      %2428 = vmatmul.mubr.f32.gmra.mrb[0].mxu0 %v2313
      %v2429 = vpop.f32.mrb[0].mxu0
      %v2430 = vadd.f32 0.0, %v2429
      %v2431 = vpop.f32.mrb[0].mxu0
      %2432 = vmatprep.mubr.f32.mxu0 0.0
      %2433 = vmatmul.mubr.f32.gmra.mrb[0].mxu0 %v2315
      %v2434 = vpop.f32.mrb[0].mxu0
      %v2435 = vadd.f32 0.0, %v2434
      %v2436 = vpop.f32.mrb[0].mxu0
      %2437 = vdwg.mxu0
      %v2438 = vsel %vm606, %v2400, -1e+30
      %v2439 = vsel %vm607, %v2405, -1e+30
      %v2440 = vsel %vm608, %v2410, -1e+30
      %v2441 = vsel %vm609, %v2415, -1e+30
      %v2442 = vsel %vm610, %v2420, -1e+30
      %v2443 = vsel %vm611, %v2425, -1e+30
      %v2444 = vsel %vm612, %v2430, -1e+30
      %v2445 = vsel %vm613, %v2435, -1e+30
      %v2446 = vsel %vm786, %v2438, -inf
      %2447 = vmax.xlane.f32.xlu0 %v2446
      %v2448 = vpop.xlane.xlu0 %2447
      %v2449 = vsel %vm786, %v2439, -inf
      %2450 = vmax.xlane.f32.xlu0 %v2449
      %v2451 = vpop.xlane.xlu0 %2450
      %v2452 = vsel %vm786, %v2440, -inf
      %2453 = vmax.xlane.f32.xlu0 %v2452
      %v2454 = vpop.xlane.xlu0 %2453
      %v2455 = vsel %vm786, %v2441, -inf
      %2456 = vmax.xlane.f32.xlu0 %v2455
      %v2457 = vpop.xlane.xlu0 %2456
      %v2458 = vsel %vm786, %v2442, -inf
      %2459 = vmax.xlane.f32.xlu0 %v2458
      %v2460 = vpop.xlane.xlu0 %2459
      %v2461 = vsel %vm786, %v2443, -inf
      %2462 = vmax.xlane.f32.xlu0 %v2461
      %v2463 = vpop.xlane.xlu0 %2462
      %v2464 = vsel %vm786, %v2444, -inf
      %2465 = vmax.xlane.f32.xlu0 %v2464
      %v2466 = vpop.xlane.xlu0 %2465
      %v2467 = vsel %vm786, %v2445, -inf
      %2468 = vmax.xlane.f32.xlu0 %v2467
      %v2469 = vpop.xlane.xlu0 %2468
      %v2470 = vsub.f32 %v2438, %v2448
      %v2471 = vsub.f32 %v2439, %v2451
      %v2472 = vsub.f32 %v2440, %v2454
      %v2473 = vsub.f32 %v2441, %v2457
      %v2474 = vsub.f32 %v2442, %v2460
      %v2475 = vsub.f32 %v2443, %v2463
      %v2476 = vsub.f32 %v2444, %v2466
      %v2477 = vsub.f32 %v2445, %v2469
      %v2478 = vmul.f32 %v2470, 1.442695
      %v2479 = vpow.pop %v2478
      %v2480 = vmul.f32 %v2471, 1.442695
      %v2481 = vpow.pop %v2480
      %v2482 = vmul.f32 %v2472, 1.442695
      %v2483 = vpow.pop %v2482
      %v2484 = vmul.f32 %v2473, 1.442695
      %v2485 = vpow.pop %v2484
      %v2486 = vmul.f32 %v2474, 1.442695
      %v2487 = vpow.pop %v2486
      %v2488 = vmul.f32 %v2475, 1.442695
      %v2489 = vpow.pop %v2488
      %v2490 = vmul.f32 %v2476, 1.442695
      %v2491 = vpow.pop %v2490
      %v2492 = vmul.f32 %v2477, 1.442695
      %v2493 = vpow.pop %v2492
      %v2494 = vsel %vm786, %v2479, 0.0
      %2495 = vadd.xlane.f32.xlu0 %v2494
      %v2496 = vpop.xlane.xlu0 %2495
      %v2497 = vsel %vm786, %v2481, 0.0
      %2498 = vadd.xlane.f32.xlu0 %v2497
      %v2499 = vpop.xlane.xlu0 %2498
      %v2500 = vsel %vm786, %v2483, 0.0
      %2501 = vadd.xlane.f32.xlu0 %v2500
      %v2502 = vpop.xlane.xlu0 %2501
      %v2503 = vsel %vm786, %v2485, 0.0
      %2504 = vadd.xlane.f32.xlu0 %v2503
      %v2505 = vpop.xlane.xlu0 %2504
      %v2506 = vsel %vm786, %v2487, 0.0
      %2507 = vadd.xlane.f32.xlu0 %v2506
      %v2508 = vpop.xlane.xlu0 %2507
      %v2509 = vsel %vm786, %v2489, 0.0
      %2510 = vadd.xlane.f32.xlu0 %v2509
      %v2511 = vpop.xlane.xlu0 %2510
      %v2512 = vsel %vm786, %v2491, 0.0
      %2513 = vadd.xlane.f32.xlu0 %v2512
      %v2514 = vpop.xlane.xlu0 %2513
      %v2515 = vsel %vm786, %v2493, 0.0
      %2516 = vadd.xlane.f32.xlu0 %v2515
      %v2517 = vpop.xlane.xlu0 %2516
      %v2518 = vrcp.pop %v2496
      %v2519 = vrcp.pop %v2499
      %v2520 = vrcp.pop %v2502
      %v2521 = vrcp.pop %v2505
      %v2522 = vrcp.pop %v2508
      %v2523 = vrcp.pop %v2511
      %v2524 = vrcp.pop %v2514
      %v2525 = vrcp.pop %v2517
      %v2526 = vmul.f32 %v2479, %v2518
      %v2527 = vmul.f32 %v2481, %v2519
      %v2528 = vmul.f32 %v2483, %v2520
      %v2529 = vmul.f32 %v2485, %v2521
      %v2530 = vmul.f32 %v2487, %v2522
      %v2531 = vmul.f32 %v2489, %v2523
      %v2532 = vmul.f32 %v2491, %v2524
      %v2533 = vmul.f32 %v2493, %v2525
      %2534 = vrot.lane.b32.xlu0 %v513, 84
      %v2535 = vpop.permute.xlu0 %2534
      %2536 = vrot.lane.b32.xlu0 %v518, 84
      %v2537 = vpop.permute.xlu0 %2536
      %2538 = vrot.lane.b32.xlu0 %v523, 84
      %v2539 = vpop.permute.xlu0 %2538
      %2540 = vrot.lane.b32.xlu0 %v528, 84
      %v2541 = vpop.permute.xlu0 %2540
      %2542 = vrot.lane.b32.xlu0 %v533, 84
      %v2543 = vpop.permute.xlu0 %2542
      %2544 = vrot.lane.b32.xlu0 %v538, 84
      %v2545 = vpop.permute.xlu0 %2544
      %2546 = vrot.lane.b32.xlu0 %v543, 84
      %v2547 = vpop.permute.xlu0 %2546
      %2548 = vrot.lane.b32.xlu0 %v548, 84
      %v2549 = vpop.permute.xlu0 %2548
      %v2559 = vsel %vm786, %v2526, 0
      %v2562 = vsel %vm786, %v2527, 0
      %v2565 = vsel %vm786, %v2528, 0
      %v2568 = vsel %vm786, %v2529, 0
      %v2571 = vsel %vm786, %v2530, 0
      %v2574 = vsel %vm786, %v2531, 0
      %v2577 = vsel %vm786, %v2532, 0
      %v2580 = vsel %vm786, %v2533, 0
      %2582 = vmatprep.subr.mxu0 0.0
      %2583 = vmatpush1.msra.mxu0 %v2535
      %2584 = vmatprep.subr.mxu0 0.0
      %2585 = vmatpush1.msra.mxu0 %v2537
      %2586 = vmatprep.subr.mxu0 0.0
      %2587 = vmatpush1.msra.mxu0 %v2539
      %2588 = vmatprep.subr.mxu0 0.0
      %2589 = vmatpush1.msra.mxu0 %v2541
      %2590 = vmatprep.subr.mxu0 0.0
      %2591 = vmatpush1.msra.mxu0 %v2543
      %2592 = vmatprep.subr.mxu0 0.0
      %2593 = vmatpush1.msra.mxu0 %v2545
      %2594 = vmatprep.subr.mxu0 0.0
      %2595 = vmatpush1.msra.mxu0 %v2547
      %2596 = vmatprep.subr.mxu0 0.0
      %2597 = vmatpush1.msra.mxu0 %v2549
      %2598 = vmatprep.subr.mxu0 0.0
      %2599 = vmatpush1.msra.mxu0 0.0
      %2600 = vmatprep.subr.mxu0 0.0
      %2601 = vmatpush1.msra.mxu0 0.0
      %2602 = vmatprep.subr.mxu0 0.0
      %2603 = vmatpush1.msra.mxu0 0.0
      %2604 = vmatprep.subr.mxu0 0.0
      %2605 = vmatpush1.msra.mxu0 0.0
      %2606 = vmatprep.subr.mxu0 0.0
      %2607 = vmatpush1.msra.mxu0 0.0
      %2608 = vmatprep.subr.mxu0 0.0
      %2609 = vmatpush1.msra.mxu0 0.0
      %2610 = vmatprep.subr.mxu0 0.0
      %2611 = vmatpush1.msra.mxu0 0.0
      %2612 = vmatprep.subr.mxu0 0.0
      %2613 = vmatpush1.msra.mxu0 0.0
      %2614 = vmatprep.subr.mxu0 0.0
      %2615 = vmatpush1.msra.mxu0 0.0
      %2616 = vmatprep.subr.mxu0 0.0
      %2617 = vmatpush1.msra.mxu0 0.0
      %2618 = vmatprep.subr.mxu0 0.0
      %2619 = vmatpush1.msra.mxu0 0.0
      %2620 = vmatprep.subr.mxu0 0.0
      %2621 = vmatpush1.msra.mxu0 0.0
      %2622 = vmatprep.subr.mxu0 0.0
      %2623 = vmatpush1.msra.mxu0 0.0
      %2624 = vmatprep.subr.mxu0 0.0
      %2625 = vmatpush1.msra.mxu0 0.0
      %2626 = vmatprep.subr.mxu0 0.0
      %2627 = vmatpush1.msra.mxu0 0.0
      %2628 = vmatprep.subr.mxu0 0.0
      %2629 = vmatpush1.msra.mxu0 0.0
      %2630 = vmatprep.subr.mxu0 0.0
      %2631 = vmatpush1.msra.mxu0 0.0
      %2632 = vmatprep.subr.mxu0 0.0
      %2633 = vmatpush1.msra.mxu0 0.0
      %2634 = vmatprep.subr.mxu0 0.0
      %2635 = vmatpush1.msra.mxu0 0.0
      %2636 = vmatprep.subr.mxu0 0.0
      %2637 = vmatpush1.msra.mxu0 0.0
      %2638 = vmatprep.subr.mxu0 0.0
      %2639 = vmatpush1.msra.mxu0 0.0
      %2640 = vmatprep.subr.mxu0 0.0
      %2641 = vmatpush1.msra.mxu0 0.0
      %2642 = vmatprep.subr.mxu0 0.0
      %2643 = vmatpush1.msra.mxu0 0.0
      %2644 = vmatprep.subr.mxu0 0.0
      %2645 = vmatpush1.msra.mxu0 0.0
      %2646 = vmatprep.mubr.f32.mxu0 0.0
      %2647 = vmatmul.mubr.f32.gmra.mrb[0].mxu0 %v2559
      %v2648 = vpop.f32.mrb[0].mxu0
      %v2649 = vadd.f32 0.0, %v2648
      %v2650 = vpop.f32.mrb[0].mxu0
      %2651 = vmatprep.mubr.f32.mxu0 0.0
      %2652 = vmatmul.mubr.f32.gmra.mrb[0].mxu0 %v2562
      %v2653 = vpop.f32.mrb[0].mxu0
      %v2654 = vadd.f32 0.0, %v2653
      %v2655 = vpop.f32.mrb[0].mxu0
      %2656 = vmatprep.mubr.f32.mxu0 0.0
      %2657 = vmatmul.mubr.f32.gmra.mrb[0].mxu0 %v2565
      %v2658 = vpop.f32.mrb[0].mxu0
      %v2659 = vadd.f32 0.0, %v2658
      %v2660 = vpop.f32.mrb[0].mxu0
      %2661 = vmatprep.mubr.f32.mxu0 0.0
      %2662 = vmatmul.mubr.f32.gmra.mrb[0].mxu0 %v2568
      %v2663 = vpop.f32.mrb[0].mxu0
      %v2664 = vadd.f32 0.0, %v2663
      %v2665 = vpop.f32.mrb[0].mxu0
      %2666 = vmatprep.mubr.f32.mxu0 0.0
      %2667 = vmatmul.mubr.f32.gmra.mrb[0].mxu0 %v2571
      %v2668 = vpop.f32.mrb[0].mxu0
      %v2669 = vadd.f32 0.0, %v2668
      %v2670 = vpop.f32.mrb[0].mxu0
      %2671 = vmatprep.mubr.f32.mxu0 0.0
      %2672 = vmatmul.mubr.f32.gmra.mrb[0].mxu0 %v2574
      %v2673 = vpop.f32.mrb[0].mxu0
      %v2674 = vadd.f32 0.0, %v2673
      %v2675 = vpop.f32.mrb[0].mxu0
      %2676 = vmatprep.mubr.f32.mxu0 0.0
      %2677 = vmatmul.mubr.f32.gmra.mrb[0].mxu0 %v2577
      %v2678 = vpop.f32.mrb[0].mxu0
      %v2679 = vadd.f32 0.0, %v2678
      %v2680 = vpop.f32.mrb[0].mxu0
      %2681 = vmatprep.mubr.f32.mxu0 0.0
      %2682 = vmatmul.mubr.f32.gmra.mrb[0].mxu0 %v2580
      %v2683 = vpop.f32.mrb[0].mxu0
      %v2684 = vadd.f32 0.0, %v2683
      %v2685 = vpop.f32.mrb[0].mxu0
      %2686 = vdwg.mxu0
      %v2687 = vrot.slane %v615, 4
      %v2689 = vsel %vm640, %v2649, 0
      %v2692 = vsel %vm640, %v2654, 0
      %v2695 = vsel %vm640, %v2659, 0
      %v2698 = vsel %vm640, %v2664, 0
      %v2701 = vsel %vm640, %v2669, 0
      %v2704 = vsel %vm640, %v2674, 0
      %v2707 = vsel %vm640, %v2679, 0
      %v2710 = vsel %vm640, %v2684, 0
      %v2712 = vsel %vm1472, %v2687, 0
      %2714 = vmatprep.subr.mxu0 0.0
      %2715 = vmatpush1.msra.mxu0 %v2712
      %2716 = vmatprep.subr.mxu0 0.0
      %2717 = vmatpush1.msra.mxu0 0.0
      %2718 = vmatprep.subr.mxu0 0.0
      %2719 = vmatpush1.msra.mxu0 0.0
      %2720 = vmatprep.subr.mxu0 0.0
      %2721 = vmatpush1.msra.mxu0 0.0
      %2722 = vmatprep.subr.mxu0 0.0
      %2723 = vmatpush1.msra.mxu0 0.0
      %2724 = vmatprep.subr.mxu0 0.0
      %2725 = vmatpush1.msra.mxu0 0.0
      %2726 = vmatprep.subr.mxu0 0.0
      %2727 = vmatpush1.msra.mxu0 0.0
      %2728 = vmatprep.subr.mxu0 0.0
      %2729 = vmatpush1.msra.mxu0 0.0
      %2730 = vmatprep.subr.mxu0 0.0
      %2731 = vmatpush1.msra.mxu0 0.0
      %2732 = vmatprep.subr.mxu0 0.0
      %2733 = vmatpush1.msra.mxu0 0.0
      %2734 = vmatprep.subr.mxu0 0.0
      %2735 = vmatpush1.msra.mxu0 0.0
      %2736 = vmatprep.subr.mxu0 0.0
      %2737 = vmatpush1.msra.mxu0 0.0
      %2738 = vmatprep.subr.mxu0 0.0
      %2739 = vmatpush1.msra.mxu0 0.0
      %2740 = vmatprep.subr.mxu0 0.0
      %2741 = vmatpush1.msra.mxu0 0.0
      %2742 = vmatprep.subr.mxu0 0.0
      %2743 = vmatpush1.msra.mxu0 0.0
      %2744 = vmatprep.subr.mxu0 0.0
      %2745 = vmatpush1.msra.mxu0 0.0
      %2746 = vmatprep.subr.mxu0 0.0
      %2747 = vmatpush1.msra.mxu0 0.0
      %2748 = vmatprep.subr.mxu0 0.0
      %2749 = vmatpush1.msra.mxu0 0.0
      %2750 = vmatprep.subr.mxu0 0.0
      %2751 = vmatpush1.msra.mxu0 0.0
      %2752 = vmatprep.subr.mxu0 0.0
      %2753 = vmatpush1.msra.mxu0 0.0
      %2754 = vmatprep.subr.mxu0 0.0
      %2755 = vmatpush1.msra.mxu0 0.0
      %2756 = vmatprep.subr.mxu0 0.0
      %2757 = vmatpush1.msra.mxu0 0.0
      %2758 = vmatprep.subr.mxu0 0.0
      %2759 = vmatpush1.msra.mxu0 0.0
      %2760 = vmatprep.subr.mxu0 0.0
      %2761 = vmatpush1.msra.mxu0 0.0
      %2762 = vmatprep.subr.mxu0 0.0
      %2763 = vmatpush1.msra.mxu0 0.0
      %2764 = vmatprep.subr.mxu0 0.0
      %2765 = vmatpush1.msra.mxu0 0.0
      %2766 = vmatprep.subr.mxu0 0.0
      %2767 = vmatpush1.msra.mxu0 0.0
      %2768 = vmatprep.subr.mxu0 0.0
      %2769 = vmatpush1.msra.mxu0 0.0
      %2770 = vmatprep.subr.mxu0 0.0
      %2771 = vmatpush1.msra.mxu0 0.0
      %2772 = vmatprep.subr.mxu0 0.0
      %2773 = vmatpush1.msra.mxu0 0.0
      %2774 = vmatprep.subr.mxu0 0.0
      %2775 = vmatpush1.msra.mxu0 0.0
      %2776 = vmatprep.subr.mxu0 0.0
      %2777 = vmatpush1.msra.mxu0 0.0
      %2778 = vmatprep.mubr.f32.mxu0 0.0
      %2779 = vmatmul.mubr.f32.gmra.mrb[0].mxu0 %v2689
      %v2780 = vpop.f32.mrb[0].mxu0
      %v2781 = vadd.f32 0.0, %v2780
      %v2782 = vpop.f32.mrb[0].mxu0
      %2783 = vmatprep.mubr.f32.mxu0 0.0
      %2784 = vmatmul.mubr.f32.gmra.mrb[0].mxu0 %v2692
      %v2785 = vpop.f32.mrb[0].mxu0
      %v2786 = vadd.f32 0.0, %v2785
      %v2787 = vpop.f32.mrb[0].mxu0
      %2788 = vmatprep.mubr.f32.mxu0 0.0
      %2789 = vmatmul.mubr.f32.gmra.mrb[0].mxu0 %v2695
      %v2790 = vpop.f32.mrb[0].mxu0
      %v2791 = vadd.f32 0.0, %v2790
      %v2792 = vpop.f32.mrb[0].mxu0
      %2793 = vmatprep.mubr.f32.mxu0 0.0
      %2794 = vmatmul.mubr.f32.gmra.mrb[0].mxu0 %v2698
      %v2795 = vpop.f32.mrb[0].mxu0
      %v2796 = vadd.f32 0.0, %v2795
      %v2797 = vpop.f32.mrb[0].mxu0
      %2798 = vmatprep.mubr.f32.mxu0 0.0
      %2799 = vmatmul.mubr.f32.gmra.mrb[0].mxu0 %v2701
      %v2800 = vpop.f32.mrb[0].mxu0
      %v2801 = vadd.f32 0.0, %v2800
      %v2802 = vpop.f32.mrb[0].mxu0
      %2803 = vmatprep.mubr.f32.mxu0 0.0
      %2804 = vmatmul.mubr.f32.gmra.mrb[0].mxu0 %v2704
      %v2805 = vpop.f32.mrb[0].mxu0
      %v2806 = vadd.f32 0.0, %v2805
      %v2807 = vpop.f32.mrb[0].mxu0
      %2808 = vmatprep.mubr.f32.mxu0 0.0
      %2809 = vmatmul.mubr.f32.gmra.mrb[0].mxu0 %v2707
      %v2810 = vpop.f32.mrb[0].mxu0
      %v2811 = vadd.f32 0.0, %v2810
      %v2812 = vpop.f32.mrb[0].mxu0
      %2813 = vmatprep.mubr.f32.mxu0 0.0
      %2814 = vmatmul.mubr.f32.gmra.mrb[0].mxu0 %v2710
      %v2815 = vpop.f32.mrb[0].mxu0
      %v2816 = vadd.f32 0.0, %v2815
      %v2817 = vpop.f32.mrb[0].mxu0
      %2818 = vdwg.mxu0
      %v2819 = vadd.f32 %v2261, %v2781
      %v2820 = vadd.f32 %v2262, %v2786
      %v2821 = vadd.f32 %v2263, %v2791
      %v2822 = vadd.f32 %v2264, %v2796
      %v2823 = vadd.f32 %v2265, %v2801
      %v2824 = vadd.f32 %v2266, %v2806
      %v2825 = vadd.f32 %v2267, %v2811
      %v2826 = vadd.f32 %v2268, %v2816
      %v2827 = vld [vmem:[%s6] sm:$0x1]
      %v2829 = vlaneseq
      %v2830 = vshrl.u32 %v2829, 7
      %v2831 = vsub.s32 0, %v2830
      %v2832 = vrot.slane %v2827, %v2831
      %v2834 = vadd.f32 %v2819, %v2832
      %v2835 = vadd.f32 %v2820, %v2832
      %v2836 = vadd.f32 %v2821, %v2832
      %v2837 = vadd.f32 %v2822, %v2832
      %v2838 = vadd.f32 %v2823, %v2832
      %v2839 = vadd.f32 %v2824, %v2832
      %v2840 = vadd.f32 %v2825, %v2832
      %v2841 = vadd.f32 %v2826, %v2832
      %vm2842 = vcmask 130048
      %2843 = vst.msk [vmem:[%s406] sm:$0xff] %vm2842, %v2834
      %2844 = vst.msk [vmem:[%s406 + $0x8] sm:$0xff] %vm2842, %v2835
      %2845 = vst.msk [vmem:[%s406 + $0x10] sm:$0xff] %vm2842, %v2836
      %2846 = vst.msk [vmem:[%s406 + $0x18] sm:$0xff] %vm2842, %v2837
      %2847 = vst.msk [vmem:[%s406 + $0x20] sm:$0xff] %vm2842, %v2838
      %2848 = vst.msk [vmem:[%s406 + $0x28] sm:$0xff] %vm2842, %v2839
      %2849 = vst.msk [vmem:[%s406 + $0x30] sm:$0xff] %vm2842, %v2840
      %2850 = vst.msk [vmem:[%s406 + $0x38] sm:$0xff] %vm2842, %v2841
      %v2851 = vld [vmem:[%s7] sm:$0xff]
      %v2852 = vld [vmem:[%s7 + $0x8] sm:$0xff]
      %v2853 = vld [vmem:[%s7 + $0x10] sm:$0xff]
      %v2854 = vld [vmem:[%s7 + $0x18] sm:$0xff]
      %2855 = vmatprep.subr.mxu0 0.0
      %2856 = vmatpush1.msra.mxu0 %v2851
      %2857 = vmatprep.subr.mxu0 0.0
      %2858 = vmatpush1.msra.mxu0 %v2852
      %2859 = vmatprep.subr.mxu0 0.0
      %2860 = vmatpush1.msra.mxu0 %v2853
      %2861 = vmatprep.subr.mxu0 0.0
      %2862 = vmatpush1.msra.mxu0 %v2854
      %2863 = vmatprep.subr.mxu0 0.0
      %2864 = vmatpush1.msra.mxu0 0.0
      %2865 = vmatprep.subr.mxu0 0.0
      %2866 = vmatpush1.msra.mxu0 0.0
      %2867 = vmatprep.subr.mxu0 0.0
      %2868 = vmatpush1.msra.mxu0 0.0
      %2869 = vmatprep.subr.mxu0 0.0
      %2870 = vmatpush1.msra.mxu0 0.0
      %2871 = vmatprep.subr.mxu0 0.0
      %2872 = vmatpush1.msra.mxu0 0.0
      %2873 = vmatprep.subr.mxu0 0.0
      %2874 = vmatpush1.msra.mxu0 0.0
      %2875 = vmatprep.subr.mxu0 0.0
      %2876 = vmatpush1.msra.mxu0 0.0
      %2877 = vmatprep.subr.mxu0 0.0
      %2878 = vmatpush1.msra.mxu0 0.0
      %2879 = vmatprep.subr.mxu0 0.0
      %2880 = vmatpush1.msra.mxu0 0.0
      %2881 = vmatprep.subr.mxu0 0.0
      %2882 = vmatpush1.msra.mxu0 0.0
      %2883 = vmatprep.subr.mxu0 0.0
      %2884 = vmatpush1.msra.mxu0 0.0
      %2885 = vmatprep.subr.mxu0 0.0
      %2886 = vmatpush1.msra.mxu0 0.0
      %2887 = vmatprep.subr.mxu0 0.0
      %2888 = vmatpush1.msra.mxu0 0.0
      %2889 = vmatprep.subr.mxu0 0.0
      %2890 = vmatpush1.msra.mxu0 0.0
      %2891 = vmatprep.subr.mxu0 0.0
      %2892 = vmatpush1.msra.mxu0 0.0
      %2893 = vmatprep.subr.mxu0 0.0
      %2894 = vmatpush1.msra.mxu0 0.0
      %2895 = vmatprep.subr.mxu0 0.0
      %2896 = vmatpush1.msra.mxu0 0.0
      %2897 = vmatprep.subr.mxu0 0.0
      %2898 = vmatpush1.msra.mxu0 0.0
      %2899 = vmatprep.subr.mxu0 0.0
      %2900 = vmatpush1.msra.mxu0 0.0
      %2901 = vmatprep.subr.mxu0 0.0
      %2902 = vmatpush1.msra.mxu0 0.0
      %2903 = vmatprep.subr.mxu0 0.0
      %2904 = vmatpush1.msra.mxu0 0.0
      %2905 = vmatprep.subr.mxu0 0.0
      %2906 = vmatpush1.msra.mxu0 0.0
      %2907 = vmatprep.subr.mxu0 0.0
      %2908 = vmatpush1.msra.mxu0 0.0
      %2909 = vmatprep.subr.mxu0 0.0
      %2910 = vmatpush1.msra.mxu0 0.0
      %2911 = vmatprep.subr.mxu0 0.0
      %2912 = vmatpush1.msra.mxu0 0.0
      %2913 = vmatprep.subr.mxu0 0.0
      %2914 = vmatpush1.msra.mxu0 0.0
      %2915 = vmatprep.subr.mxu0 0.0
      %2916 = vmatpush1.msra.mxu0 0.0
      %2917 = vmatprep.subr.mxu0 0.0
      %2918 = vmatpush1.msra.mxu0 0.0
      %2919 = vmatprep.mubr.f32.mxu0 0.0
      %2920 = vmatmul.mubr.f32.gmra.mrb[0].mxu0 %v423
      %v2921 = vpop.f32.mrb[0].mxu0
      %v2922 = vadd.f32 0.0, %v2921
      %v2923 = vpop.f32.mrb[0].mxu0
      %2924 = vmatprep.mubr.f32.mxu0 0.0
      %2925 = vmatmul.mubr.f32.gmra.mrb[0].mxu0 %v426
      %v2926 = vpop.f32.mrb[0].mxu0
      %v2927 = vadd.f32 0.0, %v2926
      %v2928 = vpop.f32.mrb[0].mxu0
      %2929 = vmatprep.mubr.f32.mxu0 0.0
      %2930 = vmatmul.mubr.f32.gmra.mrb[0].mxu0 %v429
      %v2931 = vpop.f32.mrb[0].mxu0
      %v2932 = vadd.f32 0.0, %v2931
      %v2933 = vpop.f32.mrb[0].mxu0
      %2934 = vmatprep.mubr.f32.mxu0 0.0
      %2935 = vmatmul.mubr.f32.gmra.mrb[0].mxu0 %v432
      %v2936 = vpop.f32.mrb[0].mxu0
      %v2937 = vadd.f32 0.0, %v2936
      %v2938 = vpop.f32.mrb[0].mxu0
      %2939 = vmatprep.mubr.f32.mxu0 0.0
      %2940 = vmatmul.mubr.f32.gmra.mrb[0].mxu0 %v435
      %v2941 = vpop.f32.mrb[0].mxu0
      %v2942 = vadd.f32 0.0, %v2941
      %v2943 = vpop.f32.mrb[0].mxu0
      %2944 = vmatprep.mubr.f32.mxu0 0.0
      %2945 = vmatmul.mubr.f32.gmra.mrb[0].mxu0 %v438
      %v2946 = vpop.f32.mrb[0].mxu0
      %v2947 = vadd.f32 0.0, %v2946
      %v2948 = vpop.f32.mrb[0].mxu0
      %2949 = vmatprep.mubr.f32.mxu0 0.0
      %2950 = vmatmul.mubr.f32.gmra.mrb[0].mxu0 %v441
      %v2951 = vpop.f32.mrb[0].mxu0
      %v2952 = vadd.f32 0.0, %v2951
      %v2953 = vpop.f32.mrb[0].mxu0
      %2954 = vmatprep.mubr.f32.mxu0 0.0
      %2955 = vmatmul.mubr.f32.gmra.mrb[0].mxu0 %v444
      %v2956 = vpop.f32.mrb[0].mxu0
      %v2957 = vadd.f32 0.0, %v2956
      %v2958 = vpop.f32.mrb[0].mxu0
      %2959 = vdwg.mxu0
      %v2960 = vld [vmem:[%s8] sm:$0xff]
      %v2961 = vld [vmem:[%s8 + $0x8] sm:$0xff]
      %v2962 = vld [vmem:[%s8 + $0x10] sm:$0xff]
      %v2963 = vld [vmem:[%s8 + $0x18] sm:$0xff]
      %v2965 = vsel %vm421, %v415, 0
      %v2968 = vsel %vm421, %v416, 0
      %2970 = vmatprep.subr.mxu0 0.0
      %2971 = vmatpush1.msra.mxu0 %v2960
      %2972 = vmatprep.subr.mxu0 0.0
      %2973 = vmatpush1.msra.mxu0 %v2961
      %2974 = vmatprep.subr.mxu0 0.0
      %2975 = vmatpush1.msra.mxu0 %v2962
      %2976 = vmatprep.subr.mxu0 0.0
      %2977 = vmatpush1.msra.mxu0 %v2963
      %2978 = vmatprep.subr.mxu0 0.0
      %2979 = vmatpush1.msra.mxu0 0.0
      %2980 = vmatprep.subr.mxu0 0.0
      %2981 = vmatpush1.msra.mxu0 0.0
      %2982 = vmatprep.subr.mxu0 0.0
      %2983 = vmatpush1.msra.mxu0 0.0
      %2984 = vmatprep.subr.mxu0 0.0
      %2985 = vmatpush1.msra.mxu0 0.0
      %2986 = vmatprep.subr.mxu0 0.0
      %2987 = vmatpush1.msra.mxu0 0.0
      %2988 = vmatprep.subr.mxu0 0.0
      %2989 = vmatpush1.msra.mxu0 0.0
      %2990 = vmatprep.subr.mxu0 0.0
      %2991 = vmatpush1.msra.mxu0 0.0
      %2992 = vmatprep.subr.mxu0 0.0
      %2993 = vmatpush1.msra.mxu0 0.0
      %2994 = vmatprep.subr.mxu0 0.0
      %2995 = vmatpush1.msra.mxu0 0.0
      %2996 = vmatprep.subr.mxu0 0.0
      %2997 = vmatpush1.msra.mxu0 0.0
      %2998 = vmatprep.subr.mxu0 0.0
      %2999 = vmatpush1.msra.mxu0 0.0
      %3000 = vmatprep.subr.mxu0 0.0
      %3001 = vmatpush1.msra.mxu0 0.0
      %3002 = vmatprep.subr.mxu0 0.0
      %3003 = vmatpush1.msra.mxu0 0.0
      %3004 = vmatprep.subr.mxu0 0.0
      %3005 = vmatpush1.msra.mxu0 0.0
      %3006 = vmatprep.subr.mxu0 0.0
      %3007 = vmatpush1.msra.mxu0 0.0
      %3008 = vmatprep.subr.mxu0 0.0
      %3009 = vmatpush1.msra.mxu0 0.0
      %3010 = vmatprep.subr.mxu0 0.0
      %3011 = vmatpush1.msra.mxu0 0.0
      %3012 = vmatprep.subr.mxu0 0.0
      %3013 = vmatpush1.msra.mxu0 0.0
      %3014 = vmatprep.subr.mxu0 0.0
      %3015 = vmatpush1.msra.mxu0 0.0
      %3016 = vmatprep.subr.mxu0 0.0
      %3017 = vmatpush1.msra.mxu0 0.0
      %3018 = vmatprep.subr.mxu0 0.0
      %3019 = vmatpush1.msra.mxu0 0.0
      %3020 = vmatprep.subr.mxu0 0.0
      %3021 = vmatpush1.msra.mxu0 0.0
      %3022 = vmatprep.subr.mxu0 0.0
      %3023 = vmatpush1.msra.mxu0 0.0
      %3024 = vmatprep.subr.mxu0 0.0
      %3025 = vmatpush1.msra.mxu0 0.0
      %3026 = vmatprep.subr.mxu0 0.0
      %3027 = vmatpush1.msra.mxu0 0.0
      %3028 = vmatprep.subr.mxu0 0.0
      %3029 = vmatpush1.msra.mxu0 0.0
      %3030 = vmatprep.subr.mxu0 0.0
      %3031 = vmatpush1.msra.mxu0 0.0
      %3032 = vmatprep.subr.mxu0 0.0
      %3033 = vmatpush1.msra.mxu0 0.0
      %3034 = vmatprep.mubr.f32.mxu0 0.0
      %3035 = vmatmul.mubr.f32.gmra.mrb[0].mxu0 %v2965
      %v3036 = vpop.f32.mrb[0].mxu0
      %v3037 = vadd.f32 0.0, %v3036
      %v3038 = vpop.f32.mrb[0].mxu0
      %3039 = vmatprep.mubr.f32.mxu0 0.0
      %3040 = vmatmul.mubr.f32.gmra.mrb[0].mxu0 %v2968
      %v3041 = vpop.f32.mrb[0].mxu0
      %v3042 = vadd.f32 0.0, %v3041
      %v3043 = vpop.f32.mrb[0].mxu0
      %3044 = vdwg.mxu0
      %v3045 = vld [vmem:[%s9] sm:$0xff]
      %v3046 = vld [vmem:[%s9 + $0x8] sm:$0xff]
      %v3048 = vsel %vm640, %v2922, 0
      %v3051 = vsel %vm640, %v2927, 0
      %v3054 = vsel %vm640, %v2932, 0
      %v3057 = vsel %vm640, %v2937, 0
      %v3060 = vsel %vm640, %v2942, 0
      %v3063 = vsel %vm640, %v2947, 0
      %v3066 = vsel %vm640, %v2952, 0
      %v3069 = vsel %vm640, %v2957, 0
      %v3072 = vsel %vm640, %v3037, 0
      %v3075 = vsel %vm640, %v3042, 0
      %3077 = vmatprep.subr.mxu0 0.0
      %3078 = vmatpush1.xpose.msra.mxu0 %v3072
      %3079 = vmatprep.subr.mxu0 0.0
      %3080 = vmatpush1.xpose.msra.mxu0 %v3075
      %3081 = vmatprep.subr.mxu0 0.0
      %3082 = vmatpush1.xpose.msra.mxu0 0.0
      %3083 = vmatprep.subr.mxu0 0.0
      %3084 = vmatpush1.xpose.msra.mxu0 0.0
      %3085 = vmatprep.subr.mxu0 0.0
      %3086 = vmatpush1.xpose.msra.mxu0 0.0
      %3087 = vmatprep.subr.mxu0 0.0
      %3088 = vmatpush1.xpose.msra.mxu0 0.0
      %3089 = vmatprep.subr.mxu0 0.0
      %3090 = vmatpush1.xpose.msra.mxu0 0.0
      %3091 = vmatprep.subr.mxu0 0.0
      %3092 = vmatpush1.xpose.msra.mxu0 0.0
      %3093 = vmatprep.subr.mxu0 0.0
      %3094 = vmatpush1.xpose.msra.mxu0 0.0
      %3095 = vmatprep.subr.mxu0 0.0
      %3096 = vmatpush1.xpose.msra.mxu0 0.0
      %3097 = vmatprep.subr.mxu0 0.0
      %3098 = vmatpush1.xpose.msra.mxu0 0.0
      %3099 = vmatprep.subr.mxu0 0.0
      %3100 = vmatpush1.xpose.msra.mxu0 0.0
      %3101 = vmatprep.subr.mxu0 0.0
      %3102 = vmatpush1.xpose.msra.mxu0 0.0
      %3103 = vmatprep.subr.mxu0 0.0
      %3104 = vmatpush1.xpose.msra.mxu0 0.0
      %3105 = vmatprep.subr.mxu0 0.0
      %3106 = vmatpush1.xpose.msra.mxu0 0.0
      %3107 = vmatprep.subr.mxu0 0.0
      %3108 = vmatpush1.xpose.msra.mxu0 0.0
      %3109 = vmatprep.subr.mxu0 0.0
      %3110 = vmatpush1.xpose.msra.mxu0 0.0
      %3111 = vmatprep.subr.mxu0 0.0
      %3112 = vmatpush1.xpose.msra.mxu0 0.0
      %3113 = vmatprep.subr.mxu0 0.0
      %3114 = vmatpush1.xpose.msra.mxu0 0.0
      %3115 = vmatprep.subr.mxu0 0.0
      %3116 = vmatpush1.xpose.msra.mxu0 0.0
      %3117 = vmatprep.subr.mxu0 0.0
      %3118 = vmatpush1.xpose.msra.mxu0 0.0
      %3119 = vmatprep.subr.mxu0 0.0
      %3120 = vmatpush1.xpose.msra.mxu0 0.0
      %3121 = vmatprep.subr.mxu0 0.0
      %3122 = vmatpush1.xpose.msra.mxu0 0.0
      %3123 = vmatprep.subr.mxu0 0.0
      %3124 = vmatpush1.xpose.msra.mxu0 0.0
      %3125 = vmatprep.subr.mxu0 0.0
      %3126 = vmatpush1.xpose.msra.mxu0 0.0
      %3127 = vmatprep.subr.mxu0 0.0
      %3128 = vmatpush1.xpose.msra.mxu0 0.0
      %3129 = vmatprep.subr.mxu0 0.0
      %3130 = vmatpush1.xpose.msra.mxu0 0.0
      %3131 = vmatprep.subr.mxu0 0.0
      %3132 = vmatpush1.xpose.msra.mxu0 0.0
      %3133 = vmatprep.subr.mxu0 0.0
      %3134 = vmatpush1.xpose.msra.mxu0 0.0
      %3135 = vmatprep.subr.mxu0 0.0
      %3136 = vmatpush1.xpose.msra.mxu0 0.0
      %3137 = vmatprep.subr.mxu0 0.0
      %3138 = vmatpush1.xpose.msra.mxu0 0.0
      %3139 = vmatprep.subr.mxu0 0.0
      %3140 = vmatpush1.xpose.msra.mxu0 0.0
      %3141 = vmatprep.mubr.f32.mxu0 0.0
      %3142 = vmatmul.mubr.f32.gmra.mrb[0].mxu0 %v3048
      %v3143 = vpop.f32.mrb[0].mxu0
      %v3144 = vadd.f32 0.0, %v3143
      %v3145 = vpop.f32.mrb[0].mxu0
      %3146 = vmatprep.mubr.f32.mxu0 0.0
      %3147 = vmatmul.mubr.f32.gmra.mrb[0].mxu0 %v3051
      %v3148 = vpop.f32.mrb[0].mxu0
      %v3149 = vadd.f32 0.0, %v3148
      %v3150 = vpop.f32.mrb[0].mxu0
      %3151 = vmatprep.mubr.f32.mxu0 0.0
      %3152 = vmatmul.mubr.f32.gmra.mrb[0].mxu0 %v3054
      %v3153 = vpop.f32.mrb[0].mxu0
      %v3154 = vadd.f32 0.0, %v3153
      %v3155 = vpop.f32.mrb[0].mxu0
      %3156 = vmatprep.mubr.f32.mxu0 0.0
      %3157 = vmatmul.mubr.f32.gmra.mrb[0].mxu0 %v3057
      %v3158 = vpop.f32.mrb[0].mxu0
      %v3159 = vadd.f32 0.0, %v3158
      %v3160 = vpop.f32.mrb[0].mxu0
      %3161 = vmatprep.mubr.f32.mxu0 0.0
      %3162 = vmatmul.mubr.f32.gmra.mrb[0].mxu0 %v3060
      %v3163 = vpop.f32.mrb[0].mxu0
      %v3164 = vadd.f32 0.0, %v3163
      %v3165 = vpop.f32.mrb[0].mxu0
      %3166 = vmatprep.mubr.f32.mxu0 0.0
      %3167 = vmatmul.mubr.f32.gmra.mrb[0].mxu0 %v3063
      %v3168 = vpop.f32.mrb[0].mxu0
      %v3169 = vadd.f32 0.0, %v3168
      %v3170 = vpop.f32.mrb[0].mxu0
      %3171 = vmatprep.mubr.f32.mxu0 0.0
      %3172 = vmatmul.mubr.f32.gmra.mrb[0].mxu0 %v3066
      %v3173 = vpop.f32.mrb[0].mxu0
      %v3174 = vadd.f32 0.0, %v3173
      %v3175 = vpop.f32.mrb[0].mxu0
      %3176 = vmatprep.mubr.f32.mxu0 0.0
      %3177 = vmatmul.mubr.f32.gmra.mrb[0].mxu0 %v3069
      %v3178 = vpop.f32.mrb[0].mxu0
      %v3179 = vadd.f32 0.0, %v3178
      %v3180 = vpop.f32.mrb[0].mxu0
      %3181 = vdwg.mxu0
      %v3182 = vsel %vm2842, %v3144, -inf
      %3183 = vmax.xlane.f32.xlu0 %v3182
      %v3184 = vpop.xlane.xlu0 %3183
      %v3185 = vsel %vm2842, %v3149, -inf
      %3186 = vmax.xlane.f32.xlu0 %v3185
      %v3187 = vpop.xlane.xlu0 %3186
      %v3188 = vsel %vm2842, %v3154, -inf
      %3189 = vmax.xlane.f32.xlu0 %v3188
      %v3190 = vpop.xlane.xlu0 %3189
      %v3191 = vsel %vm2842, %v3159, -inf
      %3192 = vmax.xlane.f32.xlu0 %v3191
      %v3193 = vpop.xlane.xlu0 %3192
      %v3194 = vsel %vm2842, %v3164, -inf
      %3195 = vmax.xlane.f32.xlu0 %v3194
      %v3196 = vpop.xlane.xlu0 %3195
      %v3197 = vsel %vm2842, %v3169, -inf
      %3198 = vmax.xlane.f32.xlu0 %v3197
      %v3199 = vpop.xlane.xlu0 %3198
      %v3200 = vsel %vm2842, %v3174, -inf
      %3201 = vmax.xlane.f32.xlu0 %v3200
      %v3202 = vpop.xlane.xlu0 %3201
      %v3203 = vsel %vm2842, %v3179, -inf
      %3204 = vmax.xlane.f32.xlu0 %v3203
      %v3205 = vpop.xlane.xlu0 %3204
      %v3206 = vsub.f32 %v3144, %v3184
      %v3207 = vsub.f32 %v3149, %v3187
      %v3208 = vsub.f32 %v3154, %v3190
      %v3209 = vsub.f32 %v3159, %v3193
      %v3210 = vsub.f32 %v3164, %v3196
      %v3211 = vsub.f32 %v3169, %v3199
      %v3212 = vsub.f32 %v3174, %v3202
      %v3213 = vsub.f32 %v3179, %v3205
      %v3214 = vmul.f32 %v3206, 1.442695
      %v3215 = vpow.pop %v3214
      %v3216 = vmul.f32 %v3207, 1.442695
      %v3217 = vpow.pop %v3216
      %v3218 = vmul.f32 %v3208, 1.442695
      %v3219 = vpow.pop %v3218
      %v3220 = vmul.f32 %v3209, 1.442695
      %v3221 = vpow.pop %v3220
      %v3222 = vmul.f32 %v3210, 1.442695
      %v3223 = vpow.pop %v3222
      %v3224 = vmul.f32 %v3211, 1.442695
      %v3225 = vpow.pop %v3224
      %v3226 = vmul.f32 %v3212, 1.442695
      %v3227 = vpow.pop %v3226
      %v3228 = vmul.f32 %v3213, 1.442695
      %v3229 = vpow.pop %v3228
      %v3230 = vsel %vm2842, %v3215, 0.0
      %3231 = vadd.xlane.f32.xlu0 %v3230
      %v3232 = vpop.xlane.xlu0 %3231
      %v3233 = vsel %vm2842, %v3217, 0.0
      %3234 = vadd.xlane.f32.xlu0 %v3233
      %v3235 = vpop.xlane.xlu0 %3234
      %v3236 = vsel %vm2842, %v3219, 0.0
      %3237 = vadd.xlane.f32.xlu0 %v3236
      %v3238 = vpop.xlane.xlu0 %3237
      %v3239 = vsel %vm2842, %v3221, 0.0
      %3240 = vadd.xlane.f32.xlu0 %v3239
      %v3241 = vpop.xlane.xlu0 %3240
      %v3242 = vsel %vm2842, %v3223, 0.0
      %3243 = vadd.xlane.f32.xlu0 %v3242
      %v3244 = vpop.xlane.xlu0 %3243
      %v3245 = vsel %vm2842, %v3225, 0.0
      %3246 = vadd.xlane.f32.xlu0 %v3245
      %v3247 = vpop.xlane.xlu0 %3246
      %v3248 = vsel %vm2842, %v3227, 0.0
      %3249 = vadd.xlane.f32.xlu0 %v3248
      %v3250 = vpop.xlane.xlu0 %3249
      %v3251 = vsel %vm2842, %v3229, 0.0
      %3252 = vadd.xlane.f32.xlu0 %v3251
      %v3253 = vpop.xlane.xlu0 %3252
      %v3254 = vrcp.pop %v3232
      %v3255 = vrcp.pop %v3235
      %v3256 = vrcp.pop %v3238
      %v3257 = vrcp.pop %v3241
      %v3258 = vrcp.pop %v3244
      %v3259 = vrcp.pop %v3247
      %v3260 = vrcp.pop %v3250
      %v3261 = vrcp.pop %v3253
      %v3262 = vmul.f32 %v3215, %v3254
      %v3263 = vmul.f32 %v3217, %v3255
      %v3264 = vmul.f32 %v3219, %v3256
      %v3265 = vmul.f32 %v3221, %v3257
      %v3266 = vmul.f32 %v3223, %v3258
      %v3267 = vmul.f32 %v3225, %v3259
      %v3268 = vmul.f32 %v3227, %v3260
      %v3269 = vmul.f32 %v3229, %v3261
      %3270 = vrot.lane.b32.xlu0 %v3037, 112
      %v3271 = vpop.permute.xlu0 %3270
      %3272 = vrot.lane.b32.xlu0 %v3042, 112
      %v3273 = vpop.permute.xlu0 %3272
      %v3277 = vsel %vm2842, %v3262, 0
      %v3280 = vsel %vm2842, %v3263, 0
      %v3283 = vsel %vm2842, %v3264, 0
      %v3286 = vsel %vm2842, %v3265, 0
      %v3289 = vsel %vm2842, %v3266, 0
      %v3292 = vsel %vm2842, %v3267, 0
      %v3295 = vsel %vm2842, %v3268, 0
      %v3298 = vsel %vm2842, %v3269, 0
      %3300 = vmatprep.subr.mxu0 0.0
      %3301 = vmatpush1.msra.mxu0 %v3271
      %3302 = vmatprep.subr.mxu0 0.0
      %3303 = vmatpush1.msra.mxu0 %v3273
      %3304 = vmatprep.subr.mxu0 0.0
      %3305 = vmatpush1.msra.mxu0 0.0
      %3306 = vmatprep.subr.mxu0 0.0
      %3307 = vmatpush1.msra.mxu0 0.0
      %3308 = vmatprep.subr.mxu0 0.0
      %3309 = vmatpush1.msra.mxu0 0.0
      %3310 = vmatprep.subr.mxu0 0.0
      %3311 = vmatpush1.msra.mxu0 0.0
      %3312 = vmatprep.subr.mxu0 0.0
      %3313 = vmatpush1.msra.mxu0 0.0
      %3314 = vmatprep.subr.mxu0 0.0
      %3315 = vmatpush1.msra.mxu0 0.0
      %3316 = vmatprep.subr.mxu0 0.0
      %3317 = vmatpush1.msra.mxu0 0.0
      %3318 = vmatprep.subr.mxu0 0.0
      %3319 = vmatpush1.msra.mxu0 0.0
      %3320 = vmatprep.subr.mxu0 0.0
      %3321 = vmatpush1.msra.mxu0 0.0
      %3322 = vmatprep.subr.mxu0 0.0
      %3323 = vmatpush1.msra.mxu0 0.0
      %3324 = vmatprep.subr.mxu0 0.0
      %3325 = vmatpush1.msra.mxu0 0.0
      %3326 = vmatprep.subr.mxu0 0.0
      %3327 = vmatpush1.msra.mxu0 0.0
      %3328 = vmatprep.subr.mxu0 0.0
      %3329 = vmatpush1.msra.mxu0 0.0
      %3330 = vmatprep.subr.mxu0 0.0
      %3331 = vmatpush1.msra.mxu0 0.0
      %3332 = vmatprep.subr.mxu0 0.0
      %3333 = vmatpush1.msra.mxu0 0.0
      %3334 = vmatprep.subr.mxu0 0.0
      %3335 = vmatpush1.msra.mxu0 0.0
      %3336 = vmatprep.subr.mxu0 0.0
      %3337 = vmatpush1.msra.mxu0 0.0
      %3338 = vmatprep.subr.mxu0 0.0
      %3339 = vmatpush1.msra.mxu0 0.0
      %3340 = vmatprep.subr.mxu0 0.0
      %3341 = vmatpush1.msra.mxu0 0.0
      %3342 = vmatprep.subr.mxu0 0.0
      %3343 = vmatpush1.msra.mxu0 0.0
      %3344 = vmatprep.subr.mxu0 0.0
      %3345 = vmatpush1.msra.mxu0 0.0
      %3346 = vmatprep.subr.mxu0 0.0
      %3347 = vmatpush1.msra.mxu0 0.0
      %3348 = vmatprep.subr.mxu0 0.0
      %3349 = vmatpush1.msra.mxu0 0.0
      %3350 = vmatprep.subr.mxu0 0.0
      %3351 = vmatpush1.msra.mxu0 0.0
      %3352 = vmatprep.subr.mxu0 0.0
      %3353 = vmatpush1.msra.mxu0 0.0
      %3354 = vmatprep.subr.mxu0 0.0
      %3355 = vmatpush1.msra.mxu0 0.0
      %3356 = vmatprep.subr.mxu0 0.0
      %3357 = vmatpush1.msra.mxu0 0.0
      %3358 = vmatprep.subr.mxu0 0.0
      %3359 = vmatpush1.msra.mxu0 0.0
      %3360 = vmatprep.subr.mxu0 0.0
      %3361 = vmatpush1.msra.mxu0 0.0
      %3362 = vmatprep.subr.mxu0 0.0
      %3363 = vmatpush1.msra.mxu0 0.0
      %3364 = vmatprep.mubr.f32.mxu0 0.0
      %3365 = vmatmul.mubr.f32.gmra.mrb[0].mxu0 %v3277
      %v3366 = vpop.f32.mrb[0].mxu0
      %v3367 = vadd.f32 0.0, %v3366
      %v3368 = vpop.f32.mrb[0].mxu0
      %3369 = vmatprep.mubr.f32.mxu0 0.0
      %3370 = vmatmul.mubr.f32.gmra.mrb[0].mxu0 %v3280
      %v3371 = vpop.f32.mrb[0].mxu0
      %v3372 = vadd.f32 0.0, %v3371
      %v3373 = vpop.f32.mrb[0].mxu0
      %3374 = vmatprep.mubr.f32.mxu0 0.0
      %3375 = vmatmul.mubr.f32.gmra.mrb[0].mxu0 %v3283
      %v3376 = vpop.f32.mrb[0].mxu0
      %v3377 = vadd.f32 0.0, %v3376
      %v3378 = vpop.f32.mrb[0].mxu0
      %3379 = vmatprep.mubr.f32.mxu0 0.0
      %3380 = vmatmul.mubr.f32.gmra.mrb[0].mxu0 %v3286
      %v3381 = vpop.f32.mrb[0].mxu0
      %v3382 = vadd.f32 0.0, %v3381
      %v3383 = vpop.f32.mrb[0].mxu0
      %3384 = vmatprep.mubr.f32.mxu0 0.0
      %3385 = vmatmul.mubr.f32.gmra.mrb[0].mxu0 %v3289
      %v3386 = vpop.f32.mrb[0].mxu0
      %v3387 = vadd.f32 0.0, %v3386
      %v3388 = vpop.f32.mrb[0].mxu0
      %3389 = vmatprep.mubr.f32.mxu0 0.0
      %3390 = vmatmul.mubr.f32.gmra.mrb[0].mxu0 %v3292
      %v3391 = vpop.f32.mrb[0].mxu0
      %v3392 = vadd.f32 0.0, %v3391
      %v3393 = vpop.f32.mrb[0].mxu0
      %3394 = vmatprep.mubr.f32.mxu0 0.0
      %3395 = vmatmul.mubr.f32.gmra.mrb[0].mxu0 %v3295
      %v3396 = vpop.f32.mrb[0].mxu0
      %v3397 = vadd.f32 0.0, %v3396
      %v3398 = vpop.f32.mrb[0].mxu0
      %3399 = vmatprep.mubr.f32.mxu0 0.0
      %3400 = vmatmul.mubr.f32.gmra.mrb[0].mxu0 %v3298
      %v3401 = vpop.f32.mrb[0].mxu0
      %v3402 = vadd.f32 0.0, %v3401
      %v3403 = vpop.f32.mrb[0].mxu0
      %3404 = vdwg.mxu0
      %3405 = vrot.lane.b32.xlu0 %v2922, 124
      %v3406 = vpop.permute.xlu0 %3405
      %3407 = vrot.lane.b32.xlu0 %v2927, 124
      %v3408 = vpop.permute.xlu0 %3407
      %3409 = vrot.lane.b32.xlu0 %v2932, 124
      %v3410 = vpop.permute.xlu0 %3409
      %3411 = vrot.lane.b32.xlu0 %v2937, 124
      %v3412 = vpop.permute.xlu0 %3411
      %3413 = vrot.lane.b32.xlu0 %v2942, 124
      %v3414 = vpop.permute.xlu0 %3413
      %3415 = vrot.lane.b32.xlu0 %v2947, 124
      %v3416 = vpop.permute.xlu0 %3415
      %3417 = vrot.lane.b32.xlu0 %v2952, 124
      %v3418 = vpop.permute.xlu0 %3417
      %3419 = vrot.lane.b32.xlu0 %v2957, 124
      %v3420 = vpop.permute.xlu0 %3419
      %3421 = vrot.lane.b32.xlu0 %v3037, 124
      %v3422 = vpop.permute.xlu0 %3421
      %3423 = vrot.lane.b32.xlu0 %v3042, 124
      %v3424 = vpop.permute.xlu0 %3423
      %v3425 = vsel %vm640, %v3406, 0
      %v3427 = vsel %vm640, %v3408, 0
      %v3429 = vsel %vm640, %v3410, 0
      %v3431 = vsel %vm640, %v3412, 0
      %v3433 = vsel %vm640, %v3414, 0
      %v3435 = vsel %vm640, %v3416, 0
      %v3437 = vsel %vm640, %v3418, 0
      %v3439 = vsel %vm640, %v3420, 0
      %v3441 = vsel %vm640, %v3422, 0
      %v3443 = vsel %vm640, %v3424, 0
      %3445 = vmatprep.subr.mxu0 0.0
      %3446 = vmatpush1.xpose.msra.mxu0 %v3441
      %3447 = vmatprep.subr.mxu0 0.0
      %3448 = vmatpush1.xpose.msra.mxu0 %v3443
      %3449 = vmatprep.subr.mxu0 0.0
      %3450 = vmatpush1.xpose.msra.mxu0 0.0
      %3451 = vmatprep.subr.mxu0 0.0
      %3452 = vmatpush1.xpose.msra.mxu0 0.0
      %3453 = vmatprep.subr.mxu0 0.0
      %3454 = vmatpush1.xpose.msra.mxu0 0.0
      %3455 = vmatprep.subr.mxu0 0.0
      %3456 = vmatpush1.xpose.msra.mxu0 0.0
      %3457 = vmatprep.subr.mxu0 0.0
      %3458 = vmatpush1.xpose.msra.mxu0 0.0
      %3459 = vmatprep.subr.mxu0 0.0
      %3460 = vmatpush1.xpose.msra.mxu0 0.0
      %3461 = vmatprep.subr.mxu0 0.0
      %3462 = vmatpush1.xpose.msra.mxu0 0.0
      %3463 = vmatprep.subr.mxu0 0.0
      %3464 = vmatpush1.xpose.msra.mxu0 0.0
      %3465 = vmatprep.subr.mxu0 0.0
      %3466 = vmatpush1.xpose.msra.mxu0 0.0
      %3467 = vmatprep.subr.mxu0 0.0
      %3468 = vmatpush1.xpose.msra.mxu0 0.0
      %3469 = vmatprep.subr.mxu0 0.0
      %3470 = vmatpush1.xpose.msra.mxu0 0.0
      %3471 = vmatprep.subr.mxu0 0.0
      %3472 = vmatpush1.xpose.msra.mxu0 0.0
      %3473 = vmatprep.subr.mxu0 0.0
      %3474 = vmatpush1.xpose.msra.mxu0 0.0
      %3475 = vmatprep.subr.mxu0 0.0
      %3476 = vmatpush1.xpose.msra.mxu0 0.0
      %3477 = vmatprep.subr.mxu0 0.0
      %3478 = vmatpush1.xpose.msra.mxu0 0.0
      %3479 = vmatprep.subr.mxu0 0.0
      %3480 = vmatpush1.xpose.msra.mxu0 0.0
      %3481 = vmatprep.subr.mxu0 0.0
      %3482 = vmatpush1.xpose.msra.mxu0 0.0
      %3483 = vmatprep.subr.mxu0 0.0
      %3484 = vmatpush1.xpose.msra.mxu0 0.0
      %3485 = vmatprep.subr.mxu0 0.0
      %3486 = vmatpush1.xpose.msra.mxu0 0.0
      %3487 = vmatprep.subr.mxu0 0.0
      %3488 = vmatpush1.xpose.msra.mxu0 0.0
      %3489 = vmatprep.subr.mxu0 0.0
      %3490 = vmatpush1.xpose.msra.mxu0 0.0
      %3491 = vmatprep.subr.mxu0 0.0
      %3492 = vmatpush1.xpose.msra.mxu0 0.0
      %3493 = vmatprep.subr.mxu0 0.0
      %3494 = vmatpush1.xpose.msra.mxu0 0.0
      %3495 = vmatprep.subr.mxu0 0.0
      %3496 = vmatpush1.xpose.msra.mxu0 0.0
      %3497 = vmatprep.subr.mxu0 0.0
      %3498 = vmatpush1.xpose.msra.mxu0 0.0
      %3499 = vmatprep.subr.mxu0 0.0
      %3500 = vmatpush1.xpose.msra.mxu0 0.0
      %3501 = vmatprep.subr.mxu0 0.0
      %3502 = vmatpush1.xpose.msra.mxu0 0.0
      %3503 = vmatprep.subr.mxu0 0.0
      %3504 = vmatpush1.xpose.msra.mxu0 0.0
      %3505 = vmatprep.subr.mxu0 0.0
      %3506 = vmatpush1.xpose.msra.mxu0 0.0
      %3507 = vmatprep.subr.mxu0 0.0
      %3508 = vmatpush1.xpose.msra.mxu0 0.0
      %3509 = vmatprep.mubr.f32.mxu0 0.0
      %3510 = vmatmul.mubr.f32.gmra.mrb[0].mxu0 %v3425
      %v3511 = vpop.f32.mrb[0].mxu0
      %v3512 = vadd.f32 0.0, %v3511
      %v3513 = vpop.f32.mrb[0].mxu0
      %3514 = vmatprep.mubr.f32.mxu0 0.0
      %3515 = vmatmul.mubr.f32.gmra.mrb[0].mxu0 %v3427
      %v3516 = vpop.f32.mrb[0].mxu0
      %v3517 = vadd.f32 0.0, %v3516
      %v3518 = vpop.f32.mrb[0].mxu0
      %3519 = vmatprep.mubr.f32.mxu0 0.0
      %3520 = vmatmul.mubr.f32.gmra.mrb[0].mxu0 %v3429
      %v3521 = vpop.f32.mrb[0].mxu0
      %v3522 = vadd.f32 0.0, %v3521
      %v3523 = vpop.f32.mrb[0].mxu0
      %3524 = vmatprep.mubr.f32.mxu0 0.0
      %3525 = vmatmul.mubr.f32.gmra.mrb[0].mxu0 %v3431
      %v3526 = vpop.f32.mrb[0].mxu0
      %v3527 = vadd.f32 0.0, %v3526
      %v3528 = vpop.f32.mrb[0].mxu0
      %3529 = vmatprep.mubr.f32.mxu0 0.0
      %3530 = vmatmul.mubr.f32.gmra.mrb[0].mxu0 %v3433
      %v3531 = vpop.f32.mrb[0].mxu0
      %v3532 = vadd.f32 0.0, %v3531
      %v3533 = vpop.f32.mrb[0].mxu0
      %3534 = vmatprep.mubr.f32.mxu0 0.0
      %3535 = vmatmul.mubr.f32.gmra.mrb[0].mxu0 %v3435
      %v3536 = vpop.f32.mrb[0].mxu0
      %v3537 = vadd.f32 0.0, %v3536
      %v3538 = vpop.f32.mrb[0].mxu0
      %3539 = vmatprep.mubr.f32.mxu0 0.0
      %3540 = vmatmul.mubr.f32.gmra.mrb[0].mxu0 %v3437
      %v3541 = vpop.f32.mrb[0].mxu0
      %v3542 = vadd.f32 0.0, %v3541
      %v3543 = vpop.f32.mrb[0].mxu0
      %3544 = vmatprep.mubr.f32.mxu0 0.0
      %3545 = vmatmul.mubr.f32.gmra.mrb[0].mxu0 %v3439
      %v3546 = vpop.f32.mrb[0].mxu0
      %v3547 = vadd.f32 0.0, %v3546
      %v3548 = vpop.f32.mrb[0].mxu0
      %3549 = vdwg.mxu0
      %v3550 = vsel %vm2842, %v3512, -inf
      %3551 = vmax.xlane.f32.xlu0 %v3550
      %v3552 = vpop.xlane.xlu0 %3551
      %v3553 = vsel %vm2842, %v3517, -inf
      %3554 = vmax.xlane.f32.xlu0 %v3553
      %v3555 = vpop.xlane.xlu0 %3554
      %v3556 = vsel %vm2842, %v3522, -inf
      %3557 = vmax.xlane.f32.xlu0 %v3556
      %v3558 = vpop.xlane.xlu0 %3557
      %v3559 = vsel %vm2842, %v3527, -inf
      %3560 = vmax.xlane.f32.xlu0 %v3559
      %v3561 = vpop.xlane.xlu0 %3560
      %v3562 = vsel %vm2842, %v3532, -inf
      %3563 = vmax.xlane.f32.xlu0 %v3562
      %v3564 = vpop.xlane.xlu0 %3563
      %v3565 = vsel %vm2842, %v3537, -inf
      %3566 = vmax.xlane.f32.xlu0 %v3565
      %v3567 = vpop.xlane.xlu0 %3566
      %v3568 = vsel %vm2842, %v3542, -inf
      %3569 = vmax.xlane.f32.xlu0 %v3568
      %v3570 = vpop.xlane.xlu0 %3569
      %v3571 = vsel %vm2842, %v3547, -inf
      %3572 = vmax.xlane.f32.xlu0 %v3571
      %v3573 = vpop.xlane.xlu0 %3572
      %v3574 = vsub.f32 %v3512, %v3552
      %v3575 = vsub.f32 %v3517, %v3555
      %v3576 = vsub.f32 %v3522, %v3558
      %v3577 = vsub.f32 %v3527, %v3561
      %v3578 = vsub.f32 %v3532, %v3564
      %v3579 = vsub.f32 %v3537, %v3567
      %v3580 = vsub.f32 %v3542, %v3570
      %v3581 = vsub.f32 %v3547, %v3573
      %v3582 = vmul.f32 %v3574, 1.442695
      %v3583 = vpow.pop %v3582
      %v3584 = vmul.f32 %v3575, 1.442695
      %v3585 = vpow.pop %v3584
      %v3586 = vmul.f32 %v3576, 1.442695
      %v3587 = vpow.pop %v3586
      %v3588 = vmul.f32 %v3577, 1.442695
      %v3589 = vpow.pop %v3588
      %v3590 = vmul.f32 %v3578, 1.442695
      %v3591 = vpow.pop %v3590
      %v3592 = vmul.f32 %v3579, 1.442695
      %v3593 = vpow.pop %v3592
      %v3594 = vmul.f32 %v3580, 1.442695
      %v3595 = vpow.pop %v3594
      %v3596 = vmul.f32 %v3581, 1.442695
      %v3597 = vpow.pop %v3596
      %v3598 = vsel %vm2842, %v3583, 0.0
      %3599 = vadd.xlane.f32.xlu0 %v3598
      %v3600 = vpop.xlane.xlu0 %3599
      %v3601 = vsel %vm2842, %v3585, 0.0
      %3602 = vadd.xlane.f32.xlu0 %v3601
      %v3603 = vpop.xlane.xlu0 %3602
      %v3604 = vsel %vm2842, %v3587, 0.0
      %3605 = vadd.xlane.f32.xlu0 %v3604
      %v3606 = vpop.xlane.xlu0 %3605
      %v3607 = vsel %vm2842, %v3589, 0.0
      %3608 = vadd.xlane.f32.xlu0 %v3607
      %v3609 = vpop.xlane.xlu0 %3608
      %v3610 = vsel %vm2842, %v3591, 0.0
      %3611 = vadd.xlane.f32.xlu0 %v3610
      %v3612 = vpop.xlane.xlu0 %3611
      %v3613 = vsel %vm2842, %v3593, 0.0
      %3614 = vadd.xlane.f32.xlu0 %v3613
      %v3615 = vpop.xlane.xlu0 %3614
      %v3616 = vsel %vm2842, %v3595, 0.0
      %3617 = vadd.xlane.f32.xlu0 %v3616
      %v3618 = vpop.xlane.xlu0 %3617
      %v3619 = vsel %vm2842, %v3597, 0.0
      %3620 = vadd.xlane.f32.xlu0 %v3619
      %v3621 = vpop.xlane.xlu0 %3620
      %v3622 = vrcp.pop %v3600
      %v3623 = vrcp.pop %v3603
      %v3624 = vrcp.pop %v3606
      %v3625 = vrcp.pop %v3609
      %v3626 = vrcp.pop %v3612
      %v3627 = vrcp.pop %v3615
      %v3628 = vrcp.pop %v3618
      %v3629 = vrcp.pop %v3621
      %v3630 = vmul.f32 %v3583, %v3622
      %v3631 = vmul.f32 %v3585, %v3623
      %v3632 = vmul.f32 %v3587, %v3624
      %v3633 = vmul.f32 %v3589, %v3625
      %v3634 = vmul.f32 %v3591, %v3626
      %v3635 = vmul.f32 %v3593, %v3627
      %v3636 = vmul.f32 %v3595, %v3628
      %v3637 = vmul.f32 %v3597, %v3629
      %3638 = vrot.lane.b32.xlu0 %v3037, 108
      %v3639 = vpop.permute.xlu0 %3638
      %3640 = vrot.lane.b32.xlu0 %v3042, 108
      %v3641 = vpop.permute.xlu0 %3640
      %v3645 = vsel %vm2842, %v3630, 0
      %v3648 = vsel %vm2842, %v3631, 0
      %v3651 = vsel %vm2842, %v3632, 0
      %v3654 = vsel %vm2842, %v3633, 0
      %v3657 = vsel %vm2842, %v3634, 0
      %v3660 = vsel %vm2842, %v3635, 0
      %v3663 = vsel %vm2842, %v3636, 0
      %v3666 = vsel %vm2842, %v3637, 0
      %3668 = vmatprep.subr.mxu0 0.0
      %3669 = vmatpush1.msra.mxu0 %v3639
      %3670 = vmatprep.subr.mxu0 0.0
      %3671 = vmatpush1.msra.mxu0 %v3641
      %3672 = vmatprep.subr.mxu0 0.0
      %3673 = vmatpush1.msra.mxu0 0.0
      %3674 = vmatprep.subr.mxu0 0.0
      %3675 = vmatpush1.msra.mxu0 0.0
      %3676 = vmatprep.subr.mxu0 0.0
      %3677 = vmatpush1.msra.mxu0 0.0
      %3678 = vmatprep.subr.mxu0 0.0
      %3679 = vmatpush1.msra.mxu0 0.0
      %3680 = vmatprep.subr.mxu0 0.0
      %3681 = vmatpush1.msra.mxu0 0.0
      %3682 = vmatprep.subr.mxu0 0.0
      %3683 = vmatpush1.msra.mxu0 0.0
      %3684 = vmatprep.subr.mxu0 0.0
      %3685 = vmatpush1.msra.mxu0 0.0
      %3686 = vmatprep.subr.mxu0 0.0
      %3687 = vmatpush1.msra.mxu0 0.0
      %3688 = vmatprep.subr.mxu0 0.0
      %3689 = vmatpush1.msra.mxu0 0.0
      %3690 = vmatprep.subr.mxu0 0.0
      %3691 = vmatpush1.msra.mxu0 0.0
      %3692 = vmatprep.subr.mxu0 0.0
      %3693 = vmatpush1.msra.mxu0 0.0
      %3694 = vmatprep.subr.mxu0 0.0
      %3695 = vmatpush1.msra.mxu0 0.0
      %3696 = vmatprep.subr.mxu0 0.0
      %3697 = vmatpush1.msra.mxu0 0.0
      %3698 = vmatprep.subr.mxu0 0.0
      %3699 = vmatpush1.msra.mxu0 0.0
      %3700 = vmatprep.subr.mxu0 0.0
      %3701 = vmatpush1.msra.mxu0 0.0
      %3702 = vmatprep.subr.mxu0 0.0
      %3703 = vmatpush1.msra.mxu0 0.0
      %3704 = vmatprep.subr.mxu0 0.0
      %3705 = vmatpush1.msra.mxu0 0.0
      %3706 = vmatprep.subr.mxu0 0.0
      %3707 = vmatpush1.msra.mxu0 0.0
      %3708 = vmatprep.subr.mxu0 0.0
      %3709 = vmatpush1.msra.mxu0 0.0
      %3710 = vmatprep.subr.mxu0 0.0
      %3711 = vmatpush1.msra.mxu0 0.0
      %3712 = vmatprep.subr.mxu0 0.0
      %3713 = vmatpush1.msra.mxu0 0.0
      %3714 = vmatprep.subr.mxu0 0.0
      %3715 = vmatpush1.msra.mxu0 0.0
      %3716 = vmatprep.subr.mxu0 0.0
      %3717 = vmatpush1.msra.mxu0 0.0
      %3718 = vmatprep.subr.mxu0 0.0
      %3719 = vmatpush1.msra.mxu0 0.0
      %3720 = vmatprep.subr.mxu0 0.0
      %3721 = vmatpush1.msra.mxu0 0.0
      %3722 = vmatprep.subr.mxu0 0.0
      %3723 = vmatpush1.msra.mxu0 0.0
      %3724 = vmatprep.subr.mxu0 0.0
      %3725 = vmatpush1.msra.mxu0 0.0
      %3726 = vmatprep.subr.mxu0 0.0
      %3727 = vmatpush1.msra.mxu0 0.0
      %3728 = vmatprep.subr.mxu0 0.0
      %3729 = vmatpush1.msra.mxu0 0.0
      %3730 = vmatprep.subr.mxu0 0.0
      %3731 = vmatpush1.msra.mxu0 0.0
      %3732 = vmatprep.mubr.f32.mxu0 0.0
      %3733 = vmatmul.mubr.f32.gmra.mrb[0].mxu0 %v3645
      %v3734 = vpop.f32.mrb[0].mxu0
      %v3735 = vadd.f32 0.0, %v3734
      %v3736 = vpop.f32.mrb[0].mxu0
      %3737 = vmatprep.mubr.f32.mxu0 0.0
      %3738 = vmatmul.mubr.f32.gmra.mrb[0].mxu0 %v3648
      %v3739 = vpop.f32.mrb[0].mxu0
      %v3740 = vadd.f32 0.0, %v3739
      %v3741 = vpop.f32.mrb[0].mxu0
      %3742 = vmatprep.mubr.f32.mxu0 0.0
      %3743 = vmatmul.mubr.f32.gmra.mrb[0].mxu0 %v3651
      %v3744 = vpop.f32.mrb[0].mxu0
      %v3745 = vadd.f32 0.0, %v3744
      %v3746 = vpop.f32.mrb[0].mxu0
      %3747 = vmatprep.mubr.f32.mxu0 0.0
      %3748 = vmatmul.mubr.f32.gmra.mrb[0].mxu0 %v3654
      %v3749 = vpop.f32.mrb[0].mxu0
      %v3750 = vadd.f32 0.0, %v3749
      %v3751 = vpop.f32.mrb[0].mxu0
      %3752 = vmatprep.mubr.f32.mxu0 0.0
      %3753 = vmatmul.mubr.f32.gmra.mrb[0].mxu0 %v3657
      %v3754 = vpop.f32.mrb[0].mxu0
      %v3755 = vadd.f32 0.0, %v3754
      %v3756 = vpop.f32.mrb[0].mxu0
      %3757 = vmatprep.mubr.f32.mxu0 0.0
      %3758 = vmatmul.mubr.f32.gmra.mrb[0].mxu0 %v3660
      %v3759 = vpop.f32.mrb[0].mxu0
      %v3760 = vadd.f32 0.0, %v3759
      %v3761 = vpop.f32.mrb[0].mxu0
      %3762 = vmatprep.mubr.f32.mxu0 0.0
      %3763 = vmatmul.mubr.f32.gmra.mrb[0].mxu0 %v3663
      %v3764 = vpop.f32.mrb[0].mxu0
      %v3765 = vadd.f32 0.0, %v3764
      %v3766 = vpop.f32.mrb[0].mxu0
      %3767 = vmatprep.mubr.f32.mxu0 0.0
      %3768 = vmatmul.mubr.f32.gmra.mrb[0].mxu0 %v3666
      %v3769 = vpop.f32.mrb[0].mxu0
      %v3770 = vadd.f32 0.0, %v3769
      %v3771 = vpop.f32.mrb[0].mxu0
      %3772 = vdwg.mxu0
      %v3774 = vrot.slane %v3045, 4
      %v3776 = vsel %vm640, %v3735, 0
      %v3779 = vsel %vm640, %v3740, 0
      %v3782 = vsel %vm640, %v3745, 0
      %v3785 = vsel %vm640, %v3750, 0
      %v3788 = vsel %vm640, %v3755, 0
      %v3791 = vsel %vm640, %v3760, 0
      %v3794 = vsel %vm640, %v3765, 0
      %v3797 = vsel %vm640, %v3770, 0
      %v3799 = vsel %vm1472, %v3774, 0
      %3801 = vmatprep.subr.mxu0 0.0
      %3802 = vmatpush1.msra.mxu0 %v3799
      %3803 = vmatprep.subr.mxu0 0.0
      %3804 = vmatpush1.msra.mxu0 0.0
      %3805 = vmatprep.subr.mxu0 0.0
      %3806 = vmatpush1.msra.mxu0 0.0
      %3807 = vmatprep.subr.mxu0 0.0
      %3808 = vmatpush1.msra.mxu0 0.0
      %3809 = vmatprep.subr.mxu0 0.0
      %3810 = vmatpush1.msra.mxu0 0.0
      %3811 = vmatprep.subr.mxu0 0.0
      %3812 = vmatpush1.msra.mxu0 0.0
      %3813 = vmatprep.subr.mxu0 0.0
      %3814 = vmatpush1.msra.mxu0 0.0
      %3815 = vmatprep.subr.mxu0 0.0
      %3816 = vmatpush1.msra.mxu0 0.0
      %3817 = vmatprep.subr.mxu0 0.0
      %3818 = vmatpush1.msra.mxu0 0.0
      %3819 = vmatprep.subr.mxu0 0.0
      %3820 = vmatpush1.msra.mxu0 0.0
      %3821 = vmatprep.subr.mxu0 0.0
      %3822 = vmatpush1.msra.mxu0 0.0
      %3823 = vmatprep.subr.mxu0 0.0
      %3824 = vmatpush1.msra.mxu0 0.0
      %3825 = vmatprep.subr.mxu0 0.0
      %3826 = vmatpush1.msra.mxu0 0.0
      %3827 = vmatprep.subr.mxu0 0.0
      %3828 = vmatpush1.msra.mxu0 0.0
      %3829 = vmatprep.subr.mxu0 0.0
      %3830 = vmatpush1.msra.mxu0 0.0
      %3831 = vmatprep.subr.mxu0 0.0
      %3832 = vmatpush1.msra.mxu0 0.0
      %3833 = vmatprep.subr.mxu0 0.0
      %3834 = vmatpush1.msra.mxu0 0.0
      %3835 = vmatprep.subr.mxu0 0.0
      %3836 = vmatpush1.msra.mxu0 0.0
      %3837 = vmatprep.subr.mxu0 0.0
      %3838 = vmatpush1.msra.mxu0 0.0
      %3839 = vmatprep.subr.mxu0 0.0
      %3840 = vmatpush1.msra.mxu0 0.0
      %3841 = vmatprep.subr.mxu0 0.0
      %3842 = vmatpush1.msra.mxu0 0.0
      %3843 = vmatprep.subr.mxu0 0.0
      %3844 = vmatpush1.msra.mxu0 0.0
      %3845 = vmatprep.subr.mxu0 0.0
      %3846 = vmatpush1.msra.mxu0 0.0
      %3847 = vmatprep.subr.mxu0 0.0
      %3848 = vmatpush1.msra.mxu0 0.0
      %3849 = vmatprep.subr.mxu0 0.0
      %3850 = vmatpush1.msra.mxu0 0.0
      %3851 = vmatprep.subr.mxu0 0.0
      %3852 = vmatpush1.msra.mxu0 0.0
      %3853 = vmatprep.subr.mxu0 0.0
      %3854 = vmatpush1.msra.mxu0 0.0
      %3855 = vmatprep.subr.mxu0 0.0
      %3856 = vmatpush1.msra.mxu0 0.0
      %3857 = vmatprep.subr.mxu0 0.0
      %3858 = vmatpush1.msra.mxu0 0.0
      %3859 = vmatprep.subr.mxu0 0.0
      %3860 = vmatpush1.msra.mxu0 0.0
      %3861 = vmatprep.subr.mxu0 0.0
      %3862 = vmatpush1.msra.mxu0 0.0
      %3863 = vmatprep.subr.mxu0 0.0
      %3864 = vmatpush1.msra.mxu0 0.0
      %3865 = vmatprep.mubr.f32.mxu0 0.0
      %3866 = vmatmul.mubr.f32.gmra.mrb[0].mxu0 %v3776
      %v3867 = vpop.f32.mrb[0].mxu0
      %v3868 = vadd.f32 0.0, %v3867
      %v3869 = vpop.f32.mrb[0].mxu0
      %3870 = vmatprep.mubr.f32.mxu0 0.0
      %3871 = vmatmul.mubr.f32.gmra.mrb[0].mxu0 %v3779
      %v3872 = vpop.f32.mrb[0].mxu0
      %v3873 = vadd.f32 0.0, %v3872
      %v3874 = vpop.f32.mrb[0].mxu0
      %3875 = vmatprep.mubr.f32.mxu0 0.0
      %3876 = vmatmul.mubr.f32.gmra.mrb[0].mxu0 %v3782
      %v3877 = vpop.f32.mrb[0].mxu0
      %v3878 = vadd.f32 0.0, %v3877
      %v3879 = vpop.f32.mrb[0].mxu0
      %3880 = vmatprep.mubr.f32.mxu0 0.0
      %3881 = vmatmul.mubr.f32.gmra.mrb[0].mxu0 %v3785
      %v3882 = vpop.f32.mrb[0].mxu0
      %v3883 = vadd.f32 0.0, %v3882
      %v3884 = vpop.f32.mrb[0].mxu0
      %3885 = vmatprep.mubr.f32.mxu0 0.0
      %3886 = vmatmul.mubr.f32.gmra.mrb[0].mxu0 %v3788
      %v3887 = vpop.f32.mrb[0].mxu0
      %v3888 = vadd.f32 0.0, %v3887
      %v3889 = vpop.f32.mrb[0].mxu0
      %3890 = vmatprep.mubr.f32.mxu0 0.0
      %3891 = vmatmul.mubr.f32.gmra.mrb[0].mxu0 %v3791
      %v3892 = vpop.f32.mrb[0].mxu0
      %v3893 = vadd.f32 0.0, %v3892
      %v3894 = vpop.f32.mrb[0].mxu0
      %3895 = vmatprep.mubr.f32.mxu0 0.0
      %3896 = vmatmul.mubr.f32.gmra.mrb[0].mxu0 %v3794
      %v3897 = vpop.f32.mrb[0].mxu0
      %v3898 = vadd.f32 0.0, %v3897
      %v3899 = vpop.f32.mrb[0].mxu0
      %3900 = vmatprep.mubr.f32.mxu0 0.0
      %3901 = vmatmul.mubr.f32.gmra.mrb[0].mxu0 %v3797
      %v3902 = vpop.f32.mrb[0].mxu0
      %v3903 = vadd.f32 0.0, %v3902
      %v3904 = vpop.f32.mrb[0].mxu0
      %3905 = vdwg.mxu0
      %v3907 = vsel %vm640, %v3367, 0
      %v3910 = vsel %vm640, %v3372, 0
      %v3913 = vsel %vm640, %v3377, 0
      %v3916 = vsel %vm640, %v3382, 0
      %v3919 = vsel %vm640, %v3387, 0
      %v3922 = vsel %vm640, %v3392, 0
      %v3925 = vsel %vm640, %v3397, 0
      %v3928 = vsel %vm640, %v3402, 0
      %v3930 = vsel %vm1472, %v3045, 0
      %3932 = vmatprep.subr.mxu0 0.0
      %3933 = vmatpush1.msra.mxu0 %v3930
      %3934 = vmatprep.subr.mxu0 0.0
      %3935 = vmatpush1.msra.mxu0 0.0
      %3936 = vmatprep.subr.mxu0 0.0
      %3937 = vmatpush1.msra.mxu0 0.0
      %3938 = vmatprep.subr.mxu0 0.0
      %3939 = vmatpush1.msra.mxu0 0.0
      %3940 = vmatprep.subr.mxu0 0.0
      %3941 = vmatpush1.msra.mxu0 0.0
      %3942 = vmatprep.subr.mxu0 0.0
      %3943 = vmatpush1.msra.mxu0 0.0
      %3944 = vmatprep.subr.mxu0 0.0
      %3945 = vmatpush1.msra.mxu0 0.0
      %3946 = vmatprep.subr.mxu0 0.0
      %3947 = vmatpush1.msra.mxu0 0.0
      %3948 = vmatprep.subr.mxu0 0.0
      %3949 = vmatpush1.msra.mxu0 0.0
      %3950 = vmatprep.subr.mxu0 0.0
      %3951 = vmatpush1.msra.mxu0 0.0
      %3952 = vmatprep.subr.mxu0 0.0
      %3953 = vmatpush1.msra.mxu0 0.0
      %3954 = vmatprep.subr.mxu0 0.0
      %3955 = vmatpush1.msra.mxu0 0.0
      %3956 = vmatprep.subr.mxu0 0.0
      %3957 = vmatpush1.msra.mxu0 0.0
      %3958 = vmatprep.subr.mxu0 0.0
      %3959 = vmatpush1.msra.mxu0 0.0
      %3960 = vmatprep.subr.mxu0 0.0
      %3961 = vmatpush1.msra.mxu0 0.0
      %3962 = vmatprep.subr.mxu0 0.0
      %3963 = vmatpush1.msra.mxu0 0.0
      %3964 = vmatprep.subr.mxu0 0.0
      %3965 = vmatpush1.msra.mxu0 0.0
      %3966 = vmatprep.subr.mxu0 0.0
      %3967 = vmatpush1.msra.mxu0 0.0
      %3968 = vmatprep.subr.mxu0 0.0
      %3969 = vmatpush1.msra.mxu0 0.0
      %3970 = vmatprep.subr.mxu0 0.0
      %3971 = vmatpush1.msra.mxu0 0.0
      %3972 = vmatprep.subr.mxu0 0.0
      %3973 = vmatpush1.msra.mxu0 0.0
      %3974 = vmatprep.subr.mxu0 0.0
      %3975 = vmatpush1.msra.mxu0 0.0
      %3976 = vmatprep.subr.mxu0 0.0
      %3977 = vmatpush1.msra.mxu0 0.0
      %3978 = vmatprep.subr.mxu0 0.0
      %3979 = vmatpush1.msra.mxu0 0.0
      %3980 = vmatprep.subr.mxu0 0.0
      %3981 = vmatpush1.msra.mxu0 0.0
      %3982 = vmatprep.subr.mxu0 0.0
      %3983 = vmatpush1.msra.mxu0 0.0
      %3984 = vmatprep.subr.mxu0 0.0
      %3985 = vmatpush1.msra.mxu0 0.0
      %3986 = vmatprep.subr.mxu0 0.0
      %3987 = vmatpush1.msra.mxu0 0.0
      %3988 = vmatprep.subr.mxu0 0.0
      %3989 = vmatpush1.msra.mxu0 0.0
      %3990 = vmatprep.subr.mxu0 0.0
      %3991 = vmatpush1.msra.mxu0 0.0
      %3992 = vmatprep.subr.mxu0 0.0
      %3993 = vmatpush1.msra.mxu0 0.0
      %3994 = vmatprep.subr.mxu0 0.0
      %3995 = vmatpush1.msra.mxu0 0.0
      %3996 = vmatprep.mubr.f32.mxu0 0.0
      %3997 = vmatmul.mubr.f32.gmra.mrb[0].mxu0 %v3907
      %v3998 = vpop.f32.mrb[0].mxu0
      %v3999 = vadd.f32 %v3868, %v3998
      %v4000 = vpop.f32.mrb[0].mxu0
      %4001 = vmatprep.mubr.f32.mxu0 0.0
      %4002 = vmatmul.mubr.f32.gmra.mrb[0].mxu0 %v3910
      %v4003 = vpop.f32.mrb[0].mxu0
      %v4004 = vadd.f32 %v3873, %v4003
      %v4005 = vpop.f32.mrb[0].mxu0
      %4006 = vmatprep.mubr.f32.mxu0 0.0
      %4007 = vmatmul.mubr.f32.gmra.mrb[0].mxu0 %v3913
      %v4008 = vpop.f32.mrb[0].mxu0
      %v4009 = vadd.f32 %v3878, %v4008
      %v4010 = vpop.f32.mrb[0].mxu0
      %4011 = vmatprep.mubr.f32.mxu0 0.0
      %4012 = vmatmul.mubr.f32.gmra.mrb[0].mxu0 %v3916
      %v4013 = vpop.f32.mrb[0].mxu0
      %v4014 = vadd.f32 %v3883, %v4013
      %v4015 = vpop.f32.mrb[0].mxu0
      %4016 = vmatprep.mubr.f32.mxu0 0.0
      %4017 = vmatmul.mubr.f32.gmra.mrb[0].mxu0 %v3919
      %v4018 = vpop.f32.mrb[0].mxu0
      %v4019 = vadd.f32 %v3888, %v4018
      %v4020 = vpop.f32.mrb[0].mxu0
      %4021 = vmatprep.mubr.f32.mxu0 0.0
      %4022 = vmatmul.mubr.f32.gmra.mrb[0].mxu0 %v3922
      %v4023 = vpop.f32.mrb[0].mxu0
      %v4024 = vadd.f32 %v3893, %v4023
      %v4025 = vpop.f32.mrb[0].mxu0
      %4026 = vmatprep.mubr.f32.mxu0 0.0
      %4027 = vmatmul.mubr.f32.gmra.mrb[0].mxu0 %v3925
      %v4028 = vpop.f32.mrb[0].mxu0
      %v4029 = vadd.f32 %v3898, %v4028
      %v4030 = vpop.f32.mrb[0].mxu0
      %4031 = vmatprep.mubr.f32.mxu0 0.0
      %4032 = vmatmul.mubr.f32.gmra.mrb[0].mxu0 %v3928
      %v4033 = vpop.f32.mrb[0].mxu0
      %v4034 = vadd.f32 %v3903, %v4033
      %v4035 = vpop.f32.mrb[0].mxu0
      %4036 = vdwg.mxu0
      %4037 = vrot.lane.b32.xlu0 %v2922, 120
      %v4038 = vpop.permute.xlu0 %4037
      %4039 = vrot.lane.b32.xlu0 %v2927, 120
      %v4040 = vpop.permute.xlu0 %4039
      %4041 = vrot.lane.b32.xlu0 %v2932, 120
      %v4042 = vpop.permute.xlu0 %4041
      %4043 = vrot.lane.b32.xlu0 %v2937, 120
      %v4044 = vpop.permute.xlu0 %4043
      %4045 = vrot.lane.b32.xlu0 %v2942, 120
      %v4046 = vpop.permute.xlu0 %4045
      %4047 = vrot.lane.b32.xlu0 %v2947, 120
      %v4048 = vpop.permute.xlu0 %4047
      %4049 = vrot.lane.b32.xlu0 %v2952, 120
      %v4050 = vpop.permute.xlu0 %4049
      %4051 = vrot.lane.b32.xlu0 %v2957, 120
      %v4052 = vpop.permute.xlu0 %4051
      %4053 = vrot.lane.b32.xlu0 %v3037, 120
      %v4054 = vpop.permute.xlu0 %4053
      %4055 = vrot.lane.b32.xlu0 %v3042, 120
      %v4056 = vpop.permute.xlu0 %4055
      %v4057 = vsel %vm640, %v4038, 0
      %v4059 = vsel %vm640, %v4040, 0
      %v4061 = vsel %vm640, %v4042, 0
      %v4063 = vsel %vm640, %v4044, 0
      %v4065 = vsel %vm640, %v4046, 0
      %v4067 = vsel %vm640, %v4048, 0
      %v4069 = vsel %vm640, %v4050, 0
      %v4071 = vsel %vm640, %v4052, 0
      %v4073 = vsel %vm640, %v4054, 0
      %v4075 = vsel %vm640, %v4056, 0
      %4077 = vmatprep.subr.mxu0 0.0
      %4078 = vmatpush1.xpose.msra.mxu0 %v4073
      %4079 = vmatprep.subr.mxu0 0.0
      %4080 = vmatpush1.xpose.msra.mxu0 %v4075
      %4081 = vmatprep.subr.mxu0 0.0
      %4082 = vmatpush1.xpose.msra.mxu0 0.0
      %4083 = vmatprep.subr.mxu0 0.0
      %4084 = vmatpush1.xpose.msra.mxu0 0.0
      %4085 = vmatprep.subr.mxu0 0.0
      %4086 = vmatpush1.xpose.msra.mxu0 0.0
      %4087 = vmatprep.subr.mxu0 0.0
      %4088 = vmatpush1.xpose.msra.mxu0 0.0
      %4089 = vmatprep.subr.mxu0 0.0
      %4090 = vmatpush1.xpose.msra.mxu0 0.0
      %4091 = vmatprep.subr.mxu0 0.0
      %4092 = vmatpush1.xpose.msra.mxu0 0.0
      %4093 = vmatprep.subr.mxu0 0.0
      %4094 = vmatpush1.xpose.msra.mxu0 0.0
      %4095 = vmatprep.subr.mxu0 0.0
      %4096 = vmatpush1.xpose.msra.mxu0 0.0
      %4097 = vmatprep.subr.mxu0 0.0
      %4098 = vmatpush1.xpose.msra.mxu0 0.0
      %4099 = vmatprep.subr.mxu0 0.0
      %4100 = vmatpush1.xpose.msra.mxu0 0.0
      %4101 = vmatprep.subr.mxu0 0.0
      %4102 = vmatpush1.xpose.msra.mxu0 0.0
      %4103 = vmatprep.subr.mxu0 0.0
      %4104 = vmatpush1.xpose.msra.mxu0 0.0
      %4105 = vmatprep.subr.mxu0 0.0
      %4106 = vmatpush1.xpose.msra.mxu0 0.0
      %4107 = vmatprep.subr.mxu0 0.0
      %4108 = vmatpush1.xpose.msra.mxu0 0.0
      %4109 = vmatprep.subr.mxu0 0.0
      %4110 = vmatpush1.xpose.msra.mxu0 0.0
      %4111 = vmatprep.subr.mxu0 0.0
      %4112 = vmatpush1.xpose.msra.mxu0 0.0
      %4113 = vmatprep.subr.mxu0 0.0
      %4114 = vmatpush1.xpose.msra.mxu0 0.0
      %4115 = vmatprep.subr.mxu0 0.0
      %4116 = vmatpush1.xpose.msra.mxu0 0.0
      %4117 = vmatprep.subr.mxu0 0.0
      %4118 = vmatpush1.xpose.msra.mxu0 0.0
      %4119 = vmatprep.subr.mxu0 0.0
      %4120 = vmatpush1.xpose.msra.mxu0 0.0
      %4121 = vmatprep.subr.mxu0 0.0
      %4122 = vmatpush1.xpose.msra.mxu0 0.0
      %4123 = vmatprep.subr.mxu0 0.0
      %4124 = vmatpush1.xpose.msra.mxu0 0.0
      %4125 = vmatprep.subr.mxu0 0.0
      %4126 = vmatpush1.xpose.msra.mxu0 0.0
      %4127 = vmatprep.subr.mxu0 0.0
      %4128 = vmatpush1.xpose.msra.mxu0 0.0
      %4129 = vmatprep.subr.mxu0 0.0
      %4130 = vmatpush1.xpose.msra.mxu0 0.0
      %4131 = vmatprep.subr.mxu0 0.0
      %4132 = vmatpush1.xpose.msra.mxu0 0.0
      %4133 = vmatprep.subr.mxu0 0.0
      %4134 = vmatpush1.xpose.msra.mxu0 0.0
      %4135 = vmatprep.subr.mxu0 0.0
      %4136 = vmatpush1.xpose.msra.mxu0 0.0
      %4137 = vmatprep.subr.mxu0 0.0
      %4138 = vmatpush1.xpose.msra.mxu0 0.0
      %4139 = vmatprep.subr.mxu0 0.0
      %4140 = vmatpush1.xpose.msra.mxu0 0.0
      %4141 = vmatprep.mubr.f32.mxu0 0.0
      %4142 = vmatmul.mubr.f32.gmra.mrb[0].mxu0 %v4057
      %v4143 = vpop.f32.mrb[0].mxu0
      %v4144 = vadd.f32 0.0, %v4143
      %v4145 = vpop.f32.mrb[0].mxu0
      %4146 = vmatprep.mubr.f32.mxu0 0.0
      %4147 = vmatmul.mubr.f32.gmra.mrb[0].mxu0 %v4059
      %v4148 = vpop.f32.mrb[0].mxu0
      %v4149 = vadd.f32 0.0, %v4148
      %v4150 = vpop.f32.mrb[0].mxu0
      %4151 = vmatprep.mubr.f32.mxu0 0.0
      %4152 = vmatmul.mubr.f32.gmra.mrb[0].mxu0 %v4061
      %v4153 = vpop.f32.mrb[0].mxu0
      %v4154 = vadd.f32 0.0, %v4153
      %v4155 = vpop.f32.mrb[0].mxu0
      %4156 = vmatprep.mubr.f32.mxu0 0.0
      %4157 = vmatmul.mubr.f32.gmra.mrb[0].mxu0 %v4063
      %v4158 = vpop.f32.mrb[0].mxu0
      %v4159 = vadd.f32 0.0, %v4158
      %v4160 = vpop.f32.mrb[0].mxu0
      %4161 = vmatprep.mubr.f32.mxu0 0.0
      %4162 = vmatmul.mubr.f32.gmra.mrb[0].mxu0 %v4065
      %v4163 = vpop.f32.mrb[0].mxu0
      %v4164 = vadd.f32 0.0, %v4163
      %v4165 = vpop.f32.mrb[0].mxu0
      %4166 = vmatprep.mubr.f32.mxu0 0.0
      %4167 = vmatmul.mubr.f32.gmra.mrb[0].mxu0 %v4067
      %v4168 = vpop.f32.mrb[0].mxu0
      %v4169 = vadd.f32 0.0, %v4168
      %v4170 = vpop.f32.mrb[0].mxu0
      %4171 = vmatprep.mubr.f32.mxu0 0.0
      %4172 = vmatmul.mubr.f32.gmra.mrb[0].mxu0 %v4069
      %v4173 = vpop.f32.mrb[0].mxu0
      %v4174 = vadd.f32 0.0, %v4173
      %v4175 = vpop.f32.mrb[0].mxu0
      %4176 = vmatprep.mubr.f32.mxu0 0.0
      %4177 = vmatmul.mubr.f32.gmra.mrb[0].mxu0 %v4071
      %v4178 = vpop.f32.mrb[0].mxu0
      %v4179 = vadd.f32 0.0, %v4178
      %v4180 = vpop.f32.mrb[0].mxu0
      %4181 = vdwg.mxu0
      %v4182 = vsel %vm2842, %v4144, -inf
      %4183 = vmax.xlane.f32.xlu0 %v4182
      %v4184 = vpop.xlane.xlu0 %4183
      %v4185 = vsel %vm2842, %v4149, -inf
      %4186 = vmax.xlane.f32.xlu0 %v4185
      %v4187 = vpop.xlane.xlu0 %4186
      %v4188 = vsel %vm2842, %v4154, -inf
      %4189 = vmax.xlane.f32.xlu0 %v4188
      %v4190 = vpop.xlane.xlu0 %4189
      %v4191 = vsel %vm2842, %v4159, -inf
      %4192 = vmax.xlane.f32.xlu0 %v4191
      %v4193 = vpop.xlane.xlu0 %4192
      %v4194 = vsel %vm2842, %v4164, -inf
      %4195 = vmax.xlane.f32.xlu0 %v4194
      %v4196 = vpop.xlane.xlu0 %4195
      %v4197 = vsel %vm2842, %v4169, -inf
      %4198 = vmax.xlane.f32.xlu0 %v4197
      %v4199 = vpop.xlane.xlu0 %4198
      %v4200 = vsel %vm2842, %v4174, -inf
      %4201 = vmax.xlane.f32.xlu0 %v4200
      %v4202 = vpop.xlane.xlu0 %4201
      %v4203 = vsel %vm2842, %v4179, -inf
      %4204 = vmax.xlane.f32.xlu0 %v4203
      %v4205 = vpop.xlane.xlu0 %4204
      %v4206 = vsub.f32 %v4144, %v4184
      %v4207 = vsub.f32 %v4149, %v4187
      %v4208 = vsub.f32 %v4154, %v4190
      %v4209 = vsub.f32 %v4159, %v4193
      %v4210 = vsub.f32 %v4164, %v4196
      %v4211 = vsub.f32 %v4169, %v4199
      %v4212 = vsub.f32 %v4174, %v4202
      %v4213 = vsub.f32 %v4179, %v4205
      %v4214 = vmul.f32 %v4206, 1.442695
      %v4215 = vpow.pop %v4214
      %v4216 = vmul.f32 %v4207, 1.442695
      %v4217 = vpow.pop %v4216
      %v4218 = vmul.f32 %v4208, 1.442695
      %v4219 = vpow.pop %v4218
      %v4220 = vmul.f32 %v4209, 1.442695
      %v4221 = vpow.pop %v4220
      %v4222 = vmul.f32 %v4210, 1.442695
      %v4223 = vpow.pop %v4222
      %v4224 = vmul.f32 %v4211, 1.442695
      %v4225 = vpow.pop %v4224
      %v4226 = vmul.f32 %v4212, 1.442695
      %v4227 = vpow.pop %v4226
      %v4228 = vmul.f32 %v4213, 1.442695
      %v4229 = vpow.pop %v4228
      %v4230 = vsel %vm2842, %v4215, 0.0
      %4231 = vadd.xlane.f32.xlu0 %v4230
      %v4232 = vpop.xlane.xlu0 %4231
      %v4233 = vsel %vm2842, %v4217, 0.0
      %4234 = vadd.xlane.f32.xlu0 %v4233
      %v4235 = vpop.xlane.xlu0 %4234
      %v4236 = vsel %vm2842, %v4219, 0.0
      %4237 = vadd.xlane.f32.xlu0 %v4236
      %v4238 = vpop.xlane.xlu0 %4237
      %v4239 = vsel %vm2842, %v4221, 0.0
      %4240 = vadd.xlane.f32.xlu0 %v4239
      %v4241 = vpop.xlane.xlu0 %4240
      %v4242 = vsel %vm2842, %v4223, 0.0
      %4243 = vadd.xlane.f32.xlu0 %v4242
      %v4244 = vpop.xlane.xlu0 %4243
      %v4245 = vsel %vm2842, %v4225, 0.0
      %4246 = vadd.xlane.f32.xlu0 %v4245
      %v4247 = vpop.xlane.xlu0 %4246
      %v4248 = vsel %vm2842, %v4227, 0.0
      %4249 = vadd.xlane.f32.xlu0 %v4248
      %v4250 = vpop.xlane.xlu0 %4249
      %v4251 = vsel %vm2842, %v4229, 0.0
      %4252 = vadd.xlane.f32.xlu0 %v4251
      %v4253 = vpop.xlane.xlu0 %4252
      %v4254 = vrcp.pop %v4232
      %v4255 = vrcp.pop %v4235
      %v4256 = vrcp.pop %v4238
      %v4257 = vrcp.pop %v4241
      %v4258 = vrcp.pop %v4244
      %v4259 = vrcp.pop %v4247
      %v4260 = vrcp.pop %v4250
      %v4261 = vrcp.pop %v4253
      %v4262 = vmul.f32 %v4215, %v4254
      %v4263 = vmul.f32 %v4217, %v4255
      %v4264 = vmul.f32 %v4219, %v4256
      %v4265 = vmul.f32 %v4221, %v4257
      %v4266 = vmul.f32 %v4223, %v4258
      %v4267 = vmul.f32 %v4225, %v4259
      %v4268 = vmul.f32 %v4227, %v4260
      %v4269 = vmul.f32 %v4229, %v4261
      %4270 = vrot.lane.b32.xlu0 %v3037, 104
      %v4271 = vpop.permute.xlu0 %4270
      %4272 = vrot.lane.b32.xlu0 %v3042, 104
      %v4273 = vpop.permute.xlu0 %4272
      %v4277 = vsel %vm2842, %v4262, 0
      %v4280 = vsel %vm2842, %v4263, 0
      %v4283 = vsel %vm2842, %v4264, 0
      %v4286 = vsel %vm2842, %v4265, 0
      %v4289 = vsel %vm2842, %v4266, 0
      %v4292 = vsel %vm2842, %v4267, 0
      %v4295 = vsel %vm2842, %v4268, 0
      %v4298 = vsel %vm2842, %v4269, 0
      %4300 = vmatprep.subr.mxu0 0.0
      %4301 = vmatpush1.msra.mxu0 %v4271
      %4302 = vmatprep.subr.mxu0 0.0
      %4303 = vmatpush1.msra.mxu0 %v4273
      %4304 = vmatprep.subr.mxu0 0.0
      %4305 = vmatpush1.msra.mxu0 0.0
      %4306 = vmatprep.subr.mxu0 0.0
      %4307 = vmatpush1.msra.mxu0 0.0
      %4308 = vmatprep.subr.mxu0 0.0
      %4309 = vmatpush1.msra.mxu0 0.0
      %4310 = vmatprep.subr.mxu0 0.0
      %4311 = vmatpush1.msra.mxu0 0.0
      %4312 = vmatprep.subr.mxu0 0.0
      %4313 = vmatpush1.msra.mxu0 0.0
      %4314 = vmatprep.subr.mxu0 0.0
      %4315 = vmatpush1.msra.mxu0 0.0
      %4316 = vmatprep.subr.mxu0 0.0
      %4317 = vmatpush1.msra.mxu0 0.0
      %4318 = vmatprep.subr.mxu0 0.0
      %4319 = vmatpush1.msra.mxu0 0.0
      %4320 = vmatprep.subr.mxu0 0.0
      %4321 = vmatpush1.msra.mxu0 0.0
      %4322 = vmatprep.subr.mxu0 0.0
      %4323 = vmatpush1.msra.mxu0 0.0
      %4324 = vmatprep.subr.mxu0 0.0
      %4325 = vmatpush1.msra.mxu0 0.0
      %4326 = vmatprep.subr.mxu0 0.0
      %4327 = vmatpush1.msra.mxu0 0.0
      %4328 = vmatprep.subr.mxu0 0.0
      %4329 = vmatpush1.msra.mxu0 0.0
      %4330 = vmatprep.subr.mxu0 0.0
      %4331 = vmatpush1.msra.mxu0 0.0
      %4332 = vmatprep.subr.mxu0 0.0
      %4333 = vmatpush1.msra.mxu0 0.0
      %4334 = vmatprep.subr.mxu0 0.0
      %4335 = vmatpush1.msra.mxu0 0.0
      %4336 = vmatprep.subr.mxu0 0.0
      %4337 = vmatpush1.msra.mxu0 0.0
      %4338 = vmatprep.subr.mxu0 0.0
      %4339 = vmatpush1.msra.mxu0 0.0
      %4340 = vmatprep.subr.mxu0 0.0
      %4341 = vmatpush1.msra.mxu0 0.0
      %4342 = vmatprep.subr.mxu0 0.0
      %4343 = vmatpush1.msra.mxu0 0.0
      %4344 = vmatprep.subr.mxu0 0.0
      %4345 = vmatpush1.msra.mxu0 0.0
      %4346 = vmatprep.subr.mxu0 0.0
      %4347 = vmatpush1.msra.mxu0 0.0
      %4348 = vmatprep.subr.mxu0 0.0
      %4349 = vmatpush1.msra.mxu0 0.0
      %4350 = vmatprep.subr.mxu0 0.0
      %4351 = vmatpush1.msra.mxu0 0.0
      %4352 = vmatprep.subr.mxu0 0.0
      %4353 = vmatpush1.msra.mxu0 0.0
      %4354 = vmatprep.subr.mxu0 0.0
      %4355 = vmatpush1.msra.mxu0 0.0
      %4356 = vmatprep.subr.mxu0 0.0
      %4357 = vmatpush1.msra.mxu0 0.0
      %4358 = vmatprep.subr.mxu0 0.0
      %4359 = vmatpush1.msra.mxu0 0.0
      %4360 = vmatprep.subr.mxu0 0.0
      %4361 = vmatpush1.msra.mxu0 0.0
      %4362 = vmatprep.subr.mxu0 0.0
      %4363 = vmatpush1.msra.mxu0 0.0
      %4364 = vmatprep.mubr.f32.mxu0 0.0
      %4365 = vmatmul.mubr.f32.gmra.mrb[0].mxu0 %v4277
      %v4366 = vpop.f32.mrb[0].mxu0
      %v4367 = vadd.f32 0.0, %v4366
      %v4368 = vpop.f32.mrb[0].mxu0
      %4369 = vmatprep.mubr.f32.mxu0 0.0
      %4370 = vmatmul.mubr.f32.gmra.mrb[0].mxu0 %v4280
      %v4371 = vpop.f32.mrb[0].mxu0
      %v4372 = vadd.f32 0.0, %v4371
      %v4373 = vpop.f32.mrb[0].mxu0
      %4374 = vmatprep.mubr.f32.mxu0 0.0
      %4375 = vmatmul.mubr.f32.gmra.mrb[0].mxu0 %v4283
      %v4376 = vpop.f32.mrb[0].mxu0
      %v4377 = vadd.f32 0.0, %v4376
      %v4378 = vpop.f32.mrb[0].mxu0
      %4379 = vmatprep.mubr.f32.mxu0 0.0
      %4380 = vmatmul.mubr.f32.gmra.mrb[0].mxu0 %v4286
      %v4381 = vpop.f32.mrb[0].mxu0
      %v4382 = vadd.f32 0.0, %v4381
      %v4383 = vpop.f32.mrb[0].mxu0
      %4384 = vmatprep.mubr.f32.mxu0 0.0
      %4385 = vmatmul.mubr.f32.gmra.mrb[0].mxu0 %v4289
      %v4386 = vpop.f32.mrb[0].mxu0
      %v4387 = vadd.f32 0.0, %v4386
      %v4388 = vpop.f32.mrb[0].mxu0
      %4389 = vmatprep.mubr.f32.mxu0 0.0
      %4390 = vmatmul.mubr.f32.gmra.mrb[0].mxu0 %v4292
      %v4391 = vpop.f32.mrb[0].mxu0
      %v4392 = vadd.f32 0.0, %v4391
      %v4393 = vpop.f32.mrb[0].mxu0
      %4394 = vmatprep.mubr.f32.mxu0 0.0
      %4395 = vmatmul.mubr.f32.gmra.mrb[0].mxu0 %v4295
      %v4396 = vpop.f32.mrb[0].mxu0
      %v4397 = vadd.f32 0.0, %v4396
      %v4398 = vpop.f32.mrb[0].mxu0
      %4399 = vmatprep.mubr.f32.mxu0 0.0
      %4400 = vmatmul.mubr.f32.gmra.mrb[0].mxu0 %v4298
      %v4401 = vpop.f32.mrb[0].mxu0
      %v4402 = vadd.f32 0.0, %v4401
      %v4403 = vpop.f32.mrb[0].mxu0
      %4404 = vdwg.mxu0
      %v4406 = vsel %vm640, %v4367, 0
      %v4409 = vsel %vm640, %v4372, 0
      %v4412 = vsel %vm640, %v4377, 0
      %v4415 = vsel %vm640, %v4382, 0
      %v4418 = vsel %vm640, %v4387, 0
      %v4421 = vsel %vm640, %v4392, 0
      %v4424 = vsel %vm640, %v4397, 0
      %v4427 = vsel %vm640, %v4402, 0
      %v4430 = vsel %vm1472, %v3046, 0
      %4432 = vmatprep.subr.mxu0 0.0
      %4433 = vmatpush1.msra.mxu0 %v4430
      %4434 = vmatprep.subr.mxu0 0.0
      %4435 = vmatpush1.msra.mxu0 0.0
      %4436 = vmatprep.subr.mxu0 0.0
      %4437 = vmatpush1.msra.mxu0 0.0
      %4438 = vmatprep.subr.mxu0 0.0
      %4439 = vmatpush1.msra.mxu0 0.0
      %4440 = vmatprep.subr.mxu0 0.0
      %4441 = vmatpush1.msra.mxu0 0.0
      %4442 = vmatprep.subr.mxu0 0.0
      %4443 = vmatpush1.msra.mxu0 0.0
      %4444 = vmatprep.subr.mxu0 0.0
      %4445 = vmatpush1.msra.mxu0 0.0
      %4446 = vmatprep.subr.mxu0 0.0
      %4447 = vmatpush1.msra.mxu0 0.0
      %4448 = vmatprep.subr.mxu0 0.0
      %4449 = vmatpush1.msra.mxu0 0.0
      %4450 = vmatprep.subr.mxu0 0.0
      %4451 = vmatpush1.msra.mxu0 0.0
      %4452 = vmatprep.subr.mxu0 0.0
      %4453 = vmatpush1.msra.mxu0 0.0
      %4454 = vmatprep.subr.mxu0 0.0
      %4455 = vmatpush1.msra.mxu0 0.0
      %4456 = vmatprep.subr.mxu0 0.0
      %4457 = vmatpush1.msra.mxu0 0.0
      %4458 = vmatprep.subr.mxu0 0.0
      %4459 = vmatpush1.msra.mxu0 0.0
      %4460 = vmatprep.subr.mxu0 0.0
      %4461 = vmatpush1.msra.mxu0 0.0
      %4462 = vmatprep.subr.mxu0 0.0
      %4463 = vmatpush1.msra.mxu0 0.0
      %4464 = vmatprep.subr.mxu0 0.0
      %4465 = vmatpush1.msra.mxu0 0.0
      %4466 = vmatprep.subr.mxu0 0.0
      %4467 = vmatpush1.msra.mxu0 0.0
      %4468 = vmatprep.subr.mxu0 0.0
      %4469 = vmatpush1.msra.mxu0 0.0
      %4470 = vmatprep.subr.mxu0 0.0
      %4471 = vmatpush1.msra.mxu0 0.0
      %4472 = vmatprep.subr.mxu0 0.0
      %4473 = vmatpush1.msra.mxu0 0.0
      %4474 = vmatprep.subr.mxu0 0.0
      %4475 = vmatpush1.msra.mxu0 0.0
      %4476 = vmatprep.subr.mxu0 0.0
      %4477 = vmatpush1.msra.mxu0 0.0
      %4478 = vmatprep.subr.mxu0 0.0
      %4479 = vmatpush1.msra.mxu0 0.0
      %4480 = vmatprep.subr.mxu0 0.0
      %4481 = vmatpush1.msra.mxu0 0.0
      %4482 = vmatprep.subr.mxu0 0.0
      %4483 = vmatpush1.msra.mxu0 0.0
      %4484 = vmatprep.subr.mxu0 0.0
      %4485 = vmatpush1.msra.mxu0 0.0
      %4486 = vmatprep.subr.mxu0 0.0
      %4487 = vmatpush1.msra.mxu0 0.0
      %4488 = vmatprep.subr.mxu0 0.0
      %4489 = vmatpush1.msra.mxu0 0.0
      %4490 = vmatprep.subr.mxu0 0.0
      %4491 = vmatpush1.msra.mxu0 0.0
      %4492 = vmatprep.subr.mxu0 0.0
      %4493 = vmatpush1.msra.mxu0 0.0
      %4494 = vmatprep.subr.mxu0 0.0
      %4495 = vmatpush1.msra.mxu0 0.0
      %4496 = vmatprep.mubr.f32.mxu0 0.0
      %4497 = vmatmul.mubr.f32.gmra.mrb[0].mxu0 %v4406
      %v4498 = vpop.f32.mrb[0].mxu0
      %v4499 = vadd.f32 0.0, %v4498
      %v4500 = vpop.f32.mrb[0].mxu0
      %4501 = vmatprep.mubr.f32.mxu0 0.0
      %4502 = vmatmul.mubr.f32.gmra.mrb[0].mxu0 %v4409
      %v4503 = vpop.f32.mrb[0].mxu0
      %v4504 = vadd.f32 0.0, %v4503
      %v4505 = vpop.f32.mrb[0].mxu0
      %4506 = vmatprep.mubr.f32.mxu0 0.0
      %4507 = vmatmul.mubr.f32.gmra.mrb[0].mxu0 %v4412
      %v4508 = vpop.f32.mrb[0].mxu0
      %v4509 = vadd.f32 0.0, %v4508
      %v4510 = vpop.f32.mrb[0].mxu0
      %4511 = vmatprep.mubr.f32.mxu0 0.0
      %4512 = vmatmul.mubr.f32.gmra.mrb[0].mxu0 %v4415
      %v4513 = vpop.f32.mrb[0].mxu0
      %v4514 = vadd.f32 0.0, %v4513
      %v4515 = vpop.f32.mrb[0].mxu0
      %4516 = vmatprep.mubr.f32.mxu0 0.0
      %4517 = vmatmul.mubr.f32.gmra.mrb[0].mxu0 %v4418
      %v4518 = vpop.f32.mrb[0].mxu0
      %v4519 = vadd.f32 0.0, %v4518
      %v4520 = vpop.f32.mrb[0].mxu0
      %4521 = vmatprep.mubr.f32.mxu0 0.0
      %4522 = vmatmul.mubr.f32.gmra.mrb[0].mxu0 %v4421
      %v4523 = vpop.f32.mrb[0].mxu0
      %v4524 = vadd.f32 0.0, %v4523
      %v4525 = vpop.f32.mrb[0].mxu0
      %4526 = vmatprep.mubr.f32.mxu0 0.0
      %4527 = vmatmul.mubr.f32.gmra.mrb[0].mxu0 %v4424
      %v4528 = vpop.f32.mrb[0].mxu0
      %v4529 = vadd.f32 0.0, %v4528
      %v4530 = vpop.f32.mrb[0].mxu0
      %4531 = vmatprep.mubr.f32.mxu0 0.0
      %4532 = vmatmul.mubr.f32.gmra.mrb[0].mxu0 %v4427
      %v4533 = vpop.f32.mrb[0].mxu0
      %v4534 = vadd.f32 0.0, %v4533
      %v4535 = vpop.f32.mrb[0].mxu0
      %4536 = vdwg.mxu0
      %v4537 = vadd.f32 %v3999, %v4499
      %v4538 = vadd.f32 %v4004, %v4504
      %v4539 = vadd.f32 %v4009, %v4509
      %v4540 = vadd.f32 %v4014, %v4514
      %v4541 = vadd.f32 %v4019, %v4519
      %v4542 = vadd.f32 %v4024, %v4524
      %v4543 = vadd.f32 %v4029, %v4529
      %v4544 = vadd.f32 %v4034, %v4534
      %4545 = vrot.lane.b32.xlu0 %v2922, 116
      %v4546 = vpop.permute.xlu0 %4545
      %4547 = vrot.lane.b32.xlu0 %v2927, 116
      %v4548 = vpop.permute.xlu0 %4547
      %4549 = vrot.lane.b32.xlu0 %v2932, 116
      %v4550 = vpop.permute.xlu0 %4549
      %4551 = vrot.lane.b32.xlu0 %v2937, 116
      %v4552 = vpop.permute.xlu0 %4551
      %4553 = vrot.lane.b32.xlu0 %v2942, 116
      %v4554 = vpop.permute.xlu0 %4553
      %4555 = vrot.lane.b32.xlu0 %v2947, 116
      %v4556 = vpop.permute.xlu0 %4555
      %4557 = vrot.lane.b32.xlu0 %v2952, 116
      %v4558 = vpop.permute.xlu0 %4557
      %4559 = vrot.lane.b32.xlu0 %v2957, 116
      %v4560 = vpop.permute.xlu0 %4559
      %4561 = vrot.lane.b32.xlu0 %v3037, 116
      %v4562 = vpop.permute.xlu0 %4561
      %4563 = vrot.lane.b32.xlu0 %v3042, 116
      %v4564 = vpop.permute.xlu0 %4563
      %v4565 = vsel %vm640, %v4546, 0
      %v4567 = vsel %vm640, %v4548, 0
      %v4569 = vsel %vm640, %v4550, 0
      %v4571 = vsel %vm640, %v4552, 0
      %v4573 = vsel %vm640, %v4554, 0
      %v4575 = vsel %vm640, %v4556, 0
      %v4577 = vsel %vm640, %v4558, 0
      %v4579 = vsel %vm640, %v4560, 0
      %v4581 = vsel %vm640, %v4562, 0
      %v4583 = vsel %vm640, %v4564, 0
      %4585 = vmatprep.subr.mxu0 0.0
      %4586 = vmatpush1.xpose.msra.mxu0 %v4581
      %4587 = vmatprep.subr.mxu0 0.0
      %4588 = vmatpush1.xpose.msra.mxu0 %v4583
      %4589 = vmatprep.subr.mxu0 0.0
      %4590 = vmatpush1.xpose.msra.mxu0 0.0
      %4591 = vmatprep.subr.mxu0 0.0
      %4592 = vmatpush1.xpose.msra.mxu0 0.0
      %4593 = vmatprep.subr.mxu0 0.0
      %4594 = vmatpush1.xpose.msra.mxu0 0.0
      %4595 = vmatprep.subr.mxu0 0.0
      %4596 = vmatpush1.xpose.msra.mxu0 0.0
      %4597 = vmatprep.subr.mxu0 0.0
      %4598 = vmatpush1.xpose.msra.mxu0 0.0
      %4599 = vmatprep.subr.mxu0 0.0
      %4600 = vmatpush1.xpose.msra.mxu0 0.0
      %4601 = vmatprep.subr.mxu0 0.0
      %4602 = vmatpush1.xpose.msra.mxu0 0.0
      %4603 = vmatprep.subr.mxu0 0.0
      %4604 = vmatpush1.xpose.msra.mxu0 0.0
      %4605 = vmatprep.subr.mxu0 0.0
      %4606 = vmatpush1.xpose.msra.mxu0 0.0
      %4607 = vmatprep.subr.mxu0 0.0
      %4608 = vmatpush1.xpose.msra.mxu0 0.0
      %4609 = vmatprep.subr.mxu0 0.0
      %4610 = vmatpush1.xpose.msra.mxu0 0.0
      %4611 = vmatprep.subr.mxu0 0.0
      %4612 = vmatpush1.xpose.msra.mxu0 0.0
      %4613 = vmatprep.subr.mxu0 0.0
      %4614 = vmatpush1.xpose.msra.mxu0 0.0
      %4615 = vmatprep.subr.mxu0 0.0
      %4616 = vmatpush1.xpose.msra.mxu0 0.0
      %4617 = vmatprep.subr.mxu0 0.0
      %4618 = vmatpush1.xpose.msra.mxu0 0.0
      %4619 = vmatprep.subr.mxu0 0.0
      %4620 = vmatpush1.xpose.msra.mxu0 0.0
      %4621 = vmatprep.subr.mxu0 0.0
      %4622 = vmatpush1.xpose.msra.mxu0 0.0
      %4623 = vmatprep.subr.mxu0 0.0
      %4624 = vmatpush1.xpose.msra.mxu0 0.0
      %4625 = vmatprep.subr.mxu0 0.0
      %4626 = vmatpush1.xpose.msra.mxu0 0.0
      %4627 = vmatprep.subr.mxu0 0.0
      %4628 = vmatpush1.xpose.msra.mxu0 0.0
      %4629 = vmatprep.subr.mxu0 0.0
      %4630 = vmatpush1.xpose.msra.mxu0 0.0
      %4631 = vmatprep.subr.mxu0 0.0
      %4632 = vmatpush1.xpose.msra.mxu0 0.0
      %4633 = vmatprep.subr.mxu0 0.0
      %4634 = vmatpush1.xpose.msra.mxu0 0.0
      %4635 = vmatprep.subr.mxu0 0.0
      %4636 = vmatpush1.xpose.msra.mxu0 0.0
      %4637 = vmatprep.subr.mxu0 0.0
      %4638 = vmatpush1.xpose.msra.mxu0 0.0
      %4639 = vmatprep.subr.mxu0 0.0
      %4640 = vmatpush1.xpose.msra.mxu0 0.0
      %4641 = vmatprep.subr.mxu0 0.0
      %4642 = vmatpush1.xpose.msra.mxu0 0.0
      %4643 = vmatprep.subr.mxu0 0.0
      %4644 = vmatpush1.xpose.msra.mxu0 0.0
      %4645 = vmatprep.subr.mxu0 0.0
      %4646 = vmatpush1.xpose.msra.mxu0 0.0
      %4647 = vmatprep.subr.mxu0 0.0
      %4648 = vmatpush1.xpose.msra.mxu0 0.0
      %4649 = vmatprep.mubr.f32.mxu0 0.0
      %4650 = vmatmul.mubr.f32.gmra.mrb[0].mxu0 %v4565
      %v4651 = vpop.f32.mrb[0].mxu0
      %v4652 = vadd.f32 0.0, %v4651
      %v4653 = vpop.f32.mrb[0].mxu0
      %4654 = vmatprep.mubr.f32.mxu0 0.0
      %4655 = vmatmul.mubr.f32.gmra.mrb[0].mxu0 %v4567
      %v4656 = vpop.f32.mrb[0].mxu0
      %v4657 = vadd.f32 0.0, %v4656
      %v4658 = vpop.f32.mrb[0].mxu0
      %4659 = vmatprep.mubr.f32.mxu0 0.0
      %4660 = vmatmul.mubr.f32.gmra.mrb[0].mxu0 %v4569
      %v4661 = vpop.f32.mrb[0].mxu0
      %v4662 = vadd.f32 0.0, %v4661
      %v4663 = vpop.f32.mrb[0].mxu0
      %4664 = vmatprep.mubr.f32.mxu0 0.0
      %4665 = vmatmul.mubr.f32.gmra.mrb[0].mxu0 %v4571
      %v4666 = vpop.f32.mrb[0].mxu0
      %v4667 = vadd.f32 0.0, %v4666
      %v4668 = vpop.f32.mrb[0].mxu0
      %4669 = vmatprep.mubr.f32.mxu0 0.0
      %4670 = vmatmul.mubr.f32.gmra.mrb[0].mxu0 %v4573
      %v4671 = vpop.f32.mrb[0].mxu0
      %v4672 = vadd.f32 0.0, %v4671
      %v4673 = vpop.f32.mrb[0].mxu0
      %4674 = vmatprep.mubr.f32.mxu0 0.0
      %4675 = vmatmul.mubr.f32.gmra.mrb[0].mxu0 %v4575
      %v4676 = vpop.f32.mrb[0].mxu0
      %v4677 = vadd.f32 0.0, %v4676
      %v4678 = vpop.f32.mrb[0].mxu0
      %4679 = vmatprep.mubr.f32.mxu0 0.0
      %4680 = vmatmul.mubr.f32.gmra.mrb[0].mxu0 %v4577
      %v4681 = vpop.f32.mrb[0].mxu0
      %v4682 = vadd.f32 0.0, %v4681
      %v4683 = vpop.f32.mrb[0].mxu0
      %4684 = vmatprep.mubr.f32.mxu0 0.0
      %4685 = vmatmul.mubr.f32.gmra.mrb[0].mxu0 %v4579
      %v4686 = vpop.f32.mrb[0].mxu0
      %v4687 = vadd.f32 0.0, %v4686
      %v4688 = vpop.f32.mrb[0].mxu0
      %4689 = vdwg.mxu0
      %v4690 = vsel %vm2842, %v4652, -inf
      %4691 = vmax.xlane.f32.xlu0 %v4690
      %v4692 = vpop.xlane.xlu0 %4691
      %v4693 = vsel %vm2842, %v4657, -inf
      %4694 = vmax.xlane.f32.xlu0 %v4693
      %v4695 = vpop.xlane.xlu0 %4694
      %v4696 = vsel %vm2842, %v4662, -inf
      %4697 = vmax.xlane.f32.xlu0 %v4696
      %v4698 = vpop.xlane.xlu0 %4697
      %v4699 = vsel %vm2842, %v4667, -inf
      %4700 = vmax.xlane.f32.xlu0 %v4699
      %v4701 = vpop.xlane.xlu0 %4700
      %v4702 = vsel %vm2842, %v4672, -inf
      %4703 = vmax.xlane.f32.xlu0 %v4702
      %v4704 = vpop.xlane.xlu0 %4703
      %v4705 = vsel %vm2842, %v4677, -inf
      %4706 = vmax.xlane.f32.xlu0 %v4705
      %v4707 = vpop.xlane.xlu0 %4706
      %v4708 = vsel %vm2842, %v4682, -inf
      %4709 = vmax.xlane.f32.xlu0 %v4708
      %v4710 = vpop.xlane.xlu0 %4709
      %v4711 = vsel %vm2842, %v4687, -inf
      %4712 = vmax.xlane.f32.xlu0 %v4711
      %v4713 = vpop.xlane.xlu0 %4712
      %v4714 = vsub.f32 %v4652, %v4692
      %v4715 = vsub.f32 %v4657, %v4695
      %v4716 = vsub.f32 %v4662, %v4698
      %v4717 = vsub.f32 %v4667, %v4701
      %v4718 = vsub.f32 %v4672, %v4704
      %v4719 = vsub.f32 %v4677, %v4707
      %v4720 = vsub.f32 %v4682, %v4710
      %v4721 = vsub.f32 %v4687, %v4713
      %v4722 = vmul.f32 %v4714, 1.442695
      %v4723 = vpow.pop %v4722
      %v4724 = vmul.f32 %v4715, 1.442695
      %v4725 = vpow.pop %v4724
      %v4726 = vmul.f32 %v4716, 1.442695
      %v4727 = vpow.pop %v4726
      %v4728 = vmul.f32 %v4717, 1.442695
      %v4729 = vpow.pop %v4728
      %v4730 = vmul.f32 %v4718, 1.442695
      %v4731 = vpow.pop %v4730
      %v4732 = vmul.f32 %v4719, 1.442695
      %v4733 = vpow.pop %v4732
      %v4734 = vmul.f32 %v4720, 1.442695
      %v4735 = vpow.pop %v4734
      %v4736 = vmul.f32 %v4721, 1.442695
      %v4737 = vpow.pop %v4736
      %v4738 = vsel %vm2842, %v4723, 0.0
      %4739 = vadd.xlane.f32.xlu0 %v4738
      %v4740 = vpop.xlane.xlu0 %4739
      %v4741 = vsel %vm2842, %v4725, 0.0
      %4742 = vadd.xlane.f32.xlu0 %v4741
      %v4743 = vpop.xlane.xlu0 %4742
      %v4744 = vsel %vm2842, %v4727, 0.0
      %4745 = vadd.xlane.f32.xlu0 %v4744
      %v4746 = vpop.xlane.xlu0 %4745
      %v4747 = vsel %vm2842, %v4729, 0.0
      %4748 = vadd.xlane.f32.xlu0 %v4747
      %v4749 = vpop.xlane.xlu0 %4748
      %v4750 = vsel %vm2842, %v4731, 0.0
      %4751 = vadd.xlane.f32.xlu0 %v4750
      %v4752 = vpop.xlane.xlu0 %4751
      %v4753 = vsel %vm2842, %v4733, 0.0
      %4754 = vadd.xlane.f32.xlu0 %v4753
      %v4755 = vpop.xlane.xlu0 %4754
      %v4756 = vsel %vm2842, %v4735, 0.0
      %4757 = vadd.xlane.f32.xlu0 %v4756
      %v4758 = vpop.xlane.xlu0 %4757
      %v4759 = vsel %vm2842, %v4737, 0.0
      %4760 = vadd.xlane.f32.xlu0 %v4759
      %v4761 = vpop.xlane.xlu0 %4760
      %v4762 = vrcp.pop %v4740
      %v4763 = vrcp.pop %v4743
      %v4764 = vrcp.pop %v4746
      %v4765 = vrcp.pop %v4749
      %v4766 = vrcp.pop %v4752
      %v4767 = vrcp.pop %v4755
      %v4768 = vrcp.pop %v4758
      %v4769 = vrcp.pop %v4761
      %v4770 = vmul.f32 %v4723, %v4762
      %v4771 = vmul.f32 %v4725, %v4763
      %v4772 = vmul.f32 %v4727, %v4764
      %v4773 = vmul.f32 %v4729, %v4765
      %v4774 = vmul.f32 %v4731, %v4766
      %v4775 = vmul.f32 %v4733, %v4767
      %v4776 = vmul.f32 %v4735, %v4768
      %v4777 = vmul.f32 %v4737, %v4769
      %4778 = vrot.lane.b32.xlu0 %v3037, 100
      %v4779 = vpop.permute.xlu0 %4778
      %4780 = vrot.lane.b32.xlu0 %v3042, 100
      %v4781 = vpop.permute.xlu0 %4780
      %v4785 = vsel %vm2842, %v4770, 0
      %v4788 = vsel %vm2842, %v4771, 0
      %v4791 = vsel %vm2842, %v4772, 0
      %v4794 = vsel %vm2842, %v4773, 0
      %v4797 = vsel %vm2842, %v4774, 0
      %v4800 = vsel %vm2842, %v4775, 0
      %v4803 = vsel %vm2842, %v4776, 0
      %v4806 = vsel %vm2842, %v4777, 0
      %4808 = vmatprep.subr.mxu0 0.0
      %4809 = vmatpush1.msra.mxu0 %v4779
      %4810 = vmatprep.subr.mxu0 0.0
      %4811 = vmatpush1.msra.mxu0 %v4781
      %4812 = vmatprep.subr.mxu0 0.0
      %4813 = vmatpush1.msra.mxu0 0.0
      %4814 = vmatprep.subr.mxu0 0.0
      %4815 = vmatpush1.msra.mxu0 0.0
      %4816 = vmatprep.subr.mxu0 0.0
      %4817 = vmatpush1.msra.mxu0 0.0
      %4818 = vmatprep.subr.mxu0 0.0
      %4819 = vmatpush1.msra.mxu0 0.0
      %4820 = vmatprep.subr.mxu0 0.0
      %4821 = vmatpush1.msra.mxu0 0.0
      %4822 = vmatprep.subr.mxu0 0.0
      %4823 = vmatpush1.msra.mxu0 0.0
      %4824 = vmatprep.subr.mxu0 0.0
      %4825 = vmatpush1.msra.mxu0 0.0
      %4826 = vmatprep.subr.mxu0 0.0
      %4827 = vmatpush1.msra.mxu0 0.0
      %4828 = vmatprep.subr.mxu0 0.0
      %4829 = vmatpush1.msra.mxu0 0.0
      %4830 = vmatprep.subr.mxu0 0.0
      %4831 = vmatpush1.msra.mxu0 0.0
      %4832 = vmatprep.subr.mxu0 0.0
      %4833 = vmatpush1.msra.mxu0 0.0
      %4834 = vmatprep.subr.mxu0 0.0
      %4835 = vmatpush1.msra.mxu0 0.0
      %4836 = vmatprep.subr.mxu0 0.0
      %4837 = vmatpush1.msra.mxu0 0.0
      %4838 = vmatprep.subr.mxu0 0.0
      %4839 = vmatpush1.msra.mxu0 0.0
      %4840 = vmatprep.subr.mxu0 0.0
      %4841 = vmatpush1.msra.mxu0 0.0
      %4842 = vmatprep.subr.mxu0 0.0
      %4843 = vmatpush1.msra.mxu0 0.0
      %4844 = vmatprep.subr.mxu0 0.0
      %4845 = vmatpush1.msra.mxu0 0.0
      %4846 = vmatprep.subr.mxu0 0.0
      %4847 = vmatpush1.msra.mxu0 0.0
      %4848 = vmatprep.subr.mxu0 0.0
      %4849 = vmatpush1.msra.mxu0 0.0
      %4850 = vmatprep.subr.mxu0 0.0
      %4851 = vmatpush1.msra.mxu0 0.0
      %4852 = vmatprep.subr.mxu0 0.0
      %4853 = vmatpush1.msra.mxu0 0.0
      %4854 = vmatprep.subr.mxu0 0.0
      %4855 = vmatpush1.msra.mxu0 0.0
      %4856 = vmatprep.subr.mxu0 0.0
      %4857 = vmatpush1.msra.mxu0 0.0
      %4858 = vmatprep.subr.mxu0 0.0
      %4859 = vmatpush1.msra.mxu0 0.0
      %4860 = vmatprep.subr.mxu0 0.0
      %4861 = vmatpush1.msra.mxu0 0.0
      %4862 = vmatprep.subr.mxu0 0.0
      %4863 = vmatpush1.msra.mxu0 0.0
      %4864 = vmatprep.subr.mxu0 0.0
      %4865 = vmatpush1.msra.mxu0 0.0
      %4866 = vmatprep.subr.mxu0 0.0
      %4867 = vmatpush1.msra.mxu0 0.0
      %4868 = vmatprep.subr.mxu0 0.0
      %4869 = vmatpush1.msra.mxu0 0.0
      %4870 = vmatprep.subr.mxu0 0.0
      %4871 = vmatpush1.msra.mxu0 0.0
      %4872 = vmatprep.mubr.f32.mxu0 0.0
      %4873 = vmatmul.mubr.f32.gmra.mrb[0].mxu0 %v4785
      %v4874 = vpop.f32.mrb[0].mxu0
      %v4875 = vadd.f32 0.0, %v4874
      %v4876 = vpop.f32.mrb[0].mxu0
      %4877 = vmatprep.mubr.f32.mxu0 0.0
      %4878 = vmatmul.mubr.f32.gmra.mrb[0].mxu0 %v4788
      %v4879 = vpop.f32.mrb[0].mxu0
      %v4880 = vadd.f32 0.0, %v4879
      %v4881 = vpop.f32.mrb[0].mxu0
      %4882 = vmatprep.mubr.f32.mxu0 0.0
      %4883 = vmatmul.mubr.f32.gmra.mrb[0].mxu0 %v4791
      %v4884 = vpop.f32.mrb[0].mxu0
      %v4885 = vadd.f32 0.0, %v4884
      %v4886 = vpop.f32.mrb[0].mxu0
      %4887 = vmatprep.mubr.f32.mxu0 0.0
      %4888 = vmatmul.mubr.f32.gmra.mrb[0].mxu0 %v4794
      %v4889 = vpop.f32.mrb[0].mxu0
      %v4890 = vadd.f32 0.0, %v4889
      %v4891 = vpop.f32.mrb[0].mxu0
      %4892 = vmatprep.mubr.f32.mxu0 0.0
      %4893 = vmatmul.mubr.f32.gmra.mrb[0].mxu0 %v4797
      %v4894 = vpop.f32.mrb[0].mxu0
      %v4895 = vadd.f32 0.0, %v4894
      %v4896 = vpop.f32.mrb[0].mxu0
      %4897 = vmatprep.mubr.f32.mxu0 0.0
      %4898 = vmatmul.mubr.f32.gmra.mrb[0].mxu0 %v4800
      %v4899 = vpop.f32.mrb[0].mxu0
      %v4900 = vadd.f32 0.0, %v4899
      %v4901 = vpop.f32.mrb[0].mxu0
      %4902 = vmatprep.mubr.f32.mxu0 0.0
      %4903 = vmatmul.mubr.f32.gmra.mrb[0].mxu0 %v4803
      %v4904 = vpop.f32.mrb[0].mxu0
      %v4905 = vadd.f32 0.0, %v4904
      %v4906 = vpop.f32.mrb[0].mxu0
      %4907 = vmatprep.mubr.f32.mxu0 0.0
      %4908 = vmatmul.mubr.f32.gmra.mrb[0].mxu0 %v4806
      %v4909 = vpop.f32.mrb[0].mxu0
      %v4910 = vadd.f32 0.0, %v4909
      %v4911 = vpop.f32.mrb[0].mxu0
      %4912 = vdwg.mxu0
      %v4913 = vrot.slane %v3046, 4
      %v4915 = vsel %vm640, %v4875, 0
      %v4918 = vsel %vm640, %v4880, 0
      %v4921 = vsel %vm640, %v4885, 0
      %v4924 = vsel %vm640, %v4890, 0
      %v4927 = vsel %vm640, %v4895, 0
      %v4930 = vsel %vm640, %v4900, 0
      %v4933 = vsel %vm640, %v4905, 0
      %v4936 = vsel %vm640, %v4910, 0
      %v4938 = vsel %vm1472, %v4913, 0
      %4940 = vmatprep.subr.mxu0 0.0
      %4941 = vmatpush1.msra.mxu0 %v4938
      %4942 = vmatprep.subr.mxu0 0.0
      %4943 = vmatpush1.msra.mxu0 0.0
      %4944 = vmatprep.subr.mxu0 0.0
      %4945 = vmatpush1.msra.mxu0 0.0
      %4946 = vmatprep.subr.mxu0 0.0
      %4947 = vmatpush1.msra.mxu0 0.0
      %4948 = vmatprep.subr.mxu0 0.0
      %4949 = vmatpush1.msra.mxu0 0.0
      %4950 = vmatprep.subr.mxu0 0.0
      %4951 = vmatpush1.msra.mxu0 0.0
      %4952 = vmatprep.subr.mxu0 0.0
      %4953 = vmatpush1.msra.mxu0 0.0
      %4954 = vmatprep.subr.mxu0 0.0
      %4955 = vmatpush1.msra.mxu0 0.0
      %4956 = vmatprep.subr.mxu0 0.0
      %4957 = vmatpush1.msra.mxu0 0.0
      %4958 = vmatprep.subr.mxu0 0.0
      %4959 = vmatpush1.msra.mxu0 0.0
      %4960 = vmatprep.subr.mxu0 0.0
      %4961 = vmatpush1.msra.mxu0 0.0
      %4962 = vmatprep.subr.mxu0 0.0
      %4963 = vmatpush1.msra.mxu0 0.0
      %4964 = vmatprep.subr.mxu0 0.0
      %4965 = vmatpush1.msra.mxu0 0.0
      %4966 = vmatprep.subr.mxu0 0.0
      %4967 = vmatpush1.msra.mxu0 0.0
      %4968 = vmatprep.subr.mxu0 0.0
      %4969 = vmatpush1.msra.mxu0 0.0
      %4970 = vmatprep.subr.mxu0 0.0
      %4971 = vmatpush1.msra.mxu0 0.0
      %4972 = vmatprep.subr.mxu0 0.0
      %4973 = vmatpush1.msra.mxu0 0.0
      %4974 = vmatprep.subr.mxu0 0.0
      %4975 = vmatpush1.msra.mxu0 0.0
      %4976 = vmatprep.subr.mxu0 0.0
      %4977 = vmatpush1.msra.mxu0 0.0
      %4978 = vmatprep.subr.mxu0 0.0
      %4979 = vmatpush1.msra.mxu0 0.0
      %4980 = vmatprep.subr.mxu0 0.0
      %4981 = vmatpush1.msra.mxu0 0.0
      %4982 = vmatprep.subr.mxu0 0.0
      %4983 = vmatpush1.msra.mxu0 0.0
      %4984 = vmatprep.subr.mxu0 0.0
      %4985 = vmatpush1.msra.mxu0 0.0
      %4986 = vmatprep.subr.mxu0 0.0
      %4987 = vmatpush1.msra.mxu0 0.0
      %4988 = vmatprep.subr.mxu0 0.0
      %4989 = vmatpush1.msra.mxu0 0.0
      %4990 = vmatprep.subr.mxu0 0.0
      %4991 = vmatpush1.msra.mxu0 0.0
      %4992 = vmatprep.subr.mxu0 0.0
      %4993 = vmatpush1.msra.mxu0 0.0
      %4994 = vmatprep.subr.mxu0 0.0
      %4995 = vmatpush1.msra.mxu0 0.0
      %4996 = vmatprep.subr.mxu0 0.0
      %4997 = vmatpush1.msra.mxu0 0.0
      %4998 = vmatprep.subr.mxu0 0.0
      %4999 = vmatpush1.msra.mxu0 0.0
      %5000 = vmatprep.subr.mxu0 0.0
      %5001 = vmatpush1.msra.mxu0 0.0
      %5002 = vmatprep.subr.mxu0 0.0
      %5003 = vmatpush1.msra.mxu0 0.0
      %5004 = vmatprep.mubr.f32.mxu0 0.0
      %5005 = vmatmul.mubr.f32.gmra.mrb[0].mxu0 %v4915
      %v5006 = vpop.f32.mrb[0].mxu0
      %v5007 = vadd.f32 0.0, %v5006
      %v5008 = vpop.f32.mrb[0].mxu0
      %5009 = vmatprep.mubr.f32.mxu0 0.0
      %5010 = vmatmul.mubr.f32.gmra.mrb[0].mxu0 %v4918
      %v5011 = vpop.f32.mrb[0].mxu0
      %v5012 = vadd.f32 0.0, %v5011
      %v5013 = vpop.f32.mrb[0].mxu0
      %5014 = vmatprep.mubr.f32.mxu0 0.0
      %5015 = vmatmul.mubr.f32.gmra.mrb[0].mxu0 %v4921
      %v5016 = vpop.f32.mrb[0].mxu0
      %v5017 = vadd.f32 0.0, %v5016
      %v5018 = vpop.f32.mrb[0].mxu0
      %5019 = vmatprep.mubr.f32.mxu0 0.0
      %5020 = vmatmul.mubr.f32.gmra.mrb[0].mxu0 %v4924
      %v5021 = vpop.f32.mrb[0].mxu0
      %v5022 = vadd.f32 0.0, %v5021
      %v5023 = vpop.f32.mrb[0].mxu0
      %5024 = vmatprep.mubr.f32.mxu0 0.0
      %5025 = vmatmul.mubr.f32.gmra.mrb[0].mxu0 %v4927
      %v5026 = vpop.f32.mrb[0].mxu0
      %v5027 = vadd.f32 0.0, %v5026
      %v5028 = vpop.f32.mrb[0].mxu0
      %5029 = vmatprep.mubr.f32.mxu0 0.0
      %5030 = vmatmul.mubr.f32.gmra.mrb[0].mxu0 %v4930
      %v5031 = vpop.f32.mrb[0].mxu0
      %v5032 = vadd.f32 0.0, %v5031
      %v5033 = vpop.f32.mrb[0].mxu0
      %5034 = vmatprep.mubr.f32.mxu0 0.0
      %5035 = vmatmul.mubr.f32.gmra.mrb[0].mxu0 %v4933
      %v5036 = vpop.f32.mrb[0].mxu0
      %v5037 = vadd.f32 0.0, %v5036
      %v5038 = vpop.f32.mrb[0].mxu0
      %5039 = vmatprep.mubr.f32.mxu0 0.0
      %5040 = vmatmul.mubr.f32.gmra.mrb[0].mxu0 %v4936
      %v5041 = vpop.f32.mrb[0].mxu0
      %v5042 = vadd.f32 0.0, %v5041
      %v5043 = vpop.f32.mrb[0].mxu0
      %5044 = vdwg.mxu0
      %v5045 = vadd.f32 %v4537, %v5007
      %v5046 = vadd.f32 %v4538, %v5012
      %v5047 = vadd.f32 %v4539, %v5017
      %v5048 = vadd.f32 %v4540, %v5022
      %v5049 = vadd.f32 %v4541, %v5027
      %v5050 = vadd.f32 %v4542, %v5032
      %v5051 = vadd.f32 %v4543, %v5037
      %v5052 = vadd.f32 %v4544, %v5042
      %v5053 = vld [vmem:[%s10] sm:$0x1]
      %v5055 = vlaneseq
      %v5056 = vshrl.u32 %v5055, 7
      %v5057 = vsub.s32 0, %v5056
      %v5058 = vrot.slane %v5053, %v5057
      %v5060 = vadd.f32 %v5045, %v5058
      %v5061 = vadd.f32 %v5046, %v5058
      %v5062 = vadd.f32 %v5047, %v5058
      %v5063 = vadd.f32 %v5048, %v5058
      %v5064 = vadd.f32 %v5049, %v5058
      %v5065 = vadd.f32 %v5050, %v5058
      %v5066 = vadd.f32 %v5051, %v5058
      %v5067 = vadd.f32 %v5052, %v5058
      %5076 = vrot.lane.b32.xlu0 %v5060, 16
      %v5077 = vpop.permute.xlu0 %5076
      %5078 = vrot.lane.b32.xlu0 %v5061, 16
      %v5079 = vpop.permute.xlu0 %5078
      %5080 = vrot.lane.b32.xlu0 %v5062, 16
      %v5081 = vpop.permute.xlu0 %5080
      %5082 = vrot.lane.b32.xlu0 %v5063, 16
      %v5083 = vpop.permute.xlu0 %5082
      %5084 = vrot.lane.b32.xlu0 %v5064, 16
      %v5085 = vpop.permute.xlu0 %5084
      %5086 = vrot.lane.b32.xlu0 %v5065, 16
      %v5087 = vpop.permute.xlu0 %5086
      %5088 = vrot.lane.b32.xlu0 %v5066, 16
      %v5089 = vpop.permute.xlu0 %5088
      %5090 = vrot.lane.b32.xlu0 %v5067, 16
      %v5091 = vpop.permute.xlu0 %5090
      %vm5100 = vcmask 261248
      %5101 = vst.msk [vmem:[%s406] sm:$0xff] %vm5100, %v5077
      %5102 = vst.msk [vmem:[%s406 + $0x8] sm:$0xff] %vm5100, %v5079
      %5103 = vst.msk [vmem:[%s406 + $0x10] sm:$0xff] %vm5100, %v5081
      %5104 = vst.msk [vmem:[%s406 + $0x18] sm:$0xff] %vm5100, %v5083
      %5105 = vst.msk [vmem:[%s406 + $0x20] sm:$0xff] %vm5100, %v5085
      %5106 = vst.msk [vmem:[%s406 + $0x28] sm:$0xff] %vm5100, %v5087
      %5107 = vst.msk [vmem:[%s406 + $0x30] sm:$0xff] %vm5100, %v5089
      %5108 = vst.msk [vmem:[%s406 + $0x38] sm:$0xff] %vm5100, %v5091
      %p5109 = scmp.lt.s32.totalorder %s22, 1
      %s5110 = scalar_select %p5109, %s22, 1
      %s5111 = smul.addr %s5110, 8
      %s5112 = smul.addr %s5111, 8
      %s5113 = scalar_lea.vmem %s11, %s5112
      // Predicated region
      $region65: #{_lambda_.1} parent=63 // pred_check
        %p5114 = pneg %p281
      $region66: #{_lambda_.1} parent=63 // pred_check_branch
        %5116 = sbr.rel (%p5114) target = $region68
      $region67: #{_lambda_.1} parent=63 // pred_region
        _
      $region68: #{_lambda_.1} parent=63 // pred_fallthru
        _
    $region64: #{_lambda_.1} parent=5 // pred_fallthru
      _
    %p5117 = scmp.le.s32.totalorder 2, %s17
    // Predicated region
    $region69: #{_lambda_.1} parent=5 // pred_check
      %p5118 = pneg %p5117
    $region70: #{_lambda_.1} parent=5 // pred_check_branch
      %5120 = sbr.rel (%p5118) target = $region72
    $region71: #{_lambda_.1} parent=5 // pred_region
      %s5121 = ssub.s32 %s17, 2
      // Predicated region
      $region73: #{_lambda_.1} parent=71 // pred_check
        %p5122 = pneg %p287
      $region74: #{_lambda_.1} parent=71 // pred_check_branch
        %5124 = sbr.rel (%p5122) target = $region76
      $region75: #{_lambda_.1} parent=71 // pred_region
        %p5125 = scmp.lt.s32.totalorder %s23, 1
        %s5126 = scalar_select %p5125, %s23, 1
        %s5127 = smul.addr %s5126, 8
        %s5128 = smul.addr %s5127, 8
        %s5129 = scalar_lea.vmem %s11, %s5128
      $region76: #{_lambda_.1} parent=71 // pred_fallthru
        _
    $region72: #{_lambda_.1} parent=5 // pred_fallthru
      _
  $region6: #{_lambda_.1} parent=0 // loop_footer
    %s21 = sadd.s32 1, %s17
  $region7: #{_lambda_.1} parent=0 // loop_footer_branch
    %16 = sbr.rel target = $region3
  $region8: #{_lambda_.1} parent=0 // loop_exit
    _

</llo_original>
